<compile_context>
chip_gen: v7x
topology: tpu7x:2x2x1
jax: 0.10.0
libtpu: 0.0.40
codegen_flags: <defaults>
</compile_context>

<pallas_src>
import functools

import numpy as np
import jax
import jax.numpy as jnp
from jax import lax
from jax.experimental import pallas as pl
from jax.experimental.pallas import tpu as pltpu

NEG_SLOPE = 0.1
HALO = 128                       # per-side context block (lanes) in multi-tile mode
ACT_DTYPE = jnp.bfloat16         # inter-stage activation storage dtype


def _cdiv(a, b):
    return -(-a // b)


@functools.lru_cache(maxsize=None)
def _vmem_limit_bytes():
    try:
        cap = int(pltpu.get_tpu_info().vmem_capacity_bytes)
    except Exception:
        cap = 128 * 1024 * 1024
    return max(32 * 1024 * 1024, min(100 * 1024 * 1024, (cap * 3) // 4))


def _same_pad(kernel, dilation):
    total = dilation * (kernel - 1)
    left = total // 2
    return left, total - left


def _lrelu(x, neg_slope=NEG_SLOPE):
    return jnp.where(x >= 0, x, neg_slope * x)


def _choose_tile(l_out, c_ref, *, heavy=False):
    """Lane tile per grid step as a function of channel width (longer tiles on
    the late, small-C, HBM-bound stages)."""
    if c_ref >= 384:
        target = 512
    elif c_ref >= 192:
        target = 1024
    else:
        target = 2048
    if heavy:                     # fused MRF keeps larger in-kernel temporaries
        target = max(512, target // 2)
    if l_out <= target:
        return int(l_out), 1
    return target, _cdiv(int(l_out), target)


# --------------------------- input views / slabs ------------------------------
def _halo_specs(c_in, l_in, lt):
    """Multi-tile input views: one Lt main block + one 128-lane context block per
    side.  All block indices are clamped in-bounds; the kernel masks by global
    position, so clamped / partial-block garbage never reaches a stored column."""
    q = lt // HALO
    n128 = _cdiv(l_in, HALO)
    n_main = _cdiv(l_in, lt)
    prev = pl.BlockSpec((1, c_in, HALO),
                        lambda bi, ti: (bi, 0, jnp.clip(ti * q - 1, 0, n128 - 1)))
    main = pl.BlockSpec((1, c_in, lt),
                        lambda bi, ti: (bi, 0, jnp.minimum(ti, n_main - 1)))
    nxt = pl.BlockSpec((1, c_in, HALO),
                       lambda bi, ti: (bi, 0, jnp.minimum((ti + 1) * q, n128 - 1)))
    return [prev, main, nxt]


def _slab_multi(x_refs, lt, l_in, apply_lrelu, neg_slope):
    slab = jnp.concatenate([x_refs[0][0], x_refs[1][0], x_refs[2][0]], axis=1)
    slab = slab.astype(jnp.float32)
    n0 = pl.program_id(1) * lt
    pos = (n0 - HALO) + lax.broadcasted_iota(jnp.int32, (1, slab.shape[1]), 1)
    slab = jnp.where((pos >= 0) & (pos < l_in), slab, 0.0)   # in-kernel zero pad
    if apply_lrelu:
        slab = _lrelu(slab, neg_slope)
    return slab


def _slab_single(x_ref, apply_lrelu, neg_slope):
    slab = x_ref[0].astype(jnp.float32)      # already zero-padded on the host
    if apply_lrelu:
        slab = _lrelu(slab, neg_slope)
    return slab


# --------------------------- fused Conv1d kernel ------------------------------
def _make_conv_kernel(*, K, dil, Lt, L_in, left, multi, apply_lrelu, apply_tanh,
                      neg_slope, vpu):
    LC = HALO if multi else left
    off0 = LC - left
    n_x = 3 if multi else 1

    def kernel(*refs):
        x_refs = refs[:n_x]
        w_ref, b_ref, o_ref = refs[n_x], refs[n_x + 1], refs[n_x + 2]
        if multi:
            slab = _slab_multi(x_refs, Lt, L_in, apply_lrelu, neg_slope)
        else:
            slab = _slab_single(x_refs[0], apply_lrelu, neg_slope)
        if vpu:
            # C_out == 1: per-tap VPU FMA + sublane reduce (no 1/256-utilized
            # MXU pass, no im2col build).  Operands quantized to bf16 so the
            # numerics match the MXU path / reference.
            slab = slab.astype(jnp.bfloat16).astype(jnp.float32)
            h = w_ref[:, 0:1] * slab[:, off0:off0 + Lt]
            for k in range(1, K):
                h = h + w_ref[:, k:k + 1] * slab[:, off0 + k * dil:off0 + k * dil + Lt]
            acc = jnp.sum(h, axis=0, keepdims=True) + b_ref[...]
        else:
            slab = slab.astype(jnp.bfloat16)      # bf16 MXU feed, f32 accumulate
            cols = [slab[:, off0 + k * dil:off0 + k * dil + Lt] for k in range(K)]
            im2col = cols[0] if K == 1 else jnp.concatenate(cols, axis=0)
            acc = jnp.dot(w_ref[...], im2col,
                          preferred_element_type=jnp.float32) + b_ref[...]
        if apply_tanh:
            acc = jnp.tanh(acc)
        o_ref[0] = acc.astype(o_ref.dtype)
    return kernel


def conv1d_pallas(x, w_mat, b_col, *, K, dilation=1, padding, apply_lrelu=False,
                  apply_tanh=False, out_dtype=ACT_DTYPE, vpu=False):
    """x: (B, C_in, L_in) -> (B, C_out, L_out).
    w_mat: (C_out, K*C_in) bf16 tap-major (MXU path) or (C_in, K) f32 (vpu)."""
    B, C_in, L_in = x.shape
    left, right = padding
    halo = dilation * (K - 1)
    L_out = L_in + left + right - halo
    assert L_out > 0
    C_out = 1 if vpu else int(w_mat.shape[0])

    Lt, n_t = _choose_tile(L_out, max(C_in, C_out))
    if n_t > 1 and L_in < Lt:                  # degenerate case: one tile instead
        Lt, n_t = L_out, 1
    multi = n_t > 1
    if multi:
        assert left <= HALO and (halo - left) <= HALO, \
            "conv receptive-field context must fit inside one 128-lane halo block"
        x_in, x_specs = x, _halo_specs(C_in, L_in, Lt)
    else:
        x_in = jnp.pad(x, ((0, 0), (0, 0), (left, right)))
        Lp = L_in + left + right
        x_specs = [pl.BlockSpec((1, C_in, Lp), lambda bi, ti: (bi, 0, 0))]

    kernel = _make_conv_kernel(K=K, dil=dilation, Lt=Lt, L_in=L_in, left=left,
                               multi=multi, apply_lrelu=apply_lrelu,
                               apply_tanh=apply_tanh, neg_slope=NEG_SLOPE,
                               vpu=vpu)
    out_isz = np.dtype(out_dtype).itemsize
    cost = pl.CostEstimate(
        flops=int(2 * B * L_out * C_out * C_in * K),
        transcendentals=int(B * C_out * L_out) if apply_tanh else 0,
        bytes_accessed=int(B * C_in * L_in * x.dtype.itemsize
                           + B * C_out * L_out * out_isz
                           + w_mat.size * w_mat.dtype.itemsize))
    return pl.pallas_call(
        kernel,
        out_shape=jax.ShapeDtypeStruct((B, C_out, L_out), out_dtype),
        grid=(B, n_t),
        in_specs=x_specs + [
            pl.BlockSpec(tuple(w_mat.shape), lambda bi, ti: (0, 0)),
            pl.BlockSpec(tuple(b_col.shape), lambda bi, ti: (0, 0))],
        out_specs=pl.BlockSpec((1, C_out, Lt), lambda bi, ti: (bi, 0, ti)),
        compiler_params=pltpu.CompilerParams(
            dimension_semantics=("parallel", "parallel"),
            vmem_limit_bytes=_vmem_limit_bytes()),
        cost_estimate=cost,
    )(*([x_in] * len(x_specs)), w_mat, b_col)


# --------------------------- fused MRF stage kernel ---------------------------
def _make_mrf_kernel(*, meta, C, Lt, L, EL, multi, neg_slope):
    LC = HALO if multi else EL
    n_x = 3 if multi else 1

    def kernel(*refs):
        x_refs = refs[:n_x]
        w_ref, b1_ref, b2_ref, o_ref = refs[n_x:n_x + 4]
        if multi:
            slab = _slab_multi(x_refs, Lt, L, True, neg_slope)
        else:
            slab = _slab_single(x_refs[0], True, neg_slope)
        slab = slab.astype(jnp.bfloat16)     # LeakyReLU(x) shared by every branch
        n0 = pl.program_id(1) * Lt
        acc = jnp.zeros((C, Lt), jnp.float32)
        for i, m in enumerate(meta):
            K, d = m['K'], m['d']
            l1, l2, r2 = m['l1'], m['l2'], m['r2']
            W1 = Lt + l2 + r2                 # conv1 output incl. conv2 halo
            start = LC - (l1 + l2)
            cols = [slab[:, start + k * d:start + k * d + W1] for k in range(K)]
            im1 = cols[0] if K == 1 else jnp.concatenate(cols, axis=0)
            w1 = w_ref[:, m['off1']:m['off1'] + K * C]
            h = jnp.dot(w1, im1, preferred_element_type=jnp.float32) + b1_ref[i]
            # zero h outside the sequence so conv2's 'same' zero padding is exact;
            # h never round-trips through HBM.
            g = (n0 - l2) + lax.broadcasted_iota(jnp.int32, (1, W1), 1)
            h = jnp.where((g >= 0) & (g < L), h, 0.0)
            h = _lrelu(h, neg_slope).astype(jnp.bfloat16)
            cols2 = [h[:, k:k + Lt] for k in range(K)]
            im2 = cols2[0] if K == 1 else jnp.concatenate(cols2, axis=0)
            w2 = w_ref[:, m['off2']:m['off2'] + K * C]
            acc = acc + jnp.dot(w2, im2, preferred_element_type=jnp.float32)
        acc = acc + b2_ref[...]               # all conv2 biases, pre-summed once
        o_ref[0] = acc.astype(o_ref.dtype)
    return kernel


def mrf_pallas(x, mrf_prep, *, out_dtype=ACT_DTYPE):
    """Whole MRF stage (sum over all ResBlock branches of
    Conv(dil=1)(LReLU(Conv(dil=d)(LReLU(x))))) in a single pallas_call."""
    B, C, L = x.shape
    meta = mrf_prep['meta']
    w_slab, b1, b2 = mrf_prep['w_slab'], mrf_prep['b1'], mrf_prep['b2_sum']
    EL = max(m['l1'] + m['l2'] for m in meta)
    ER = max(m['r1'] + m['r2'] for m in meta)

    Lt, n_t = _choose_tile(L, C, heavy=True)
    multi = n_t > 1
    if multi:
        assert EL <= HALO and ER <= HALO, \
            "MRF receptive field must fit inside one 128-lane halo block"
        x_in, x_specs = x, _halo_specs(C, L, Lt)
    else:
        x_in = jnp.pad(x, ((0, 0), (0, 0), (EL, ER)))
        x_specs = [pl.BlockSpec((1, C, L + EL + ER), lambda bi, ti: (bi, 0, 0))]

    kernel = _make_mrf_kernel(meta=meta, C=C, Lt=Lt, L=L, EL=EL, multi=multi,
                              neg_slope=NEG_SLOPE)
    # TODO(synk): at C>=256 the consolidated weight slab (~16 MiB bf16) is still
    # double-buffered by the auto-pipeline; single-buffer it (pl.Buffered(1)) or
    # split per resblock kernel size before scaling to v7x's 64 MiB VMEM.
    cost = pl.CostEstimate(
        flops=int(sum(4 * B * L * C * C * m['K'] for m in meta)),
        transcendentals=0,
        bytes_accessed=int(B * C * L * (x.dtype.itemsize
                                        + np.dtype(out_dtype).itemsize)
                           + w_slab.size * w_slab.dtype.itemsize))
    return pl.pallas_call(
        kernel,
        out_shape=jax.ShapeDtypeStruct((B, C, L), out_dtype),
        grid=(B, n_t),
        in_specs=x_specs + [
            pl.BlockSpec(tuple(w_slab.shape), lambda bi, ti: (0, 0)),
            pl.BlockSpec(tuple(b1.shape), lambda bi, ti: (0, 0, 0)),
            pl.BlockSpec(tuple(b2.shape), lambda bi, ti: (0, 0))],
        out_specs=pl.BlockSpec((1, C, Lt), lambda bi, ti: (bi, 0, ti)),
        compiler_params=pltpu.CompilerParams(
            dimension_semantics=("parallel", "parallel"),
            vmem_limit_bytes=_vmem_limit_bytes()),
        cost_estimate=cost,
    )(*([x_in] * len(x_specs)), w_slab, b1, b2)


# -------------------- polyphase ConvTranspose1d (no zero-stuffing) ------------
def conv_transpose1d_pallas(x, prep, *, apply_lrelu=True):
    """Fused LeakyReLU + ConvTranspose1d: polyphase conv with stride*C_out
    output rows, then a phase interleave."""
    B, C_in, L = x.shape
    s, C_out = prep['s'], prep['C_out']
    if not prep['poly']:
        # TODO(synk): exotic stride/padding combos fall back to a zero-stuffed
        # input (wastes ~stride x MXU work and HBM traffic).
        x_up = jnp.zeros((B, C_in, (L - 1) * s + 1), x.dtype)
        x_up = x_up.at[:, :, ::s].set(x)
        return conv1d_pallas(x_up, prep['w_mat'], prep['b'], K=prep['K'],
                             dilation=1, padding=prep['pad'],
                             apply_lrelu=apply_lrelu)
    y = conv1d_pallas(x, prep['w_mat'], prep['b'], K=prep['T'], dilation=1,
                      padding=prep['pad'], apply_lrelu=apply_lrelu)
    M = y.shape[2]
    # TODO(synk): this phase interleave is one XLA transpose pass (now bf16)
    # over the freshly upsampled tensor per stage; folding it into the consumer
    # kernel's read path would remove it.
    return (y.reshape(B, s, C_out, M)
             .transpose(0, 2, 3, 1)
             .reshape(B, C_out, M * s))


# --------------------------- one-time parameter prep --------------------------
def _prep_conv(w, b, *, dilation=1):
    C_out, C_in, K = (int(v) for v in w.shape)
    w_mat = jnp.transpose(w, (0, 2, 1)).reshape(C_out, K * C_in).astype(jnp.bfloat16)
    return {'w_mat': w_mat, 'b': b.reshape(C_out, 1).astype(jnp.float32),
            'K': K, 'dil': int(dilation), 'pad': _same_pad(K, int(dilation)),
            'vpu': False}


def _prep_conv_1ch(w, b):
    # C_out == 1: VPU path weights (bf16-quantized, stored f32).
    _, C_in, K = (int(v) for v in w.shape)
    w_vpu = w[0].astype(jnp.bfloat16).astype(jnp.float32)       # (C_in, K)
    return {'w_mat': w_vpu, 'b': b.reshape(1, 1).astype(jnp.float32),
            'K': K, 'dil': 1, 'pad': _same_pad(K, 1), 'vpu': True}


def _prep_conv_transpose(w_t, b, *, stride, padding):
    C_in, C_out, K = (int(v) for v in w_t.shape)
    s, p = int(stride), int(padding)
    assert K - 1 - p >= 0, "padding > kernel_size-1 is not supported"
    poly = s > 1 and (K - 2 * p) % s == 0
    if poly:
        t_min = -((K - 1 - p) // s)
        t_max = (s - 1 + p) // s
        T = t_max - t_min + 1
        left = -t_min
        right = t_max - 1 + (K - 2 * p) // s
        poly = left >= 0 and right >= 0
    if not poly:
        w_conv = jnp.flip(jnp.transpose(w_t, (1, 0, 2)), axis=-1)
        w_mat = jnp.transpose(w_conv, (0, 2, 1)).reshape(C_out, K * C_in)
        return {'poly': False, 's': s, 'C_out': C_out, 'K': K,
                'pad': (K - 1 - p, K - 1 - p),
                'w_mat': w_mat.astype(jnp.bfloat16),
                'b': b.reshape(C_out, 1).astype(jnp.float32)}
    # Polyphase taps: out[:, o, m*s+phi] = sum_{c,j} Wp[phi*C_out+o, c, j]
    #                                       * x[:, c, m + t_min + j]
    kk = (np.arange(s).reshape(s, 1) + p
          - (t_min + np.arange(T).reshape(1, T)) * s)            # (s, T) tap ids
    valid = (kk >= 0) & (kk < K)
    w_g = jnp.take(w_t, jnp.asarray(np.clip(kk, 0, K - 1), jnp.int32), axis=2)
    w_g = jnp.where(jnp.asarray(valid)[None, None, :, :], w_g, 0.0)  # (Cin,Cout,s,T)
    w_poly = jnp.transpose(w_g, (2, 1, 0, 3)).reshape(s * C_out, C_in, T)
    w_mat = jnp.transpose(w_poly, (0, 2, 1)).reshape(s * C_out, T * C_in)
    return {'poly': True, 's': s, 'C_out': C_out, 'T': T, 'pad': (left, right),
            'w_mat': w_mat.astype(jnp.bfloat16),
            'b': jnp.tile(b, s).reshape(s * C_out, 1).astype(jnp.float32)}


def _prep_mrf(branches, C):
    metas, w_cols, b1s = [], [], []
    b2_sum = jnp.zeros((C,), jnp.float32)
    off = 0
    for br in branches:
        K, d = int(br['kernel']), int(br['dil'])
        l1, r1 = _same_pad(K, d)
        l2, r2 = _same_pad(K, 1)
        w_cols.append(jnp.transpose(br['c1']['w'], (0, 2, 1))
                      .reshape(C, K * C).astype(jnp.bfloat16))
        w_cols.append(jnp.transpose(br['c2']['w'], (0, 2, 1))
                      .reshape(C, K * C).astype(jnp.bfloat16))
        b1s.append(br['c1']['b'].astype(jnp.float32))
        b2_sum = b2_sum + br['c2']['b'].astype(jnp.float32)
        metas.append(dict(K=K, d=d, l1=l1, r1=r1, l2=l2, r2=r2,
                          off1=off, off2=off + K * C))
        off += 2 * K * C
    return {'w_slab': jnp.concatenate(w_cols, axis=1),    # (C, sum_i 2*K_i*C) bf16
            'b1': jnp.stack(b1s).reshape(len(branches), C, 1),
            'b2_sum': b2_sum.reshape(C, 1),
            'meta': metas}


def prepare_generator_params(params):
    """One-time layout/cast prep so the jitted forward contains only
    pallas_calls (+ the polyphase phase interleave)."""
    prep = {'pre': _prep_conv(params['pre']['w'], params['pre']['b'], dilation=1)}
    ups = []
    for up in params['ups']:
        C_out = int(up['up']['w'].shape[1])
        branches = [br for blk in up['mrf'] for br in blk]
        ups.append({'up': _prep_conv_transpose(up['up']['w'], up['up']['b'],
                                               stride=up['stride'],
                                               padding=up['padding']),
                    'mrf': _prep_mrf(branches, C_out)})
    prep['ups'] = ups
    post_w, post_b = params['post']['w'], params['post']['b']
    prep['post'] = (_prep_conv_1ch(post_w, post_b) if int(post_w.shape[0]) == 1
                    else _prep_conv(post_w, post_b, dilation=1))
    return prep


# --------------------------- parameter init -----------------------------------
def init_generator_params(key, *, n_mels, initial_channels, upsample_rates,
                          upsample_kernel_sizes, resblock_kernel_sizes,
                          resblock_dilation_sizes, pre_kernel_size=7,
                          post_kernel_size=7):
    state = {'key': key}

    def nxt():
        state['key'], sub = jax.random.split(state['key'])
        return sub

    def conv_p(c_out, c_in, k):
        return {'w': 0.1 * jax.random.normal(nxt(), (c_out, c_in, k), jnp.float32),
                'b': 0.1 * jax.random.normal(nxt(), (c_out,), jnp.float32)}

    def convT_p(c_in, c_out, k):
        return {'w': 0.1 * jax.random.normal(nxt(), (c_in, c_out, k), jnp.float32),
                'b': 0.1 * jax.random.normal(nxt(), (c_out,), jnp.float32)}

    params = {'pre': conv_p(initial_channels, n_mels, pre_kernel_size),
              'pre_k': pre_kernel_size, 'post_k': post_kernel_size}
    ups = []
    num_blocks = len(upsample_rates)
    for i in range(num_blocks):
        c_in = initial_channels // (2 ** i)
        c_out = initial_channels // (2 ** (i + 1))
        up = {'up': convT_p(c_in, c_out, upsample_kernel_sizes[i]),
              'stride': int(upsample_rates[i]),
              'padding': (upsample_kernel_sizes[i] - upsample_rates[i]) // 2,
              'mrf': []}
        for r, dils in enumerate(resblock_dilation_sizes):
            kr = int(resblock_kernel_sizes[r])
            branches = []
            for d in dils:
                branches.append({'c1': conv_p(c_out, c_out, kr),
                                 'c2': conv_p(c_out, c_out, kr),
                                 'dil': int(d), 'kernel': kr})
            up['mrf'].append(branches)
        ups.append(up)
    params['ups'] = ups
    params['post'] = conv_p(1, initial_channels // (2 ** num_blocks),
                            post_kernel_size)
    return params


# --------------------------- Pallas forward pass -------------------------------
def generator_forward_pallas(prep, x):
    pc = prep['pre']
    x = conv1d_pallas(x, pc['w_mat'], pc['b'], K=pc['K'], dilation=pc['dil'],
                      padding=pc['pad'])
    for up in prep['ups']:
        # LeakyReLU + polyphase ConvTranspose1d (fused)
        x = conv_transpose1d_pallas(x, up['up'], apply_lrelu=True)
        # Whole MRF stage (sum of all ResBlock branches) in one kernel.
        x = mrf_pallas(x, up['mrf'])
    # post: LeakyReLU -> Conv1d (VPU, C_out=1) -> Tanh, all fused.
    po = prep['post']
    x = conv1d_pallas(x, po['w_mat'], po['b'], K=po['K'], dilation=po['dil'],
                      padding=po['pad'], apply_lrelu=True, apply_tanh=True,
                      out_dtype=jnp.float32, vpu=po['vpu'])
    return x


# ----------------------- independent lax reference -----------------------------
# (matches the kernels' bf16-operand / bf16 inter-stage / f32-accumulation
#  quantization points)
def _ref_lrelu(x):
    x = x.astype(jnp.float32)
    return jnp.where(x >= 0, x, NEG_SLOPE * x)


def _ref_conv1d(x, w, b, dilation, padding):
    out = lax.conv_general_dilated(
        x.astype(jnp.bfloat16), w.astype(jnp.bfloat16), window_strides=(1,),
        padding=[padding], rhs_dilation=(dilation,),
        dimension_numbers=('NCH', 'OIH', 'NCH'),
        preferred_element_type=jnp.float32)
    return out + b[None, :, None]


def _ref_conv_transpose1d(x, w_t, b, stride, padding):
    K = w_t.shape[2]
    w_conv = jnp.flip(jnp.transpose(w_t, (1, 0, 2)), axis=-1)
    out = lax.conv_general_dilated(
        x.astype(jnp.bfloat16), w_conv.astype(jnp.bfloat16),
        window_strides=(1,), padding=[(K - 1 - padding, K - 1 - padding)],
        lhs_dilation=(stride,), dimension_numbers=('NCH', 'OIH', 'NCH'),
        preferred_element_type=jnp.float32)
    return out + b[None, :, None]


def generator_forward_ref(params, x):
    p = params
    q = lambda a: a.astype(jnp.bfloat16)
    x = q(_ref_conv1d(x, p['pre']['w'], p['pre']['b'], 1, _same_pad(p['pre_k'], 1)))
    for up in p['ups']:
        x = q(_ref_conv_transpose1d(_ref_lrelu(x), up['up']['w'], up['up']['b'],
                                    up['stride'], up['padding']))
        mrf_out = None
        for branches in up['mrf']:
            for br in branches:
                h = _ref_conv1d(_ref_lrelu(x), br['c1']['w'], br['c1']['b'],
                                br['dil'], _same_pad(br['kernel'], br['dil']))
                h = _ref_conv1d(_ref_lrelu(h), br['c2']['w'], br['c2']['b'],
                                1, _same_pad(br['kernel'], 1))
                mrf_out = h if mrf_out is None else mrf_out + h
        x = q(mrf_out)
    x = jnp.tanh(_ref_conv1d(_ref_lrelu(x), p['post']['w'], p['post']['b'], 1,
                             _same_pad(p['post_k'], 1)))
    return x


# ----------------------------------- main ---------------------------------------
if __name__ == "__main__":
    key = jax.random.PRNGKey(0)
    cfg = dict(
        n_mels=8,
        initial_channels=16,
        upsample_rates=[2, 2],
        upsample_kernel_sizes=[4, 4],
        resblock_kernel_sizes=[3, 5],
        resblock_dilation_sizes=[[1, 2], [1, 3]],
        pre_kernel_size=7,
        post_kernel_size=7,
    )
    pkey, xkey1, xkey2 = jax.random.split(key, 3)
    params = init_generator_params(pkey, **cfg)
    prepared = prepare_generator_params(params)

    fwd = jax.jit(lambda xx: generator_forward_pallas(prepared, xx))
    ref = jax.jit(lambda xx: generator_forward_ref(params, xx))

    # 1) tiny shapes -> single-tile (full-length-block) path in every stage
    B, L = 2, 8                                    # x: (batch, n_mels, frames)
    x1 = jax.random.normal(xkey1, (B, cfg['n_mels'], L), jnp.float32)
    out1 = jax.block_until_ready(fwd(x1))
    assert out1.shape == (B, 1, L * 4), out1.shape   # total upsample = 2*2
    ref1 = jax.block_until_ready(ref(x1))
    np.testing.assert_allclose(np.asarray(out1), np.asarray(ref1),
                               rtol=5e-3, atol=5e-3)

    # 2) longer clip -> exercises the multi-tile (128-lane halo, in-kernel pad)
    #    path of the MXU conv, the fused MRF and the VPU post conv.
    L2 = 1200
    x2 = jax.random.normal(xkey2, (B, cfg['n_mels'], L2), jnp.float32)
    out2 = jax.block_until_ready(fwd(x2))
    assert out2.shape == (B, 1, L2 * 4), out2.shape
    ref2 = jax.block_until_ready(ref(x2))
    np.testing.assert_allclose(np.asarray(out2), np.asarray(ref2),
                               rtol=5e-3, atol=5e-3)

    print("KERNEL_OK")
</pallas_src>

<mosaic_0001>
module attributes {stable_mosaic.version = 11 : i64} {
  func.func @kernel(%arg0: i32, %arg1: i32, %arg2: memref<1x8x14xf32, #tpu.memory_space<vmem>>, %arg3: memref<16x56xbf16, #tpu.memory_space<vmem>>, %arg4: memref<16x1xf32, #tpu.memory_space<vmem>>, %arg5: memref<1x16x8xbf16, #tpu.memory_space<vmem>>) attributes {dimension_semantics = [#tpu.dimension_semantics<parallel>, #tpu.dimension_semantics<parallel>], iteration_bounds = array<i64: 2, 1>, scalar_prefetch = 0 : i64, scratch_operands = 0 : i64, tpu.core_type = #tpu.core_type<tc>, window_params = [{transform_indices = @transform_0, window_bounds = array<i64: 1, 8, 14>}, {pipeline_mode = #tpu.pipeline_mode<synchronous>, transform_indices = @transform_1, window_bounds = array<i64: 16, 56>}, {pipeline_mode = #tpu.pipeline_mode<synchronous>, transform_indices = @transform_2, window_bounds = array<i64: 16, 1>}, {transform_indices = @transform_3, window_bounds = array<i64: 1, 16, 8>}]} {
    %c0 = arith.constant 0 : index
    %c0_0 = arith.constant 0 : index
    %c0_1 = arith.constant 0 : index
    %0 = vector.load %arg2[%c0, %c0_0, %c0_1] : memref<1x8x14xf32, #tpu.memory_space<vmem>>, vector<1x8x14xf32>
    %1 = vector.shape_cast %0 : vector<1x8x14xf32> to vector<8x14xf32>
    %2 = arith.truncf %1 : vector<8x14xf32> to vector<8x14xbf16>
    %3 = vector.extract_strided_slice %2 {offsets = [0, 0], sizes = [8, 8], strides = [1, 1]} : vector<8x14xbf16> to vector<8x8xbf16>
    %4 = vector.extract_strided_slice %2 {offsets = [0, 1], sizes = [8, 8], strides = [1, 1]} : vector<8x14xbf16> to vector<8x8xbf16>
    %5 = vector.extract_strided_slice %2 {offsets = [0, 2], sizes = [8, 8], strides = [1, 1]} : vector<8x14xbf16> to vector<8x8xbf16>
    %6 = vector.extract_strided_slice %2 {offsets = [0, 3], sizes = [8, 8], strides = [1, 1]} : vector<8x14xbf16> to vector<8x8xbf16>
    %7 = vector.extract_strided_slice %2 {offsets = [0, 4], sizes = [8, 8], strides = [1, 1]} : vector<8x14xbf16> to vector<8x8xbf16>
    %8 = vector.extract_strided_slice %2 {offsets = [0, 5], sizes = [8, 8], strides = [1, 1]} : vector<8x14xbf16> to vector<8x8xbf16>
    %9 = vector.extract_strided_slice %2 {offsets = [0, 6], sizes = [8, 8], strides = [1, 1]} : vector<8x14xbf16> to vector<8x8xbf16>
    %10 = tpu.concatenate %3, %4, %5, %6, %7, %8, %9 in 0 : vector<8x8xbf16>, vector<8x8xbf16>, vector<8x8xbf16>, vector<8x8xbf16>, vector<8x8xbf16>, vector<8x8xbf16>, vector<8x8xbf16> -> vector<56x8xbf16>
    %c0_2 = arith.constant 0 : index
    %c0_3 = arith.constant 0 : index
    %11 = vector.load %arg3[%c0_2, %c0_3] : memref<16x56xbf16, #tpu.memory_space<vmem>>, vector<16x56xbf16>
    %cst = arith.constant dense<0.000000e+00> : vector<16x8xf32>
    %12 = tpu.matmul %11, %10, %cst {dimension_numbers = #tpu.dot_dimension_numbers<[1], [0], [0], [1], [0, 0, 1, 1], [], []>} : vector<16x56xbf16>, vector<56x8xbf16>, vector<16x8xf32> -> vector<16x8xf32>
    %c0_4 = arith.constant 0 : index
    %c0_5 = arith.constant 0 : index
    %13 = vector.load %arg4[%c0_4, %c0_5] : memref<16x1xf32, #tpu.memory_space<vmem>>, vector<16x1xf32>
    %14 = vector.broadcast %13 : vector<16x1xf32> to vector<16x8xf32>
    %15 = arith.addf %12, %14 : vector<16x8xf32>
    %16 = arith.truncf %15 : vector<16x8xf32> to vector<16x8xbf16>
    %c0_6 = arith.constant 0 : index
    %c0_7 = arith.constant 0 : index
    %c0_8 = arith.constant 0 : index
    %17 = vector.load %arg5[%c0_6, %c0_7, %c0_8] : memref<1x16x8xbf16, #tpu.memory_space<vmem>>, vector<1x16x8xbf16>
    %18 = vector.shape_cast %17 : vector<1x16x8xbf16> to vector<16x8xbf16>
    %19 = vector.shape_cast %16 : vector<16x8xbf16> to vector<1x16x8xbf16>
    tpu.vector_store %arg5[%c0_6, %c0_7, %c0_8], %19 {strides = array<i32>} : memref<1x16x8xbf16, #tpu.memory_space<vmem>>, vector<1x16x8xbf16>,
    return
  }
  func.func @transform_0(%arg0: i32, %arg1: i32) -> (i32, i32, i32) {
    %c0_i32 = arith.constant 0 : i32
    %c0_i32_0 = arith.constant 0 : i32
    %c0_i32_1 = arith.constant 0 : i32
    return %arg0, %c0_i32, %c0_i32_0 : i32, i32, i32
  }
  func.func @transform_1(%arg0: i32, %arg1: i32) -> (i32, i32) {
    %c0_i32 = arith.constant 0 : i32
    %c0_i32_0 = arith.constant 0 : i32
    %c0_i32_1 = arith.constant 0 : i32
    return %c0_i32, %c0_i32_0 : i32, i32
  }
  func.func @transform_2(%arg0: i32, %arg1: i32) -> (i32, i32) {
    %c0_i32 = arith.constant 0 : i32
    %c0_i32_0 = arith.constant 0 : i32
    %c0_i32_1 = arith.constant 0 : i32
    return %c0_i32, %c0_i32_0 : i32, i32
  }
  func.func @transform_3(%arg0: i32, %arg1: i32) -> (i32, i32, i32) {
    %c0_i32 = arith.constant 0 : i32
    %c0_i32_0 = arith.constant 0 : i32
    return %arg0, %c0_i32, %arg1 : i32, i32, i32
  }
}

module attributes {stable_mosaic.version = 11 : i64} {
  func.func @kernel(%arg0: i32, %arg1: i32, %arg2: memref<1x16x10xbf16, #tpu.memory_space<vmem>>, %arg3: memref<16x48xbf16, #tpu.memory_space<vmem>>, %arg4: memref<16x1xf32, #tpu.memory_space<vmem>>, %arg5: memref<1x16x8xbf16, #tpu.memory_space<vmem>>) attributes {dimension_semantics = [#tpu.dimension_semantics<parallel>, #tpu.dimension_semantics<parallel>], iteration_bounds = array<i64: 2, 1>, scalar_prefetch = 0 : i64, scratch_operands = 0 : i64, tpu.core_type = #tpu.core_type<tc>, window_params = [{transform_indices = @transform_0, window_bounds = array<i64: 1, 16, 10>}, {pipeline_mode = #tpu.pipeline_mode<synchronous>, transform_indices = @transform_1, window_bounds = array<i64: 16, 48>}, {pipeline_mode = #tpu.pipeline_mode<synchronous>, transform_indices = @transform_2, window_bounds = array<i64: 16, 1>}, {transform_indices = @transform_3, window_bounds = array<i64: 1, 16, 8>}]} {
    %c0 = arith.constant 0 : index
    %c0_0 = arith.constant 0 : index
    %c0_1 = arith.constant 0 : index
    %0 = vector.load %arg2[%c0, %c0_0, %c0_1] : memref<1x16x10xbf16, #tpu.memory_space<vmem>>, vector<1x16x10xbf16>
    %1 = vector.shape_cast %0 : vector<1x16x10xbf16> to vector<16x10xbf16>
    %2 = arith.extf %1 : vector<16x10xbf16> to vector<16x10xf32>
    %cst = arith.constant 0.000000e+00 : f32
    %3 = vector.broadcast %cst : f32 to vector<16x10xf32>
    %4 = arith.cmpf oge, %2, %3 : vector<16x10xf32>
    %cst_2 = arith.constant 1.000000e-01 : f32
    %5 = vector.broadcast %cst_2 : f32 to vector<16x10xf32>
    %6 = arith.mulf %5, %2 : vector<16x10xf32>
    %7 = arith.select %4, %2, %6 : vector<16x10xi1>, vector<16x10xf32>
    %8 = arith.truncf %7 : vector<16x10xf32> to vector<16x10xbf16>
    %9 = vector.extract_strided_slice %8 {offsets = [0, 0], sizes = [16, 8], strides = [1, 1]} : vector<16x10xbf16> to vector<16x8xbf16>
    %10 = vector.extract_strided_slice %8 {offsets = [0, 1], sizes = [16, 8], strides = [1, 1]} : vector<16x10xbf16> to vector<16x8xbf16>
    %11 = vector.extract_strided_slice %8 {offsets = [0, 2], sizes = [16, 8], strides = [1, 1]} : vector<16x10xbf16> to vector<16x8xbf16>
    %12 = tpu.concatenate %9, %10, %11 in 0 : vector<16x8xbf16>, vector<16x8xbf16>, vector<16x8xbf16> -> vector<48x8xbf16>
    %c0_3 = arith.constant 0 : index
    %c0_4 = arith.constant 0 : index
    %13 = vector.load %arg3[%c0_3, %c0_4] : memref<16x48xbf16, #tpu.memory_space<vmem>>, vector<16x48xbf16>
    %cst_5 = arith.constant dense<0.000000e+00> : vector<16x8xf32>
    %14 = tpu.matmul %13, %12, %cst_5 {dimension_numbers = #tpu.dot_dimension_numbers<[1], [0], [0], [1], [0, 0, 1, 1], [], []>} : vector<16x48xbf16>, vector<48x8xbf16>, vector<16x8xf32> -> vector<16x8xf32>
    %c0_6 = arith.constant 0 : index
    %c0_7 = arith.constant 0 : index
    %15 = vector.load %arg4[%c0_6, %c0_7] : memref<16x1xf32, #tpu.memory_space<vmem>>, vector<16x1xf32>
    %16 = vector.broadcast %15 : vector<16x1xf32> to vector<16x8xf32>
    %17 = arith.addf %14, %16 : vector<16x8xf32>
    %18 = arith.truncf %17 : vector<16x8xf32> to vector<16x8xbf16>
    %c0_8 = arith.constant 0 : index
    %c0_9 = arith.constant 0 : index
    %c0_10 = arith.constant 0 : index
    %19 = vector.load %arg5[%c0_8, %c0_9, %c0_10] : memref<1x16x8xbf16, #tpu.memory_space<vmem>>, vector<1x16x8xbf16>
    %20 = vector.shape_cast %19 : vector<1x16x8xbf16> to vector<16x8xbf16>
    %21 = vector.shape_cast %18 : vector<16x8xbf16> to vector<1x16x8xbf16>
    tpu.vector_store %arg5[%c0_8, %c0_9, %c0_10], %21 {strides = array<i32>} : memref<1x16x8xbf16, #tpu.memory_space<vmem>>, vector<1x16x8xbf16>,
    return
  }
  func.func @transform_0(%arg0: i32, %arg1: i32) -> (i32, i32, i32) {
    %c0_i32 = arith.constant 0 : i32
    %c0_i32_0 = arith.constant 0 : i32
    %c0_i32_1 = arith.constant 0 : i32
    return %arg0, %c0_i32, %c0_i32_0 : i32, i32, i32
  }
  func.func @transform_1(%arg0: i32, %arg1: i32) -> (i32, i32) {
    %c0_i32 = arith.constant 0 : i32
    %c0_i32_0 = arith.constant 0 : i32
    %c0_i32_1 = arith.constant 0 : i32
    return %c0_i32, %c0_i32_0 : i32, i32
  }
  func.func @transform_2(%arg0: i32, %arg1: i32) -> (i32, i32) {
    %c0_i32 = arith.constant 0 : i32
    %c0_i32_0 = arith.constant 0 : i32
    %c0_i32_1 = arith.constant 0 : i32
    return %c0_i32, %c0_i32_0 : i32, i32
  }
  func.func @transform_3(%arg0: i32, %arg1: i32) -> (i32, i32, i32) {
    %c0_i32 = arith.constant 0 : i32
    %c0_i32_0 = arith.constant 0 : i32
    return %arg0, %c0_i32, %arg1 : i32, i32, i32
  }
}

module attributes {stable_mosaic.version = 11 : i64} {
  func.func @kernel(%arg0: i32, %arg1: i32, %arg2: memref<1x8x32xbf16, #tpu.memory_space<vmem>>, %arg3: memref<8x256xbf16, #tpu.memory_space<vmem>>, %arg4: memref<4x8x1xf32, #tpu.memory_space<vmem>>, %arg5: memref<8x1xf32, #tpu.memory_space<vmem>>, %arg6: memref<1x8x16xbf16, #tpu.memory_space<vmem>>) attributes {dimension_semantics = [#tpu.dimension_semantics<parallel>, #tpu.dimension_semantics<parallel>], iteration_bounds = array<i64: 2, 1>, scalar_prefetch = 0 : i64, scratch_operands = 0 : i64, tpu.core_type = #tpu.core_type<tc>, window_params = [{transform_indices = @transform_0, window_bounds = array<i64: 1, 8, 32>}, {pipeline_mode = #tpu.pipeline_mode<synchronous>, transform_indices = @transform_1, window_bounds = array<i64: 8, 256>}, {pipeline_mode = #tpu.pipeline_mode<synchronous>, transform_indices = @transform_2, window_bounds = array<i64: 4, 8, 1>}, {pipeline_mode = #tpu.pipeline_mode<synchronous>, transform_indices = @transform_3, window_bounds = array<i64: 8, 1>}, {transform_indices = @transform_4, window_bounds = array<i64: 1, 8, 16>}]} {
    %c0 = arith.constant 0 : index
    %c0_0 = arith.constant 0 : index
    %c0_1 = arith.constant 0 : index
    %0 = vector.load %arg2[%c0, %c0_0, %c0_1] : memref<1x8x32xbf16, #tpu.memory_space<vmem>>, vector<1x8x32xbf16>
    %1 = vector.shape_cast %0 : vector<1x8x32xbf16> to vector<8x32xbf16>
    %2 = arith.extf %1 : vector<8x32xbf16> to vector<8x32xf32>
    %cst = arith.constant 0.000000e+00 : f32
    %3 = vector.broadcast %cst : f32 to vector<8x32xf32>
    %4 = arith.cmpf oge, %2, %3 : vector<8x32xf32>
    %cst_2 = arith.constant 1.000000e-01 : f32
    %5 = vector.broadcast %cst_2 : f32 to vector<8x32xf32>
    %6 = arith.mulf %5, %2 : vector<8x32xf32>
    %7 = arith.select %4, %2, %6 : vector<8x32xi1>, vector<8x32xf32>
    %8 = arith.truncf %7 : vector<8x32xf32> to vector<8x32xbf16>
    %c16_i32 = arith.constant 16 : i32
    %9 = arith.muli %arg1, %c16_i32 : i32
    %cst_3 = arith.constant 0.000000e+00 : f32
    %10 = vector.broadcast %cst_3 : f32 to vector<8x16xf32>
    %11 = vector.extract_strided_slice %8 {offsets = [0, 6], sizes = [8, 18], strides = [1, 1]} : vector<8x32xbf16> to vector<8x18xbf16>
    %12 = vector.extract_strided_slice %8 {offsets = [0, 7], sizes = [8, 18], strides = [1, 1]} : vector<8x32xbf16> to vector<8x18xbf16>
    %13 = vector.extract_strided_slice %8 {offsets = [0, 8], sizes = [8, 18], strides = [1, 1]} : vector<8x32xbf16> to vector<8x18xbf16>
    %14 = tpu.concatenate %11, %12, %13 in 0 : vector<8x18xbf16>, vector<8x18xbf16>, vector<8x18xbf16> -> vector<24x18xbf16>
    %c0_4 = arith.constant 0 : index
    %c0_5 = arith.constant 0 : index
    %15 = vector.load %arg3[%c0_4, %c0_5] : memref<8x256xbf16, #tpu.memory_space<vmem>>, vector<8x24xbf16>
    %cst_6 = arith.constant dense<0.000000e+00> : vector<8x18xf32>
    %16 = tpu.matmul %15, %14, %cst_6 {dimension_numbers = #tpu.dot_dimension_numbers<[1], [0], [0], [1], [0, 0, 1, 1], [], []>} : vector<8x24xbf16>, vector<24x18xbf16>, vector<8x18xf32> -> vector<8x18xf32>
    %c0_7 = arith.constant 0 : index
    %c0_8 = arith.constant 0 : index
    %c0_9 = arith.constant 0 : index
    %17 = vector.load %arg4[%c0_7, %c0_8, %c0_9] : memref<4x8x1xf32, #tpu.memory_space<vmem>>, vector<1x8x1xf32>
    %18 = vector.shape_cast %17 : vector<1x8x1xf32> to vector<8x1xf32>
    %19 = vector.broadcast %18 : vector<8x1xf32> to vector<8x18xf32>
    %20 = arith.addf %16, %19 : vector<8x18xf32>
    %c1_i32 = arith.constant 1 : i32
    %21 = arith.subi %9, %c1_i32 : i32
    %22 = tpu.iota {dimensions = array<i32: 1>} : vector<1x18xi32>
    %23 = vector.broadcast %21 : i32 to vector<1x18xi32>
    %24 = arith.addi %23, %22 : vector<1x18xi32>
    %c0_i32 = arith.constant 0 : i32
    %25 = vector.broadcast %c0_i32 : i32 to vector<1x18xi32>
    %26 = arith.cmpi sge, %24, %25 : vector<1x18xi32>
    %c16_i32_10 = arith.constant 16 : i32
    %27 = vector.broadcast %c16_i32_10 : i32 to vector<1x18xi32>
    %28 = arith.cmpi slt, %24, %27 : vector<1x18xi32>
    %29 = arith.andi %26, %28 : vector<1x18xi1>
    %cst_11 = arith.constant 0.000000e+00 : f32
    %30 = vector.shape_cast %29 : vector<1x18xi1> to vector<1x18xi1>
    %31 = vector.broadcast %30 : vector<1x18xi1> to vector<8x18xi1>
    %32 = vector.broadcast %cst_11 : f32 to vector<8x18xf32>
    %33 = arith.select %31, %20, %32 : vector<8x18xi1>, vector<8x18xf32>
    %cst_12 = arith.constant 0.000000e+00 : f32
    %34 = vector.broadcast %cst_12 : f32 to vector<8x18xf32>
    %35 = arith.cmpf oge, %33, %34 : vector<8x18xf32>
    %cst_13 = arith.constant 1.000000e-01 : f32
    %36 = vector.broadcast %cst_13 : f32 to vector<8x18xf32>
    %37 = arith.mulf %36, %33 : vector<8x18xf32>
    %38 = arith.select %35, %33, %37 : vector<8x18xi1>, vector<8x18xf32>
    %39 = arith.truncf %38 : vector<8x18xf32> to vector<8x18xbf16>
    %40 = vector.extract_strided_slice %39 {offsets = [0, 0], sizes = [8, 16], strides = [1, 1]} : vector<8x18xbf16> to vector<8x16xbf16>
    %41 = vector.extract_strided_slice %39 {offsets = [0, 1], sizes = [8, 16], strides = [1, 1]} : vector<8x18xbf16> to vector<8x16xbf16>
    %42 = vector.extract_strided_slice %39 {offsets = [0, 2], sizes = [8, 16], strides = [1, 1]} : vector<8x18xbf16> to vector<8x16xbf16>
    %43 = tpu.concatenate %40, %41, %42 in 0 : vector<8x16xbf16>, vector<8x16xbf16>, vector<8x16xbf16> -> vector<24x16xbf16>
    %c0_14 = arith.constant 0 : index
    %c24 = arith.constant 24 : index
    %44 = vector.load %arg3[%c0_14, %c24] : memref<8x256xbf16, #tpu.memory_space<vmem>>, vector<8x24xbf16>
    %cst_15 = arith.constant dense<0.000000e+00> : vector<8x16xf32>
    %45 = tpu.matmul %44, %43, %cst_15 {dimension_numbers = #tpu.dot_dimension_numbers<[1], [0], [0], [1], [0, 0, 1, 1], [], []>} : vector<8x24xbf16>, vector<24x16xbf16>, vector<8x16xf32> -> vector<8x16xf32>
    %46 = arith.addf %10, %45 : vector<8x16xf32>
    %47 = vector.extract_strided_slice %8 {offsets = [0, 5], sizes = [8, 18], strides = [1, 1]} : vector<8x32xbf16> to vector<8x18xbf16>
    %48 = vector.extract_strided_slice %8 {offsets = [0, 7], sizes = [8, 18], strides = [1, 1]} : vector<8x32xbf16> to vector<8x18xbf16>
    %49 = vector.extract_strided_slice %8 {offsets = [0, 9], sizes = [8, 18], strides = [1, 1]} : vector<8x32xbf16> to vector<8x18xbf16>
    %50 = tpu.concatenate %47, %48, %49 in 0 : vector<8x18xbf16>, vector<8x18xbf16>, vector<8x18xbf16> -> vector<24x18xbf16>
    %c0_16 = arith.constant 0 : index
    %c48 = arith.constant 48 : index
    %51 = vector.load %arg3[%c0_16, %c48] : memref<8x256xbf16, #tpu.memory_space<vmem>>, vector<8x24xbf16>
    %cst_17 = arith.constant dense<0.000000e+00> : vector<8x18xf32>
    %52 = tpu.matmul %51, %50, %cst_17 {dimension_numbers = #tpu.dot_dimension_numbers<[1], [0], [0], [1], [0, 0, 1, 1], [], []>} : vector<8x24xbf16>, vector<24x18xbf16>, vector<8x18xf32> -> vector<8x18xf32>
    %c1 = arith.constant 1 : index
    %c0_18 = arith.constant 0 : index
    %c0_19 = arith.constant 0 : index
    %53 = vector.load %arg4[%c1, %c0_18, %c0_19] : memref<4x8x1xf32, #tpu.memory_space<vmem>>, vector<1x8x1xf32>
    %54 = vector.shape_cast %53 : vector<1x8x1xf32> to vector<8x1xf32>
    %55 = vector.broadcast %54 : vector<8x1xf32> to vector<8x18xf32>
    %56 = arith.addf %52, %55 : vector<8x18xf32>
    %c1_i32_20 = arith.constant 1 : i32
    %57 = arith.subi %9, %c1_i32_20 : i32
    %58 = tpu.iota {dimensions = array<i32: 1>} : vector<1x18xi32>
    %59 = vector.broadcast %57 : i32 to vector<1x18xi32>
    %60 = arith.addi %59, %58 : vector<1x18xi32>
    %c0_i32_21 = arith.constant 0 : i32
    %61 = vector.broadcast %c0_i32_21 : i32 to vector<1x18xi32>
    %62 = arith.cmpi sge, %60, %61 : vector<1x18xi32>
    %c16_i32_22 = arith.constant 16 : i32
    %63 = vector.broadcast %c16_i32_22 : i32 to vector<1x18xi32>
    %64 = arith.cmpi slt, %60, %63 : vector<1x18xi32>
    %65 = arith.andi %62, %64 : vector<1x18xi1>
    %cst_23 = arith.constant 0.000000e+00 : f32
    %66 = vector.shape_cast %65 : vector<1x18xi1> to vector<1x18xi1>
    %67 = vector.broadcast %66 : vector<1x18xi1> to vector<8x18xi1>
    %68 = vector.broadcast %cst_23 : f32 to vector<8x18xf32>
    %69 = arith.select %67, %56, %68 : vector<8x18xi1>, vector<8x18xf32>
    %cst_24 = arith.constant 0.000000e+00 : f32
    %70 = vector.broadcast %cst_24 : f32 to vector<8x18xf32>
    %71 = arith.cmpf oge, %69, %70 : vector<8x18xf32>
    %cst_25 = arith.constant 1.000000e-01 : f32
    %72 = vector.broadcast %cst_25 : f32 to vector<8x18xf32>
    %73 = arith.mulf %72, %69 : vector<8x18xf32>
    %74 = arith.select %71, %69, %73 : vector<8x18xi1>, vector<8x18xf32>
    %75 = arith.truncf %74 : vector<8x18xf32> to vector<8x18xbf16>
    %76 = vector.extract_strided_slice %75 {offsets = [0, 0], sizes = [8, 16], strides = [1, 1]} : vector<8x18xbf16> to vector<8x16xbf16>
    %77 = vector.extract_strided_slice %75 {offsets = [0, 1], sizes = [8, 16], strides = [1, 1]} : vector<8x18xbf16> to vector<8x16xbf16>
    %78 = vector.extract_strided_slice %75 {offsets = [0, 2], sizes = [8, 16], strides = [1, 1]} : vector<8x18xbf16> to vector<8x16xbf16>
    %79 = tpu.concatenate %76, %77, %78 in 0 : vector<8x16xbf16>, vector<8x16xbf16>, vector<8x16xbf16> -> vector<24x16xbf16>
    %c0_26 = arith.constant 0 : index
    %c72 = arith.constant 72 : index
    %80 = vector.load %arg3[%c0_26, %c72] : memref<8x256xbf16, #tpu.memory_space<vmem>>, vector<8x24xbf16>
    %cst_27 = arith.constant dense<0.000000e+00> : vector<8x16xf32>
    %81 = tpu.matmul %80, %79, %cst_27 {dimension_numbers = #tpu.dot_dimension_numbers<[1], [0], [0], [1], [0, 0, 1, 1], [], []>} : vector<8x24xbf16>, vector<24x16xbf16>, vector<8x16xf32> -> vector<8x16xf32>
    %82 = arith.addf %46, %81 : vector<8x16xf32>
    %83 = vector.extract_strided_slice %8 {offsets = [0, 4], sizes = [8, 20], strides = [1, 1]} : vector<8x32xbf16> to vector<8x20xbf16>
    %84 = vector.extract_strided_slice %8 {offsets = [0, 5], sizes = [8, 20], strides = [1, 1]} : vector<8x32xbf16> to vector<8x20xbf16>
    %85 = vector.extract_strided_slice %8 {offsets = [0, 6], sizes = [8, 20], strides = [1, 1]} : vector<8x32xbf16> to vector<8x20xbf16>
    %86 = vector.extract_strided_slice %8 {offsets = [0, 7], sizes = [8, 20], strides = [1, 1]} : vector<8x32xbf16> to vector<8x20xbf16>
    %87 = vector.extract_strided_slice %8 {offsets = [0, 8], sizes = [8, 20], strides = [1, 1]} : vector<8x32xbf16> to vector<8x20xbf16>
    %88 = tpu.concatenate %83, %84, %85, %86, %87 in 0 : vector<8x20xbf16>, vector<8x20xbf16>, vector<8x20xbf16>, vector<8x20xbf16>, vector<8x20xbf16> -> vector<40x20xbf16>
    %c0_28 = arith.constant 0 : index
    %c96 = arith.constant 96 : index
    %89 = vector.load %arg3[%c0_28, %c96] : memref<8x256xbf16, #tpu.memory_space<vmem>>, vector<8x40xbf16>
    %cst_29 = arith.constant dense<0.000000e+00> : vector<8x20xf32>
    %90 = tpu.matmul %89, %88, %cst_29 {dimension_numbers = #tpu.dot_dimension_numbers<[1], [0], [0], [1], [0, 0, 1, 1], [], []>} : vector<8x40xbf16>, vector<40x20xbf16>, vector<8x20xf32> -> vector<8x20xf32>
    %c2 = arith.constant 2 : index
    %c0_30 = arith.constant 0 : index
    %c0_31 = arith.constant 0 : index
    %91 = vector.load %arg4[%c2, %c0_30, %c0_31] : memref<4x8x1xf32, #tpu.memory_space<vmem>>, vector<1x8x1xf32>
    %92 = vector.shape_cast %91 : vector<1x8x1xf32> to vector<8x1xf32>
    %93 = vector.broadcast %92 : vector<8x1xf32> to vector<8x20xf32>
    %94 = arith.addf %90, %93 : vector<8x20xf32>
    %c2_i32 = arith.constant 2 : i32
    %95 = arith.subi %9, %c2_i32 : i32
    %96 = tpu.iota {dimensions = array<i32: 1>} : vector<1x20xi32>
    %97 = vector.broadcast %95 : i32 to vector<1x20xi32>
    %98 = arith.addi %97, %96 : vector<1x20xi32>
    %c0_i32_32 = arith.constant 0 : i32
    %99 = vector.broadcast %c0_i32_32 : i32 to vector<1x20xi32>
    %100 = arith.cmpi sge, %98, %99 : vector<1x20xi32>
    %c16_i32_33 = arith.constant 16 : i32
    %101 = vector.broadcast %c16_i32_33 : i32 to vector<1x20xi32>
    %102 = arith.cmpi slt, %98, %101 : vector<1x20xi32>
    %103 = arith.andi %100, %102 : vector<1x20xi1>
    %cst_34 = arith.constant 0.000000e+00 : f32
    %104 = vector.shape_cast %103 : vector<1x20xi1> to vector<1x20xi1>
    %105 = vector.broadcast %104 : vector<1x20xi1> to vector<8x20xi1>
    %106 = vector.broadcast %cst_34 : f32 to vector<8x20xf32>
    %107 = arith.select %105, %94, %106 : vector<8x20xi1>, vector<8x20xf32>
    %cst_35 = arith.constant 0.000000e+00 : f32
    %108 = vector.broadcast %cst_35 : f32 to vector<8x20xf32>
    %109 = arith.cmpf oge, %107, %108 : vector<8x20xf32>
    %cst_36 = arith.constant 1.000000e-01 : f32
    %110 = vector.broadcast %cst_36 : f32 to vector<8x20xf32>
    %111 = arith.mulf %110, %107 : vector<8x20xf32>
    %112 = arith.select %109, %107, %111 : vector<8x20xi1>, vector<8x20xf32>
    %113 = arith.truncf %112 : vector<8x20xf32> to vector<8x20xbf16>
    %114 = vector.extract_strided_slice %113 {offsets = [0, 0], sizes = [8, 16], strides = [1, 1]} : vector<8x20xbf16> to vector<8x16xbf16>
    %115 = vector.extract_strided_slice %113 {offsets = [0, 1], sizes = [8, 16], strides = [1, 1]} : vector<8x20xbf16> to vector<8x16xbf16>
    %116 = vector.extract_strided_slice %113 {offsets = [0, 2], sizes = [8, 16], strides = [1, 1]} : vector<8x20xbf16> to vector<8x16xbf16>
    %117 = vector.extract_strided_slice %113 {offsets = [0, 3], sizes = [8, 16], strides = [1, 1]} : vector<8x20xbf16> to vector<8x16xbf16>
    %118 = vector.extract_strided_slice %113 {offsets = [0, 4], sizes = [8, 16], strides = [1, 1]} : vector<8x20xbf16> to vector<8x16xbf16>
    %119 = tpu.concatenate %114, %115, %116, %117, %118 in 0 : vector<8x16xbf16>, vector<8x16xbf16>, vector<8x16xbf16>, vector<8x16xbf16>, vector<8x16xbf16> -> vector<40x16xbf16>
    %c0_37 = arith.constant 0 : index
    %c136 = arith.constant 136 : index
    %120 = vector.load %arg3[%c0_37, %c136] : memref<8x256xbf16, #tpu.memory_space<vmem>>, vector<8x40xbf16>
    %cst_38 = arith.constant dense<0.000000e+00> : vector<8x16xf32>
    %121 = tpu.matmul %120, %119, %cst_38 {dimension_numbers = #tpu.dot_dimension_numbers<[1], [0], [0], [1], [0, 0, 1, 1], [], []>} : vector<8x40xbf16>, vector<40x16xbf16>, vector<8x16xf32> -> vector<8x16xf32>
    %122 = arith.addf %82, %121 : vector<8x16xf32>
    %123 = vector.extract_strided_slice %8 {offsets = [0, 0], sizes = [8, 20], strides = [1, 1]} : vector<8x32xbf16> to vector<8x20xbf16>
    %124 = vector.extract_strided_slice %8 {offsets = [0, 3], sizes = [8, 20], strides = [1, 1]} : vector<8x32xbf16> to vector<8x20xbf16>
    %125 = vector.extract_strided_slice %8 {offsets = [0, 6], sizes = [8, 20], strides = [1, 1]} : vector<8x32xbf16> to vector<8x20xbf16>
    %126 = vector.extract_strided_slice %8 {offsets = [0, 9], sizes = [8, 20], strides = [1, 1]} : vector<8x32xbf16> to vector<8x20xbf16>
    %127 = vector.extract_strided_slice %8 {offsets = [0, 12], sizes = [8, 20], strides = [1, 1]} : vector<8x32xbf16> to vector<8x20xbf16>
    %128 = tpu.concatenate %123, %124, %125, %126, %127 in 0 : vector<8x20xbf16>, vector<8x20xbf16>, vector<8x20xbf16>, vector<8x20xbf16>, vector<8x20xbf16> -> vector<40x20xbf16>
    %c0_39 = arith.constant 0 : index
    %c176 = arith.constant 176 : index
    %129 = vector.load %arg3[%c0_39, %c176] : memref<8x256xbf16, #tpu.memory_space<vmem>>, vector<8x40xbf16>
    %cst_40 = arith.constant dense<0.000000e+00> : vector<8x20xf32>
    %130 = tpu.matmul %129, %128, %cst_40 {dimension_numbers = #tpu.dot_dimension_numbers<[1], [0], [0], [1], [0, 0, 1, 1], [], []>} : vector<8x40xbf16>, vector<40x20xbf16>, vector<8x20xf32> -> vector<8x20xf32>
    %c3 = arith.constant 3 : index
    %c0_41 = arith.constant 0 : index
    %c0_42 = arith.constant 0 : index
    %131 = vector.load %arg4[%c3, %c0_41, %c0_42] : memref<4x8x1xf32, #tpu.memory_space<vmem>>, vector<1x8x1xf32>
    %132 = vector.shape_cast %131 : vector<1x8x1xf32> to vector<8x1xf32>
    %133 = vector.broadcast %132 : vector<8x1xf32> to vector<8x20xf32>
    %134 = arith.addf %130, %133 : vector<8x20xf32>
    %c2_i32_43 = arith.constant 2 : i32
    %135 = arith.subi %9, %c2_i32_43 : i32
    %136 = tpu.iota {dimensions = array<i32: 1>} : vector<1x20xi32>
    %137 = vector.broadcast %135 : i32 to vector<1x20xi32>
    %138 = arith.addi %137, %136 : vector<1x20xi32>
    %c0_i32_44 = arith.constant 0 : i32
    %139 = vector.broadcast %c0_i32_44 : i32 to vector<1x20xi32>
    %140 = arith.cmpi sge, %138, %139 : vector<1x20xi32>
    %c16_i32_45 = arith.constant 16 : i32
    %141 = vector.broadcast %c16_i32_45 : i32 to vector<1x20xi32>
    %142 = arith.cmpi slt, %138, %141 : vector<1x20xi32>
    %143 = arith.andi %140, %142 : vector<1x20xi1>
    %cst_46 = arith.constant 0.000000e+00 : f32
    %144 = vector.shape_cast %143 : vector<1x20xi1> to vector<1x20xi1>
    %145 = vector.broadcast %144 : vector<1x20xi1> to vector<8x20xi1>
    %146 = vector.broadcast %cst_46 : f32 to vector<8x20xf32>
    %147 = arith.select %145, %134, %146 : vector<8x20xi1>, vector<8x20xf32>
    %cst_47 = arith.constant 0.000000e+00 : f32
    %148 = vector.broadcast %cst_47 : f32 to vector<8x20xf32>
    %149 = arith.cmpf oge, %147, %148 : vector<8x20xf32>
    %cst_48 = arith.constant 1.000000e-01 : f32
    %150 = vector.broadcast %cst_48 : f32 to vector<8x20xf32>
    %151 = arith.mulf %150, %147 : vector<8x20xf32>
    %152 = arith.select %149, %147, %151 : vector<8x20xi1>, vector<8x20xf32>
    %153 = arith.truncf %152 : vector<8x20xf32> to vector<8x20xbf16>
    %154 = vector.extract_strided_slice %153 {offsets = [0, 0], sizes = [8, 16], strides = [1, 1]} : vector<8x20xbf16> to vector<8x16xbf16>
    %155 = vector.extract_strided_slice %153 {offsets = [0, 1], sizes = [8, 16], strides = [1, 1]} : vector<8x20xbf16> to vector<8x16xbf16>
    %156 = vector.extract_strided_slice %153 {offsets = [0, 2], sizes = [8, 16], strides = [1, 1]} : vector<8x20xbf16> to vector<8x16xbf16>
    %157 = vector.extract_strided_slice %153 {offsets = [0, 3], sizes = [8, 16], strides = [1, 1]} : vector<8x20xbf16> to vector<8x16xbf16>
    %158 = vector.extract_strided_slice %153 {offsets = [0, 4], sizes = [8, 16], strides = [1, 1]} : vector<8x20xbf16> to vector<8x16xbf16>
    %159 = tpu.concatenate %154, %155, %156, %157, %158 in 0 : vector<8x16xbf16>, vector<8x16xbf16>, vector<8x16xbf16>, vector<8x16xbf16>, vector<8x16xbf16> -> vector<40x16xbf16>
    %c0_49 = arith.constant 0 : index
    %c216 = arith.constant 216 : index
    %160 = vector.load %arg3[%c0_49, %c216] : memref<8x256xbf16, #tpu.memory_space<vmem>>, vector<8x40xbf16>
    %cst_50 = arith.constant dense<0.000000e+00> : vector<8x16xf32>
    %161 = tpu.matmul %160, %159, %cst_50 {dimension_numbers = #tpu.dot_dimension_numbers<[1], [0], [0], [1], [0, 0, 1, 1], [], []>} : vector<8x40xbf16>, vector<40x16xbf16>, vector<8x16xf32> -> vector<8x16xf32>
    %162 = arith.addf %122, %161 : vector<8x16xf32>
    %c0_51 = arith.constant 0 : index
    %c0_52 = arith.constant 0 : index
    %163 = vector.load %arg5[%c0_51, %c0_52] : memref<8x1xf32, #tpu.memory_space<vmem>>, vector<8x1xf32>
    %164 = vector.broadcast %163 : vector<8x1xf32> to vector<8x16xf32>
    %165 = arith.addf %162, %164 : vector<8x16xf32>
    %166 = arith.truncf %165 : vector<8x16xf32> to vector<8x16xbf16>
    %c0_53 = arith.constant 0 : index
    %c0_54 = arith.constant 0 : index
    %c0_55 = arith.constant 0 : index
    %167 = vector.load %arg6[%c0_53, %c0_54, %c0_55] : memref<1x8x16xbf16, #tpu.memory_space<vmem>>, vector<1x8x16xbf16>
    %168 = vector.shape_cast %167 : vector<1x8x16xbf16> to vector<8x16xbf16>
    %169 = vector.shape_cast %166 : vector<8x16xbf16> to vector<1x8x16xbf16>
    tpu.vector_store %arg6[%c0_53, %c0_54, %c0_55], %169 {strides = array<i32>} : memref<1x8x16xbf16, #tpu.memory_space<vmem>>, vector<1x8x16xbf16>,
    return
  }
  func.func @transform_0(%arg0: i32, %arg1: i32) -> (i32, i32, i32) {
    %c0_i32 = arith.constant 0 : i32
    %c0_i32_0 = arith.constant 0 : i32
    %c0_i32_1 = arith.constant 0 : i32
    return %arg0, %c0_i32, %c0_i32_0 : i32, i32, i32
  }
  func.func @transform_1(%arg0: i32, %arg1: i32) -> (i32, i32) {
    %c0_i32 = arith.constant 0 : i32
    %c0_i32_0 = arith.constant 0 : i32
    %c0_i32_1 = arith.constant 0 : i32
    return %c0_i32, %c0_i32_0 : i32, i32
  }
  func.func @transform_2(%arg0: i32, %arg1: i32) -> (i32, i32, i32) {
    %c0_i32 = arith.constant 0 : i32
    %c0_i32_0 = arith.constant 0 : i32
    %c0_i32_1 = arith.constant 0 : i32
    %c0_i32_2 = arith.constant 0 : i32
    return %c0_i32, %c0_i32_0, %c0_i32_1 : i32, i32, i32
  }
  func.func @transform_3(%arg0: i32, %arg1: i32) -> (i32, i32) {
    %c0_i32 = arith.constant 0 : i32
    %c0_i32_0 = arith.constant 0 : i32
    %c0_i32_1 = arith.constant 0 : i32
    return %c0_i32, %c0_i32_0 : i32, i32
  }
  func.func @transform_4(%arg0: i32, %arg1: i32) -> (i32, i32, i32) {
    %c0_i32 = arith.constant 0 : i32
    %c0_i32_0 = arith.constant 0 : i32
    return %arg0, %c0_i32, %arg1 : i32, i32, i32
  }
}

module attributes {stable_mosaic.version = 11 : i64} {
  func.func @kernel(%arg0: i32, %arg1: i32, %arg2: memref<1x8x18xbf16, #tpu.memory_space<vmem>>, %arg3: memref<8x24xbf16, #tpu.memory_space<vmem>>, %arg4: memref<8x1xf32, #tpu.memory_space<vmem>>, %arg5: memref<1x8x16xbf16, #tpu.memory_space<vmem>>) attributes {dimension_semantics = [#tpu.dimension_semantics<parallel>, #tpu.dimension_semantics<parallel>], iteration_bounds = array<i64: 2, 1>, scalar_prefetch = 0 : i64, scratch_operands = 0 : i64, tpu.core_type = #tpu.core_type<tc>, window_params = [{transform_indices = @transform_0, window_bounds = array<i64: 1, 8, 18>}, {pipeline_mode = #tpu.pipeline_mode<synchronous>, transform_indices = @transform_1, window_bounds = array<i64: 8, 24>}, {pipeline_mode = #tpu.pipeline_mode<synchronous>, transform_indices = @transform_2, window_bounds = array<i64: 8, 1>}, {transform_indices = @transform_3, window_bounds = array<i64: 1, 8, 16>}]} {
    %c0 = arith.constant 0 : index
    %c0_0 = arith.constant 0 : index
    %c0_1 = arith.constant 0 : index
    %0 = vector.load %arg2[%c0, %c0_0, %c0_1] : memref<1x8x18xbf16, #tpu.memory_space<vmem>>, vector<1x8x18xbf16>
    %1 = vector.shape_cast %0 : vector<1x8x18xbf16> to vector<8x18xbf16>
    %2 = arith.extf %1 : vector<8x18xbf16> to vector<8x18xf32>
    %cst = arith.constant 0.000000e+00 : f32
    %3 = vector.broadcast %cst : f32 to vector<8x18xf32>
    %4 = arith.cmpf oge, %2, %3 : vector<8x18xf32>
    %cst_2 = arith.constant 1.000000e-01 : f32
    %5 = vector.broadcast %cst_2 : f32 to vector<8x18xf32>
    %6 = arith.mulf %5, %2 : vector<8x18xf32>
    %7 = arith.select %4, %2, %6 : vector<8x18xi1>, vector<8x18xf32>
    %8 = arith.truncf %7 : vector<8x18xf32> to vector<8x18xbf16>
    %9 = vector.extract_strided_slice %8 {offsets = [0, 0], sizes = [8, 16], strides = [1, 1]} : vector<8x18xbf16> to vector<8x16xbf16>
    %10 = vector.extract_strided_slice %8 {offsets = [0, 1], sizes = [8, 16], strides = [1, 1]} : vector<8x18xbf16> to vector<8x16xbf16>
    %11 = vector.extract_strided_slice %8 {offsets = [0, 2], sizes = [8, 16], strides = [1, 1]} : vector<8x18xbf16> to vector<8x16xbf16>
    %12 = tpu.concatenate %9, %10, %11 in 0 : vector<8x16xbf16>, vector<8x16xbf16>, vector<8x16xbf16> -> vector<24x16xbf16>
    %c0_3 = arith.constant 0 : index
    %c0_4 = arith.constant 0 : index
    %13 = vector.load %arg3[%c0_3, %c0_4] : memref<8x24xbf16, #tpu.memory_space<vmem>>, vector<8x24xbf16>
    %cst_5 = arith.constant dense<0.000000e+00> : vector<8x16xf32>
    %14 = tpu.matmul %13, %12, %cst_5 {dimension_numbers = #tpu.dot_dimension_numbers<[1], [0], [0], [1], [0, 0, 1, 1], [], []>} : vector<8x24xbf16>, vector<24x16xbf16>, vector<8x16xf32> -> vector<8x16xf32>
    %c0_6 = arith.constant 0 : index
    %c0_7 = arith.constant 0 : index
    %15 = vector.load %arg4[%c0_6, %c0_7] : memref<8x1xf32, #tpu.memory_space<vmem>>, vector<8x1xf32>
    %16 = vector.broadcast %15 : vector<8x1xf32> to vector<8x16xf32>
    %17 = arith.addf %14, %16 : vector<8x16xf32>
    %18 = arith.truncf %17 : vector<8x16xf32> to vector<8x16xbf16>
    %c0_8 = arith.constant 0 : index
    %c0_9 = arith.constant 0 : index
    %c0_10 = arith.constant 0 : index
    %19 = vector.load %arg5[%c0_8, %c0_9, %c0_10] : memref<1x8x16xbf16, #tpu.memory_space<vmem>>, vector<1x8x16xbf16>
    %20 = vector.shape_cast %19 : vector<1x8x16xbf16> to vector<8x16xbf16>
    %21 = vector.shape_cast %18 : vector<8x16xbf16> to vector<1x8x16xbf16>
    tpu.vector_store %arg5[%c0_8, %c0_9, %c0_10], %21 {strides = array<i32>} : memref<1x8x16xbf16, #tpu.memory_space<vmem>>, vector<1x8x16xbf16>,
    return
  }
  func.func @transform_0(%arg0: i32, %arg1: i32) -> (i32, i32, i32) {
    %c0_i32 = arith.constant 0 : i32
    %c0_i32_0 = arith.constant 0 : i32
    %c0_i32_1 = arith.constant 0 : i32
    return %arg0, %c0_i32, %c0_i32_0 : i32, i32, i32
  }
  func.func @transform_1(%arg0: i32, %arg1: i32) -> (i32, i32) {
    %c0_i32 = arith.constant 0 : i32
    %c0_i32_0 = arith.constant 0 : i32
    %c0_i32_1 = arith.constant 0 : i32
    return %c0_i32, %c0_i32_0 : i32, i32
  }
  func.func @transform_2(%arg0: i32, %arg1: i32) -> (i32, i32) {
    %c0_i32 = arith.constant 0 : i32
    %c0_i32_0 = arith.constant 0 : i32
    %c0_i32_1 = arith.constant 0 : i32
    return %c0_i32, %c0_i32_0 : i32, i32
  }
  func.func @transform_3(%arg0: i32, %arg1: i32) -> (i32, i32, i32) {
    %c0_i32 = arith.constant 0 : i32
    %c0_i32_0 = arith.constant 0 : i32
    return %arg0, %c0_i32, %arg1 : i32, i32, i32
  }
}

module attributes {stable_mosaic.version = 11 : i64} {
  func.func @kernel(%arg0: i32, %arg1: i32, %arg2: memref<1x4x38xbf16, #tpu.memory_space<vmem>>, %arg3: memref<4x7xf32, #tpu.memory_space<vmem>>, %arg4: memref<1x1xf32, #tpu.memory_space<vmem>>, %arg5: memref<1x1x32xf32, #tpu.memory_space<vmem>>) attributes {dimension_semantics = [#tpu.dimension_semantics<parallel>, #tpu.dimension_semantics<parallel>], iteration_bounds = array<i64: 2, 1>, scalar_prefetch = 0 : i64, scratch_operands = 0 : i64, tpu.core_type = #tpu.core_type<tc>, window_params = [{transform_indices = @transform_0, window_bounds = array<i64: 1, 4, 38>}, {pipeline_mode = #tpu.pipeline_mode<synchronous>, transform_indices = @transform_1, window_bounds = array<i64: 4, 7>}, {pipeline_mode = #tpu.pipeline_mode<synchronous>, transform_indices = @transform_2, window_bounds = array<i64: 1, 1>}, {transform_indices = @transform_3, window_bounds = array<i64: 1, 1, 32>}]} {
    %c0 = arith.constant 0 : index
    %c0_0 = arith.constant 0 : index
    %c0_1 = arith.constant 0 : index
    %0 = vector.load %arg2[%c0, %c0_0, %c0_1] : memref<1x4x38xbf16, #tpu.memory_space<vmem>>, vector<1x4x38xbf16>
    %1 = vector.shape_cast %0 : vector<1x4x38xbf16> to vector<4x38xbf16>
    %2 = arith.extf %1 : vector<4x38xbf16> to vector<4x38xf32>
    %cst = arith.constant 0.000000e+00 : f32
    %3 = vector.broadcast %cst : f32 to vector<4x38xf32>
    %4 = arith.cmpf oge, %2, %3 : vector<4x38xf32>
    %cst_2 = arith.constant 1.000000e-01 : f32
    %5 = vector.broadcast %cst_2 : f32 to vector<4x38xf32>
    %6 = arith.mulf %5, %2 : vector<4x38xf32>
    %7 = arith.select %4, %2, %6 : vector<4x38xi1>, vector<4x38xf32>
    %8 = arith.truncf %7 : vector<4x38xf32> to vector<4x38xbf16>
    %9 = arith.extf %8 : vector<4x38xbf16> to vector<4x38xf32>
    %c0_3 = arith.constant 0 : index
    %c0_4 = arith.constant 0 : index
    %10 = vector.load %arg3[%c0_3, %c0_4] : memref<4x7xf32, #tpu.memory_space<vmem>>, vector<4x1xf32>
    %11 = vector.extract_strided_slice %9 {offsets = [0, 0], sizes = [4, 32], strides = [1, 1]} : vector<4x38xf32> to vector<4x32xf32>
    %12 = vector.broadcast %10 : vector<4x1xf32> to vector<4x32xf32>
    %13 = arith.mulf %12, %11 : vector<4x32xf32>
    %c0_5 = arith.constant 0 : index
    %c1 = arith.constant 1 : index
    %14 = vector.load %arg3[%c0_5, %c1] : memref<4x7xf32, #tpu.memory_space<vmem>>, vector<4x1xf32>
    %15 = vector.extract_strided_slice %9 {offsets = [0, 1], sizes = [4, 32], strides = [1, 1]} : vector<4x38xf32> to vector<4x32xf32>
    %16 = vector.broadcast %14 : vector<4x1xf32> to vector<4x32xf32>
    %17 = arith.mulf %16, %15 : vector<4x32xf32>
    %18 = arith.addf %13, %17 : vector<4x32xf32>
    %c0_6 = arith.constant 0 : index
    %c2 = arith.constant 2 : index
    %19 = vector.load %arg3[%c0_6, %c2] : memref<4x7xf32, #tpu.memory_space<vmem>>, vector<4x1xf32>
    %20 = vector.extract_strided_slice %9 {offsets = [0, 2], sizes = [4, 32], strides = [1, 1]} : vector<4x38xf32> to vector<4x32xf32>
    %21 = vector.broadcast %19 : vector<4x1xf32> to vector<4x32xf32>
    %22 = arith.mulf %21, %20 : vector<4x32xf32>
    %23 = arith.addf %18, %22 : vector<4x32xf32>
    %c0_7 = arith.constant 0 : index
    %c3 = arith.constant 3 : index
    %24 = vector.load %arg3[%c0_7, %c3] : memref<4x7xf32, #tpu.memory_space<vmem>>, vector<4x1xf32>
    %25 = vector.extract_strided_slice %9 {offsets = [0, 3], sizes = [4, 32], strides = [1, 1]} : vector<4x38xf32> to vector<4x32xf32>
    %26 = vector.broadcast %24 : vector<4x1xf32> to vector<4x32xf32>
    %27 = arith.mulf %26, %25 : vector<4x32xf32>
    %28 = arith.addf %23, %27 : vector<4x32xf32>
    %c0_8 = arith.constant 0 : index
    %c4 = arith.constant 4 : index
    %29 = vector.load %arg3[%c0_8, %c4] : memref<4x7xf32, #tpu.memory_space<vmem>>, vector<4x1xf32>
    %30 = vector.extract_strided_slice %9 {offsets = [0, 4], sizes = [4, 32], strides = [1, 1]} : vector<4x38xf32> to vector<4x32xf32>
    %31 = vector.broadcast %29 : vector<4x1xf32> to vector<4x32xf32>
    %32 = arith.mulf %31, %30 : vector<4x32xf32>
    %33 = arith.addf %28, %32 : vector<4x32xf32>
    %c0_9 = arith.constant 0 : index
    %c5 = arith.constant 5 : index
    %34 = vector.load %arg3[%c0_9, %c5] : memref<4x7xf32, #tpu.memory_space<vmem>>, vector<4x1xf32>
    %35 = vector.extract_strided_slice %9 {offsets = [0, 5], sizes = [4, 32], strides = [1, 1]} : vector<4x38xf32> to vector<4x32xf32>
    %36 = vector.broadcast %34 : vector<4x1xf32> to vector<4x32xf32>
    %37 = arith.mulf %36, %35 : vector<4x32xf32>
    %38 = arith.addf %33, %37 : vector<4x32xf32>
    %c0_10 = arith.constant 0 : index
    %c6 = arith.constant 6 : index
    %39 = vector.load %arg3[%c0_10, %c6] : memref<4x7xf32, #tpu.memory_space<vmem>>, vector<4x1xf32>
    %40 = vector.extract_strided_slice %9 {offsets = [0, 6], sizes = [4, 32], strides = [1, 1]} : vector<4x38xf32> to vector<4x32xf32>
    %41 = vector.broadcast %39 : vector<4x1xf32> to vector<4x32xf32>
    %42 = arith.mulf %41, %40 : vector<4x32xf32>
    %43 = arith.addf %38, %42 : vector<4x32xf32>
    %cst_11 = arith.constant dense<0.000000e+00> : vector<32xf32>
    %44 = vector.multi_reduction <add>, %43, %cst_11 [0] : vector<4x32xf32> to vector<32xf32>
    %45 = vector.shape_cast %44 : vector<32xf32> to vector<1x32xf32>
    %c0_12 = arith.constant 0 : index
    %c0_13 = arith.constant 0 : index
    %46 = vector.load %arg4[%c0_12, %c0_13] : memref<1x1xf32, #tpu.memory_space<vmem>>, vector<1x1xf32>
    %47 = vector.broadcast %46 : vector<1x1xf32> to vector<1x32xf32>
    %48 = arith.addf %45, %47 : vector<1x32xf32>
    %49 = math.tanh %48 : vector<1x32xf32>
    %c0_14 = arith.constant 0 : index
    %c0_15 = arith.constant 0 : index
    %c0_16 = arith.constant 0 : index
    %50 = vector.load %arg5[%c0_14, %c0_15, %c0_16] : memref<1x1x32xf32, #tpu.memory_space<vmem>>, vector<1x1x32xf32>
    %51 = vector.shape_cast %50 : vector<1x1x32xf32> to vector<1x32xf32>
    %52 = vector.shape_cast %49 : vector<1x32xf32> to vector<1x1x32xf32>
    tpu.vector_store %arg5[%c0_14, %c0_15, %c0_16], %52 {strides = array<i32>} : memref<1x1x32xf32, #tpu.memory_space<vmem>>, vector<1x1x32xf32>,
    return
  }
  func.func @transform_0(%arg0: i32, %arg1: i32) -> (i32, i32, i32) {
    %c0_i32 = arith.constant 0 : i32
    %c0_i32_0 = arith.constant 0 : i32
    %c0_i32_1 = arith.constant 0 : i32
    return %arg0, %c0_i32, %c0_i32_0 : i32, i32, i32
  }
  func.func @transform_1(%arg0: i32, %arg1: i32) -> (i32, i32) {
    %c0_i32 = arith.constant 0 : i32
    %c0_i32_0 = arith.constant 0 : i32
    %c0_i32_1 = arith.constant 0 : i32
    return %c0_i32, %c0_i32_0 : i32, i32
  }
  func.func @transform_2(%arg0: i32, %arg1: i32) -> (i32, i32) {
    %c0_i32 = arith.constant 0 : i32
    %c0_i32_0 = arith.constant 0 : i32
    %c0_i32_1 = arith.constant 0 : i32
    return %c0_i32, %c0_i32_0 : i32, i32
  }
  func.func @transform_3(%arg0: i32, %arg1: i32) -> (i32, i32, i32) {
    %c0_i32 = arith.constant 0 : i32
    %c0_i32_0 = arith.constant 0 : i32
    return %arg0, %c0_i32, %arg1 : i32, i32, i32
  }
}

module attributes {stable_mosaic.version = 11 : i64} {
  func.func @kernel(%arg0: i32, %arg1: i32, %arg2: memref<1x4x48xbf16, #tpu.memory_space<vmem>>, %arg3: memref<4x128xbf16, #tpu.memory_space<vmem>>, %arg4: memref<4x4x1xf32, #tpu.memory_space<vmem>>, %arg5: memref<4x1xf32, #tpu.memory_space<vmem>>, %arg6: memref<1x4x32xbf16, #tpu.memory_space<vmem>>) attributes {dimension_semantics = [#tpu.dimension_semantics<parallel>, #tpu.dimension_semantics<parallel>], iteration_bounds = array<i64: 2, 1>, scalar_prefetch = 0 : i64, scratch_operands = 0 : i64, tpu.core_type = #tpu.core_type<tc>, window_params = [{transform_indices = @transform_0, window_bounds = array<i64: 1, 4, 48>}, {pipeline_mode = #tpu.pipeline_mode<synchronous>, transform_indices = @transform_1, window_bounds = array<i64: 4, 128>}, {pipeline_mode = #tpu.pipeline_mode<synchronous>, transform_indices = @transform_2, window_bounds = array<i64: 4, 4, 1>}, {pipeline_mode = #tpu.pipeline_mode<synchronous>, transform_indices = @transform_3, window_bounds = array<i64: 4, 1>}, {transform_indices = @transform_4, window_bounds = array<i64: 1, 4, 32>}]} {
    %c0 = arith.constant 0 : index
    %c0_0 = arith.constant 0 : index
    %c0_1 = arith.constant 0 : index
    %0 = vector.load %arg2[%c0, %c0_0, %c0_1] : memref<1x4x48xbf16, #tpu.memory_space<vmem>>, vector<1x4x48xbf16>
    %1 = vector.shape_cast %0 : vector<1x4x48xbf16> to vector<4x48xbf16>
    %2 = arith.extf %1 : vector<4x48xbf16> to vector<4x48xf32>
    %cst = arith.constant 0.000000e+00 : f32
    %3 = vector.broadcast %cst : f32 to vector<4x48xf32>
    %4 = arith.cmpf oge, %2, %3 : vector<4x48xf32>
    %cst_2 = arith.constant 1.000000e-01 : f32
    %5 = vector.broadcast %cst_2 : f32 to vector<4x48xf32>
    %6 = arith.mulf %5, %2 : vector<4x48xf32>
    %7 = arith.select %4, %2, %6 : vector<4x48xi1>, vector<4x48xf32>
    %8 = arith.truncf %7 : vector<4x48xf32> to vector<4x48xbf16>
    %c32_i32 = arith.constant 32 : i32
    %9 = arith.muli %arg1, %c32_i32 : i32
    %cst_3 = arith.constant 0.000000e+00 : f32
    %10 = vector.broadcast %cst_3 : f32 to vector<4x32xf32>
    %11 = vector.extract_strided_slice %8 {offsets = [0, 6], sizes = [4, 34], strides = [1, 1]} : vector<4x48xbf16> to vector<4x34xbf16>
    %12 = vector.extract_strided_slice %8 {offsets = [0, 7], sizes = [4, 34], strides = [1, 1]} : vector<4x48xbf16> to vector<4x34xbf16>
    %13 = vector.extract_strided_slice %8 {offsets = [0, 8], sizes = [4, 34], strides = [1, 1]} : vector<4x48xbf16> to vector<4x34xbf16>
    %14 = tpu.concatenate %11, %12, %13 in 0 : vector<4x34xbf16>, vector<4x34xbf16>, vector<4x34xbf16> -> vector<12x34xbf16>
    %c0_4 = arith.constant 0 : index
    %c0_5 = arith.constant 0 : index
    %15 = vector.load %arg3[%c0_4, %c0_5] : memref<4x128xbf16, #tpu.memory_space<vmem>>, vector<4x12xbf16>
    %cst_6 = arith.constant dense<0.000000e+00> : vector<4x34xf32>
    %16 = tpu.matmul %15, %14, %cst_6 {dimension_numbers = #tpu.dot_dimension_numbers<[1], [0], [0], [1], [0, 0, 1, 1], [], []>} : vector<4x12xbf16>, vector<12x34xbf16>, vector<4x34xf32> -> vector<4x34xf32>
    %c0_7 = arith.constant 0 : index
    %c0_8 = arith.constant 0 : index
    %c0_9 = arith.constant 0 : index
    %17 = vector.load %arg4[%c0_7, %c0_8, %c0_9] : memref<4x4x1xf32, #tpu.memory_space<vmem>>, vector<1x4x1xf32>
    %18 = vector.shape_cast %17 : vector<1x4x1xf32> to vector<4x1xf32>
    %19 = vector.broadcast %18 : vector<4x1xf32> to vector<4x34xf32>
    %20 = arith.addf %16, %19 : vector<4x34xf32>
    %c1_i32 = arith.constant 1 : i32
    %21 = arith.subi %9, %c1_i32 : i32
    %22 = tpu.iota {dimensions = array<i32: 1>} : vector<1x34xi32>
    %23 = vector.broadcast %21 : i32 to vector<1x34xi32>
    %24 = arith.addi %23, %22 : vector<1x34xi32>
    %c0_i32 = arith.constant 0 : i32
    %25 = vector.broadcast %c0_i32 : i32 to vector<1x34xi32>
    %26 = arith.cmpi sge, %24, %25 : vector<1x34xi32>
    %c32_i32_10 = arith.constant 32 : i32
    %27 = vector.broadcast %c32_i32_10 : i32 to vector<1x34xi32>
    %28 = arith.cmpi slt, %24, %27 : vector<1x34xi32>
    %29 = arith.andi %26, %28 : vector<1x34xi1>
    %cst_11 = arith.constant 0.000000e+00 : f32
    %30 = vector.shape_cast %29 : vector<1x34xi1> to vector<1x34xi1>
    %31 = vector.broadcast %30 : vector<1x34xi1> to vector<4x34xi1>
    %32 = vector.broadcast %cst_11 : f32 to vector<4x34xf32>
    %33 = arith.select %31, %20, %32 : vector<4x34xi1>, vector<4x34xf32>
    %cst_12 = arith.constant 0.000000e+00 : f32
    %34 = vector.broadcast %cst_12 : f32 to vector<4x34xf32>
    %35 = arith.cmpf oge, %33, %34 : vector<4x34xf32>
    %cst_13 = arith.constant 1.000000e-01 : f32
    %36 = vector.broadcast %cst_13 : f32 to vector<4x34xf32>
    %37 = arith.mulf %36, %33 : vector<4x34xf32>
    %38 = arith.select %35, %33, %37 : vector<4x34xi1>, vector<4x34xf32>
    %39 = arith.truncf %38 : vector<4x34xf32> to vector<4x34xbf16>
    %40 = vector.extract_strided_slice %39 {offsets = [0, 0], sizes = [4, 32], strides = [1, 1]} : vector<4x34xbf16> to vector<4x32xbf16>
    %41 = vector.extract_strided_slice %39 {offsets = [0, 1], sizes = [4, 32], strides = [1, 1]} : vector<4x34xbf16> to vector<4x32xbf16>
    %42 = vector.extract_strided_slice %39 {offsets = [0, 2], sizes = [4, 32], strides = [1, 1]} : vector<4x34xbf16> to vector<4x32xbf16>
    %43 = tpu.concatenate %40, %41, %42 in 0 : vector<4x32xbf16>, vector<4x32xbf16>, vector<4x32xbf16> -> vector<12x32xbf16>
    %c0_14 = arith.constant 0 : index
    %c12 = arith.constant 12 : index
    %44 = vector.load %arg3[%c0_14, %c12] : memref<4x128xbf16, #tpu.memory_space<vmem>>, vector<4x12xbf16>
    %cst_15 = arith.constant dense<0.000000e+00> : vector<4x32xf32>
    %45 = tpu.matmul %44, %43, %cst_15 {dimension_numbers = #tpu.dot_dimension_numbers<[1], [0], [0], [1], [0, 0, 1, 1], [], []>} : vector<4x12xbf16>, vector<12x32xbf16>, vector<4x32xf32> -> vector<4x32xf32>
    %46 = arith.addf %10, %45 : vector<4x32xf32>
    %47 = vector.extract_strided_slice %8 {offsets = [0, 5], sizes = [4, 34], strides = [1, 1]} : vector<4x48xbf16> to vector<4x34xbf16>
    %48 = vector.extract_strided_slice %8 {offsets = [0, 7], sizes = [4, 34], strides = [1, 1]} : vector<4x48xbf16> to vector<4x34xbf16>
    %49 = vector.extract_strided_slice %8 {offsets = [0, 9], sizes = [4, 34], strides = [1, 1]} : vector<4x48xbf16> to vector<4x34xbf16>
    %50 = tpu.concatenate %47, %48, %49 in 0 : vector<4x34xbf16>, vector<4x34xbf16>, vector<4x34xbf16> -> vector<12x34xbf16>
    %c0_16 = arith.constant 0 : index
    %c24 = arith.constant 24 : index
    %51 = vector.load %arg3[%c0_16, %c24] : memref<4x128xbf16, #tpu.memory_space<vmem>>, vector<4x12xbf16>
    %cst_17 = arith.constant dense<0.000000e+00> : vector<4x34xf32>
    %52 = tpu.matmul %51, %50, %cst_17 {dimension_numbers = #tpu.dot_dimension_numbers<[1], [0], [0], [1], [0, 0, 1, 1], [], []>} : vector<4x12xbf16>, vector<12x34xbf16>, vector<4x34xf32> -> vector<4x34xf32>
    %c1 = arith.constant 1 : index
    %c0_18 = arith.constant 0 : index
    %c0_19 = arith.constant 0 : index
    %53 = vector.load %arg4[%c1, %c0_18, %c0_19] : memref<4x4x1xf32, #tpu.memory_space<vmem>>, vector<1x4x1xf32>
    %54 = vector.shape_cast %53 : vector<1x4x1xf32> to vector<4x1xf32>
    %55 = vector.broadcast %54 : vector<4x1xf32> to vector<4x34xf32>
    %56 = arith.addf %52, %55 : vector<4x34xf32>
    %c1_i32_20 = arith.constant 1 : i32
    %57 = arith.subi %9, %c1_i32_20 : i32
    %58 = tpu.iota {dimensions = array<i32: 1>} : vector<1x34xi32>
    %59 = vector.broadcast %57 : i32 to vector<1x34xi32>
    %60 = arith.addi %59, %58 : vector<1x34xi32>
    %c0_i32_21 = arith.constant 0 : i32
    %61 = vector.broadcast %c0_i32_21 : i32 to vector<1x34xi32>
    %62 = arith.cmpi sge, %60, %61 : vector<1x34xi32>
    %c32_i32_22 = arith.constant 32 : i32
    %63 = vector.broadcast %c32_i32_22 : i32 to vector<1x34xi32>
    %64 = arith.cmpi slt, %60, %63 : vector<1x34xi32>
    %65 = arith.andi %62, %64 : vector<1x34xi1>
    %cst_23 = arith.constant 0.000000e+00 : f32
    %66 = vector.shape_cast %65 : vector<1x34xi1> to vector<1x34xi1>
    %67 = vector.broadcast %66 : vector<1x34xi1> to vector<4x34xi1>
    %68 = vector.broadcast %cst_23 : f32 to vector<4x34xf32>
    %69 = arith.select %67, %56, %68 : vector<4x34xi1>, vector<4x34xf32>
    %cst_24 = arith.constant 0.000000e+00 : f32
    %70 = vector.broadcast %cst_24 : f32 to vector<4x34xf32>
    %71 = arith.cmpf oge, %69, %70 : vector<4x34xf32>
    %cst_25 = arith.constant 1.000000e-01 : f32
    %72 = vector.broadcast %cst_25 : f32 to vector<4x34xf32>
    %73 = arith.mulf %72, %69 : vector<4x34xf32>
    %74 = arith.select %71, %69, %73 : vector<4x34xi1>, vector<4x34xf32>
    %75 = arith.truncf %74 : vector<4x34xf32> to vector<4x34xbf16>
    %76 = vector.extract_strided_slice %75 {offsets = [0, 0], sizes = [4, 32], strides = [1, 1]} : vector<4x34xbf16> to vector<4x32xbf16>
    %77 = vector.extract_strided_slice %75 {offsets = [0, 1], sizes = [4, 32], strides = [1, 1]} : vector<4x34xbf16> to vector<4x32xbf16>
    %78 = vector.extract_strided_slice %75 {offsets = [0, 2], sizes = [4, 32], strides = [1, 1]} : vector<4x34xbf16> to vector<4x32xbf16>
    %79 = tpu.concatenate %76, %77, %78 in 0 : vector<4x32xbf16>, vector<4x32xbf16>, vector<4x32xbf16> -> vector<12x32xbf16>
    %c0_26 = arith.constant 0 : index
    %c36 = arith.constant 36 : index
    %80 = vector.load %arg3[%c0_26, %c36] : memref<4x128xbf16, #tpu.memory_space<vmem>>, vector<4x12xbf16>
    %cst_27 = arith.constant dense<0.000000e+00> : vector<4x32xf32>
    %81 = tpu.matmul %80, %79, %cst_27 {dimension_numbers = #tpu.dot_dimension_numbers<[1], [0], [0], [1], [0, 0, 1, 1], [], []>} : vector<4x12xbf16>, vector<12x32xbf16>, vector<4x32xf32> -> vector<4x32xf32>
    %82 = arith.addf %46, %81 : vector<4x32xf32>
    %83 = vector.extract_strided_slice %8 {offsets = [0, 4], sizes = [4, 36], strides = [1, 1]} : vector<4x48xbf16> to vector<4x36xbf16>
    %84 = vector.extract_strided_slice %8 {offsets = [0, 5], sizes = [4, 36], strides = [1, 1]} : vector<4x48xbf16> to vector<4x36xbf16>
    %85 = vector.extract_strided_slice %8 {offsets = [0, 6], sizes = [4, 36], strides = [1, 1]} : vector<4x48xbf16> to vector<4x36xbf16>
    %86 = vector.extract_strided_slice %8 {offsets = [0, 7], sizes = [4, 36], strides = [1, 1]} : vector<4x48xbf16> to vector<4x36xbf16>
    %87 = vector.extract_strided_slice %8 {offsets = [0, 8], sizes = [4, 36], strides = [1, 1]} : vector<4x48xbf16> to vector<4x36xbf16>
    %88 = tpu.concatenate %83, %84, %85, %86, %87 in 0 : vector<4x36xbf16>, vector<4x36xbf16>, vector<4x36xbf16>, vector<4x36xbf16>, vector<4x36xbf16> -> vector<20x36xbf16>
    %c0_28 = arith.constant 0 : index
    %c48 = arith.constant 48 : index
    %89 = vector.load %arg3[%c0_28, %c48] : memref<4x128xbf16, #tpu.memory_space<vmem>>, vector<4x20xbf16>
    %cst_29 = arith.constant dense<0.000000e+00> : vector<4x36xf32>
    %90 = tpu.matmul %89, %88, %cst_29 {dimension_numbers = #tpu.dot_dimension_numbers<[1], [0], [0], [1], [0, 0, 1, 1], [], []>} : vector<4x20xbf16>, vector<20x36xbf16>, vector<4x36xf32> -> vector<4x36xf32>
    %c2 = arith.constant 2 : index
    %c0_30 = arith.constant 0 : index
    %c0_31 = arith.constant 0 : index
    %91 = vector.load %arg4[%c2, %c0_30, %c0_31] : memref<4x4x1xf32, #tpu.memory_space<vmem>>, vector<1x4x1xf32>
    %92 = vector.shape_cast %91 : vector<1x4x1xf32> to vector<4x1xf32>
    %93 = vector.broadcast %92 : vector<4x1xf32> to vector<4x36xf32>
    %94 = arith.addf %90, %93 : vector<4x36xf32>
    %c2_i32 = arith.constant 2 : i32
    %95 = arith.subi %9, %c2_i32 : i32
    %96 = tpu.iota {dimensions = array<i32: 1>} : vector<1x36xi32>
    %97 = vector.broadcast %95 : i32 to vector<1x36xi32>
    %98 = arith.addi %97, %96 : vector<1x36xi32>
    %c0_i32_32 = arith.constant 0 : i32
    %99 = vector.broadcast %c0_i32_32 : i32 to vector<1x36xi32>
    %100 = arith.cmpi sge, %98, %99 : vector<1x36xi32>
    %c32_i32_33 = arith.constant 32 : i32
    %101 = vector.broadcast %c32_i32_33 : i32 to vector<1x36xi32>
    %102 = arith.cmpi slt, %98, %101 : vector<1x36xi32>
    %103 = arith.andi %100, %102 : vector<1x36xi1>
    %cst_34 = arith.constant 0.000000e+00 : f32
    %104 = vector.shape_cast %103 : vector<1x36xi1> to vector<1x36xi1>
    %105 = vector.broadcast %104 : vector<1x36xi1> to vector<4x36xi1>
    %106 = vector.broadcast %cst_34 : f32 to vector<4x36xf32>
    %107 = arith.select %105, %94, %106 : vector<4x36xi1>, vector<4x36xf32>
    %cst_35 = arith.constant 0.000000e+00 : f32
    %108 = vector.broadcast %cst_35 : f32 to vector<4x36xf32>
    %109 = arith.cmpf oge, %107, %108 : vector<4x36xf32>
    %cst_36 = arith.constant 1.000000e-01 : f32
    %110 = vector.broadcast %cst_36 : f32 to vector<4x36xf32>
    %111 = arith.mulf %110, %107 : vector<4x36xf32>
    %112 = arith.select %109, %107, %111 : vector<4x36xi1>, vector<4x36xf32>
    %113 = arith.truncf %112 : vector<4x36xf32> to vector<4x36xbf16>
    %114 = vector.extract_strided_slice %113 {offsets = [0, 0], sizes = [4, 32], strides = [1, 1]} : vector<4x36xbf16> to vector<4x32xbf16>
    %115 = vector.extract_strided_slice %113 {offsets = [0, 1], sizes = [4, 32], strides = [1, 1]} : vector<4x36xbf16> to vector<4x32xbf16>
    %116 = vector.extract_strided_slice %113 {offsets = [0, 2], sizes = [4, 32], strides = [1, 1]} : vector<4x36xbf16> to vector<4x32xbf16>
    %117 = vector.extract_strided_slice %113 {offsets = [0, 3], sizes = [4, 32], strides = [1, 1]} : vector<4x36xbf16> to vector<4x32xbf16>
    %118 = vector.extract_strided_slice %113 {offsets = [0, 4], sizes = [4, 32], strides = [1, 1]} : vector<4x36xbf16> to vector<4x32xbf16>
    %119 = tpu.concatenate %114, %115, %116, %117, %118 in 0 : vector<4x32xbf16>, vector<4x32xbf16>, vector<4x32xbf16>, vector<4x32xbf16>, vector<4x32xbf16> -> vector<20x32xbf16>
    %c0_37 = arith.constant 0 : index
    %c68 = arith.constant 68 : index
    %120 = vector.load %arg3[%c0_37, %c68] : memref<4x128xbf16, #tpu.memory_space<vmem>>, vector<4x20xbf16>
    %cst_38 = arith.constant dense<0.000000e+00> : vector<4x32xf32>
    %121 = tpu.matmul %120, %119, %cst_38 {dimension_numbers = #tpu.dot_dimension_numbers<[1], [0], [0], [1], [0, 0, 1, 1], [], []>} : vector<4x20xbf16>, vector<20x32xbf16>, vector<4x32xf32> -> vector<4x32xf32>
    %122 = arith.addf %82, %121 : vector<4x32xf32>
    %123 = vector.extract_strided_slice %8 {offsets = [0, 0], sizes = [4, 36], strides = [1, 1]} : vector<4x48xbf16> to vector<4x36xbf16>
    %124 = vector.extract_strided_slice %8 {offsets = [0, 3], sizes = [4, 36], strides = [1, 1]} : vector<4x48xbf16> to vector<4x36xbf16>
    %125 = vector.extract_strided_slice %8 {offsets = [0, 6], sizes = [4, 36], strides = [1, 1]} : vector<4x48xbf16> to vector<4x36xbf16>
    %126 = vector.extract_strided_slice %8 {offsets = [0, 9], sizes = [4, 36], strides = [1, 1]} : vector<4x48xbf16> to vector<4x36xbf16>
    %127 = vector.extract_strided_slice %8 {offsets = [0, 12], sizes = [4, 36], strides = [1, 1]} : vector<4x48xbf16> to vector<4x36xbf16>
    %128 = tpu.concatenate %123, %124, %125, %126, %127 in 0 : vector<4x36xbf16>, vector<4x36xbf16>, vector<4x36xbf16>, vector<4x36xbf16>, vector<4x36xbf16> -> vector<20x36xbf16>
    %c0_39 = arith.constant 0 : index
    %c88 = arith.constant 88 : index
    %129 = vector.load %arg3[%c0_39, %c88] : memref<4x128xbf16, #tpu.memory_space<vmem>>, vector<4x20xbf16>
    %cst_40 = arith.constant dense<0.000000e+00> : vector<4x36xf32>
    %130 = tpu.matmul %129, %128, %cst_40 {dimension_numbers = #tpu.dot_dimension_numbers<[1], [0], [0], [1], [0, 0, 1, 1], [], []>} : vector<4x20xbf16>, vector<20x36xbf16>, vector<4x36xf32> -> vector<4x36xf32>
    %c3 = arith.constant 3 : index
    %c0_41 = arith.constant 0 : index
    %c0_42 = arith.constant 0 : index
    %131 = vector.load %arg4[%c3, %c0_41, %c0_42] : memref<4x4x1xf32, #tpu.memory_space<vmem>>, vector<1x4x1xf32>
    %132 = vector.shape_cast %131 : vector<1x4x1xf32> to vector<4x1xf32>
    %133 = vector.broadcast %132 : vector<4x1xf32> to vector<4x36xf32>
    %134 = arith.addf %130, %133 : vector<4x36xf32>
    %c2_i32_43 = arith.constant 2 : i32
    %135 = arith.subi %9, %c2_i32_43 : i32
    %136 = tpu.iota {dimensions = array<i32: 1>} : vector<1x36xi32>
    %137 = vector.broadcast %135 : i32 to vector<1x36xi32>
    %138 = arith.addi %137, %136 : vector<1x36xi32>
    %c0_i32_44 = arith.constant 0 : i32
    %139 = vector.broadcast %c0_i32_44 : i32 to vector<1x36xi32>
    %140 = arith.cmpi sge, %138, %139 : vector<1x36xi32>
    %c32_i32_45 = arith.constant 32 : i32
    %141 = vector.broadcast %c32_i32_45 : i32 to vector<1x36xi32>
    %142 = arith.cmpi slt, %138, %141 : vector<1x36xi32>
    %143 = arith.andi %140, %142 : vector<1x36xi1>
    %cst_46 = arith.constant 0.000000e+00 : f32
    %144 = vector.shape_cast %143 : vector<1x36xi1> to vector<1x36xi1>
    %145 = vector.broadcast %144 : vector<1x36xi1> to vector<4x36xi1>
    %146 = vector.broadcast %cst_46 : f32 to vector<4x36xf32>
    %147 = arith.select %145, %134, %146 : vector<4x36xi1>, vector<4x36xf32>
    %cst_47 = arith.constant 0.000000e+00 : f32
    %148 = vector.broadcast %cst_47 : f32 to vector<4x36xf32>
    %149 = arith.cmpf oge, %147, %148 : vector<4x36xf32>
    %cst_48 = arith.constant 1.000000e-01 : f32
    %150 = vector.broadcast %cst_48 : f32 to vector<4x36xf32>
    %151 = arith.mulf %150, %147 : vector<4x36xf32>
    %152 = arith.select %149, %147, %151 : vector<4x36xi1>, vector<4x36xf32>
    %153 = arith.truncf %152 : vector<4x36xf32> to vector<4x36xbf16>
    %154 = vector.extract_strided_slice %153 {offsets = [0, 0], sizes = [4, 32], strides = [1, 1]} : vector<4x36xbf16> to vector<4x32xbf16>
    %155 = vector.extract_strided_slice %153 {offsets = [0, 1], sizes = [4, 32], strides = [1, 1]} : vector<4x36xbf16> to vector<4x32xbf16>
    %156 = vector.extract_strided_slice %153 {offsets = [0, 2], sizes = [4, 32], strides = [1, 1]} : vector<4x36xbf16> to vector<4x32xbf16>
    %157 = vector.extract_strided_slice %153 {offsets = [0, 3], sizes = [4, 32], strides = [1, 1]} : vector<4x36xbf16> to vector<4x32xbf16>
    %158 = vector.extract_strided_slice %153 {offsets = [0, 4], sizes = [4, 32], strides = [1, 1]} : vector<4x36xbf16> to vector<4x32xbf16>
    %159 = tpu.concatenate %154, %155, %156, %157, %158 in 0 : vector<4x32xbf16>, vector<4x32xbf16>, vector<4x32xbf16>, vector<4x32xbf16>, vector<4x32xbf16> -> vector<20x32xbf16>
    %c0_49 = arith.constant 0 : index
    %c108 = arith.constant 108 : index
    %160 = vector.load %arg3[%c0_49, %c108] : memref<4x128xbf16, #tpu.memory_space<vmem>>, vector<4x20xbf16>
    %cst_50 = arith.constant dense<0.000000e+00> : vector<4x32xf32>
    %161 = tpu.matmul %160, %159, %cst_50 {dimension_numbers = #tpu.dot_dimension_numbers<[1], [0], [0], [1], [0, 0, 1, 1], [], []>} : vector<4x20xbf16>, vector<20x32xbf16>, vector<4x32xf32> -> vector<4x32xf32>
    %162 = arith.addf %122, %161 : vector<4x32xf32>
    %c0_51 = arith.constant 0 : index
    %c0_52 = arith.constant 0 : index
    %163 = vector.load %arg5[%c0_51, %c0_52] : memref<4x1xf32, #tpu.memory_space<vmem>>, vector<4x1xf32>
    %164 = vector.broadcast %163 : vector<4x1xf32> to vector<4x32xf32>
    %165 = arith.addf %162, %164 : vector<4x32xf32>
    %166 = arith.truncf %165 : vector<4x32xf32> to vector<4x32xbf16>
    %c0_53 = arith.constant 0 : index
    %c0_54 = arith.constant 0 : index
    %c0_55 = arith.constant 0 : index
    %167 = vector.load %arg6[%c0_53, %c0_54, %c0_55] : memref<1x4x32xbf16, #tpu.memory_space<vmem>>, vector<1x4x32xbf16>
    %168 = vector.shape_cast %167 : vector<1x4x32xbf16> to vector<4x32xbf16>
    %169 = vector.shape_cast %166 : vector<4x32xbf16> to vector<1x4x32xbf16>
    tpu.vector_store %arg6[%c0_53, %c0_54, %c0_55], %169 {strides = array<i32>} : memref<1x4x32xbf16, #tpu.memory_space<vmem>>, vector<1x4x32xbf16>,
    return
  }
  func.func @transform_0(%arg0: i32, %arg1: i32) -> (i32, i32, i32) {
    %c0_i32 = arith.constant 0 : i32
    %c0_i32_0 = arith.constant 0 : i32
    %c0_i32_1 = arith.constant 0 : i32
    return %arg0, %c0_i32, %c0_i32_0 : i32, i32, i32
  }
  func.func @transform_1(%arg0: i32, %arg1: i32) -> (i32, i32) {
    %c0_i32 = arith.constant 0 : i32
    %c0_i32_0 = arith.constant 0 : i32
    %c0_i32_1 = arith.constant 0 : i32
    return %c0_i32, %c0_i32_0 : i32, i32
  }
  func.func @transform_2(%arg0: i32, %arg1: i32) -> (i32, i32, i32) {
    %c0_i32 = arith.constant 0 : i32
    %c0_i32_0 = arith.constant 0 : i32
    %c0_i32_1 = arith.constant 0 : i32
    %c0_i32_2 = arith.constant 0 : i32
    return %c0_i32, %c0_i32_0, %c0_i32_1 : i32, i32, i32
  }
  func.func @transform_3(%arg0: i32, %arg1: i32) -> (i32, i32) {
    %c0_i32 = arith.constant 0 : i32
    %c0_i32_0 = arith.constant 0 : i32
    %c0_i32_1 = arith.constant 0 : i32
    return %c0_i32, %c0_i32_0 : i32, i32
  }
  func.func @transform_4(%arg0: i32, %arg1: i32) -> (i32, i32, i32) {
    %c0_i32 = arith.constant 0 : i32
    %c0_i32_0 = arith.constant 0 : i32
    return %arg0, %c0_i32, %arg1 : i32, i32, i32
  }
}

</mosaic_0001>

<llo_original>
// kernel: _lambda_.6
$region0: #{_lambda_.6}
  #allocation0 [shape = 'u32[]', space=smem, size = 0x4, offset = 0x4, fixed_abs, tag = 'smem constant byte address 0x4 - core index']
  #allocation1 [shape = 'u32[144,128]{1,0:T(1,128)}', space=vmem, size = 0x12000, scoped, tag = 'internal scratch']
  %s0 = inlined_call_operand.hbm [shape: f32[2,8,14], index: 0, kind: input, shape index: {}]
  %s1 = inlined_call_operand.hbm [shape: bf16[16,56], index: 1, kind: input, shape index: {}]
  %s2 = inlined_call_operand.hbm [shape: f32[16,1], index: 2, kind: input, shape index: {}]
  %s3 = inlined_call_operand.hbm [shape: bf16[2,16,8], index: 3, kind: output, shape index: {}]
  %s4 = sld [smem:[#allocation0]]
  $region57: #{_lambda_.6} parent=0
    _
  %s6 = ssub.s32 1, %s4
  %s7 = scalar_select 0, %s6, %s4
  $region1: #{_lambda_.6} parent=0
    #allocation2 [shape = 'u8[8192]{0}', space=vmem, size = 0x2000, scoped, tag = 'input window, operand 0']
    #allocation3 [shape = 's32[2]{0}', space=sflag, size = 0x8, scoped, tag = 'scoped memory for _lambda_.6']
    #allocation4 [shape = 's32[2]{0}', space=sflag, size = 0x8, scoped, tag = 'scoped memory for _lambda_.6']
    #allocation5 [shape = 'u8[4096]{0}', space=vmem, size = 0x1000, scoped, tag = 'input window, operand 1, single buffered']
    #allocation6 [shape = 's32[1]{0}', space=sflag, size = 0x4, scoped, tag = 'scoped memory for _lambda_.6']
    #allocation7 [shape = 'u8[8192]{0}', space=vmem, size = 0x2000, scoped, tag = 'input window, operand 2, single buffered']
    #allocation8 [shape = 'u8[8192]{0}', space=vmem, size = 0x2000, scoped, tag = 'output window, operand 0']
    %8 = vsyncpa [#allocation3], 0
    %s9 = scalar_lea.sflag [#allocation3], 1
    %10 = vsyncpa %s9, 0
    %11 = vsyncpa [#allocation6], 0
    %12 = vsyncpa [#allocation4], 0
    %s13 = scalar_lea.sflag [#allocation4], 1
    %14 = vsyncpa %s13, 0
    loop: start=0, step=1, limit=4
    $region2: #{_lambda_.6} parent=1 // loop_pre_header
      _
    $region3: #{_lambda_.6} parent=1 // loop_header
      %s16 = sphi 0, %s20
      %p17 = scmp.ge.s32.totalorder %s16, 4
      %s23 = sphi 0, %s35
      %s24 = sphi 0, %s31
      %s25 = sphi 0, %s23
      %s26 = sphi 0, %s24
      %s27 = sphi 0, %s25
      %s28 = sphi 0, %s26
      %s38 = sphi 0, %s40
      %s41 = sphi 0, %s38
      %s42 = sphi 0, %s41
      %s58 = sphi 0, %s42
      %s62 = sphi 0, %s62
      %s64 = sphi 0, %s62
      %s65 = sphi 0, %s64
      %s79 = sphi 0, %s65
      %s83 = sphi 0, %s83
      %s85 = sphi 0, %s83
      %s86 = sphi 0, %s85
      %s100 = sphi 0, %s86
      %s108 = sphi 0, %s110
      %s111 = sphi 0, %s108
      %s112 = sphi 0, %s111
      %s128 = sphi 0, %s112
    $region4: #{_lambda_.6} parent=1 // loop_header_branch
      %19 = sbr.rel (%p17) target = $region8
    $region5: #{_lambda_.6} parent=1 // loop_body
      %s21 = ssub.s32 %s16, 1
      %s22 = ssub.s32 %s16, 2
      %s29 = sadd.s32 1, %s24
      %p30 = scmp.ge.s32.totalorder %s29, 1
      %s31 = scalar_select %p30, 0, %s29
      %s32 = sadd.s32 1, %s23
      %s33 = scalar_select %p30, %s32, %s23
      %p34 = scmp.ge.s32.totalorder %s33, 2
      %s35 = scalar_select %p34, 0, %s33
      %s36 = ssub.s32 %s23, %s35
      %p37 = scmp.eq.s32.totalorder %s36, 0
      %s39 = sadd.s32 %s38, 1
      %s40 = scalar_select %p37, %s38, %s39
      %p43 = pneg %p37
      %p44 = scmp.eq.s32.totalorder %s16, 1
      %p45 = por %p43, %p44
      %p46 = scmp.ne.s32.totalorder %s38, %s41
      %p47 = scmp.eq.s32.totalorder %s16, 0
      %p48 = por %p46, %p47
      %p49 = scmp.ne.s32.totalorder %s38, %s41
      %p50 = scmp.eq.s32.totalorder %s21, 1
      %p51 = por %p49, %p50
      %p52 = scmp.ne.s32.totalorder %s41, %s42
      %p53 = scmp.eq.s32.totalorder %s21, 0
      %p54 = por %p52, %p53
      %p55 = scmp.ne.s32.totalorder %s41, %s42
      %p56 = scmp.eq.s32.totalorder %s22, 1
      %p57 = por %p55, %p56
      %p59 = scmp.ne.s32.totalorder %s42, %s58
      %p60 = scmp.eq.s32.totalorder %s22, 0
      %p61 = por %p59, %p60
      %s63 = sadd.s32 %s62, 1
      %p66 = scmp.eq.s32.totalorder %s16, 1
      %p67 = scmp.ne.s32.totalorder %s62, %s64
      %p68 = scmp.eq.s32.totalorder %s16, 0
      %p69 = por %p67, %p68
      %p70 = scmp.ne.s32.totalorder %s62, %s64
      %p71 = scmp.eq.s32.totalorder %s21, 1
      %p72 = por %p70, %p71
      %p73 = scmp.ne.s32.totalorder %s64, %s65
      %p74 = scmp.eq.s32.totalorder %s21, 0
      %p75 = por %p73, %p74
      %p76 = scmp.ne.s32.totalorder %s64, %s65
      %p77 = scmp.eq.s32.totalorder %s22, 1
      %p78 = por %p76, %p77
      %p80 = scmp.ne.s32.totalorder %s65, %s79
      %p81 = scmp.eq.s32.totalorder %s22, 0
      %p82 = por %p80, %p81
      %s84 = sadd.s32 %s83, 1
      %p87 = scmp.eq.s32.totalorder %s16, 1
      %p88 = scmp.ne.s32.totalorder %s83, %s85
      %p89 = scmp.eq.s32.totalorder %s16, 0
      %p90 = por %p88, %p89
      %p91 = scmp.ne.s32.totalorder %s83, %s85
      %p92 = scmp.eq.s32.totalorder %s21, 1
      %p93 = por %p91, %p92
      %p94 = scmp.ne.s32.totalorder %s85, %s86
      %p95 = scmp.eq.s32.totalorder %s21, 0
      %p96 = por %p94, %p95
      %p97 = scmp.ne.s32.totalorder %s85, %s86
      %p98 = scmp.eq.s32.totalorder %s22, 1
      %p99 = por %p97, %p98
      %p101 = scmp.ne.s32.totalorder %s86, %s100
      %p102 = scmp.eq.s32.totalorder %s22, 0
      %p103 = por %p101, %p102
      %s104 = ssub.s32 %s23, %s35
      %s105 = ssub.s32 %s24, %s31
      %s106 = sor.u32 %s104, %s105
      %p107 = scmp.eq.s32.totalorder %s106, 0
      %s109 = sadd.s32 %s108, 1
      %s110 = scalar_select %p107, %s108, %s109
      %p113 = pneg %p107
      %p114 = scmp.eq.s32.totalorder %s16, 1
      %p115 = por %p113, %p114
      %p116 = scmp.ne.s32.totalorder %s108, %s111
      %p117 = scmp.eq.s32.totalorder %s16, 0
      %p118 = por %p116, %p117
      %p119 = scmp.ne.s32.totalorder %s108, %s111
      %p120 = scmp.eq.s32.totalorder %s21, 1
      %p121 = por %p119, %p120
      %p122 = scmp.ne.s32.totalorder %s111, %s112
      %p123 = scmp.eq.s32.totalorder %s21, 0
      %p124 = por %p122, %p123
      %p125 = scmp.ne.s32.totalorder %s111, %s112
      %p126 = scmp.eq.s32.totalorder %s22, 1
      %p127 = por %p125, %p126
      %p129 = scmp.ne.s32.totalorder %s112, %s128
      %p130 = scmp.eq.s32.totalorder %s22, 0
      %p131 = por %p129, %p130
      %p132 = scmp.le.s32.totalorder 1, %s16
      %p133 = scmp.lt.s32.totalorder %s16, 3
      %p134 = pnand %p132, %p133
      %p135 = pneg %p134
      // Predicated region
      $region9: #{_lambda_.6} parent=5 // pred_check
        _
      $region10: #{_lambda_.6} parent=5 // pred_check_branch
        %137 = sbr.rel (%p134) target = $region12
      $region11: #{_lambda_.6} parent=5 // pred_region
        %s138 = ssub.s32 %s16, 1
        // Predicated region
        $region13: #{_lambda_.6} parent=11 // pred_check
          %p139 = pneg %p75
        $region14: #{_lambda_.6} parent=11 // pred_check_branch
          %141 = sbr.rel (%p139) target = $region16
        $region15: #{_lambda_.6} parent=11 // pred_region
          %s143 = ssub.s32 128, 128
          %144 = vsyncadd [#allocation6], %s143
          %s145 = sshll.u32 [#allocation5], 4
          %s146 = int_to_ptr.vmem [resolvable:$true] %s145
          %151 = dma.hbm_to_vmem [thread:$0]  %s1, 128, %s146, [#allocation6], 64, 64, 4
        $region16: #{_lambda_.6} parent=11 // pred_fallthru
          _
        // Predicated region
        $region17: #{_lambda_.6} parent=11 // pred_check
          %p152 = pneg %p96
        $region18: #{_lambda_.6} parent=11 // pred_check_branch
          %154 = sbr.rel (%p152) target = $region20
        $region19: #{_lambda_.6} parent=11 // pred_region
          %s156 = ssub.s32 256, 256
          %157 = vsyncadd [#allocation6], %s156
          %s158 = sshll.u32 [#allocation7], 4
          %s159 = int_to_ptr.vmem [resolvable:$true] %s158
          %164 = dma.hbm_to_vmem [thread:$0]  %s2, 256, %s159, [#allocation6], 128, 128, 8
        $region20: #{_lambda_.6} parent=11 // pred_fallthru
          _
      $region12: #{_lambda_.6} parent=5 // pred_fallthru
        _
      %p165 = scmp.lt.s32.totalorder %s16, 2
      // Predicated region
      $region21: #{_lambda_.6} parent=5 // pred_check
        %p166 = pneg %p165
      $region22: #{_lambda_.6} parent=5 // pred_check_branch
        %168 = sbr.rel (%p166) target = $region24
      $region23: #{_lambda_.6} parent=5 // pred_region
        // Predicated region
        $region25: #{_lambda_.6} parent=23 // pred_check
          %p169 = pneg %p48
        $region26: #{_lambda_.6} parent=23 // pred_check_branch
          %171 = sbr.rel (%p169) target = $region28
        $region27: #{_lambda_.6} parent=23 // pred_region
          %s172 = sand.u32 %s38, 1
          %s173 = scalar_lea.sflag [#allocation3], %s172
          %s174 = sand.u32 %s38, 1
          %s175 = smul.addr %s174, 8
          %s176 = scalar_lea.vmem [#allocation2], %s175
          %s178 = ssub.s32 128, 128
          %179 = vsyncadd %s173, %s178
          %s180 = smul.addr %s23, 128
          %s181 = scalar_lea.hbm %s0, %s180
          %s183 = sshll.u32 %s176, 4
          %s184 = int_to_ptr.vmem [resolvable:$true] %s183
          %186 = dma.hbm_to_vmem [thread:$0]  %s181, 128, %s184, %s173
        $region28: #{_lambda_.6} parent=23 // pred_fallthru
          _
      $region24: #{_lambda_.6} parent=5 // pred_fallthru
        _
      %p187 = scmp.le.s32.totalorder 1, %s16
      %p188 = scmp.lt.s32.totalorder %s16, 3
      %p189 = pnand %p187, %p188
      %p190 = pneg %p189
      // Predicated region
      $region29: #{_lambda_.6} parent=5 // pred_check
        _
      $region30: #{_lambda_.6} parent=5 // pred_check_branch
        %192 = sbr.rel (%p189) target = $region32
      $region31: #{_lambda_.6} parent=5 // pred_region
        %s193 = ssub.s32 %s16, 1
        %s194 = sand.u32 %s41, 1
        %s195 = scalar_lea.sflag [#allocation3], %s194
        %s196 = sand.u32 %s41, 1
        %s197 = smul.addr %s196, 8
        %s198 = scalar_lea.vmem [#allocation2], %s197
        // Predicated region
        $region33: #{_lambda_.6} parent=31 // pred_check
          %p199 = pneg %p54
        $region34: #{_lambda_.6} parent=31 // pred_check_branch
          %201 = sbr.rel (%p199) target = $region36
        $region35: #{_lambda_.6} parent=31 // pred_region
          %202 = dma.done %s195, 128
        $region36: #{_lambda_.6} parent=31 // pred_fallthru
          _
        // Predicated region
        $region37: #{_lambda_.6} parent=31 // pred_check
          %p203 = pneg %p75
        $region38: #{_lambda_.6} parent=31 // pred_check_branch
          %205 = sbr.rel (%p203) target = $region40
        $region39: #{_lambda_.6} parent=31 // pred_region
          %206 = dma.done [#allocation6], 128
        $region40: #{_lambda_.6} parent=31 // pred_fallthru
          _
        // Predicated region
        $region41: #{_lambda_.6} parent=31 // pred_check
          %p207 = pneg %p96
        $region42: #{_lambda_.6} parent=31 // pred_check_branch
          %209 = sbr.rel (%p207) target = $region44
        $region43: #{_lambda_.6} parent=31 // pred_region
          %210 = dma.done [#allocation6], 256
        $region44: #{_lambda_.6} parent=31 // pred_fallthru
          _
        %s211 = sand.u32 %s41, 1
        %s212 = scalar_lea.sflag [#allocation3], %s211
        %s213 = sand.u32 %s41, 1
        %s214 = smul.addr %s213, 8
        %s215 = scalar_lea.vmem [#allocation2], %s214
        %p216 = pneg %p54
        %p217 = pneg %p51
        %p218 = pneg %p75
        %p219 = pneg %p72
        %p220 = pneg %p96
        %p221 = pneg %p93
        %p222 = pneg %p124
        %p223 = pneg %p121
        %s224 = sand.u32 %s111, 1
        %s225 = scalar_lea.sflag [#allocation4], %s224
        %s226 = sand.u32 %s111, 1
        %s227 = smul.addr %s226, 8
        %s228 = scalar_lea.vmem [#allocation8], %s227
        %v230 = vld [vmem:[%s198] sm:$0xff]
        %v231 = vpack.c.bf16 %v230, %v230
        %v233 = vrot.slane %v231, 4
        %234 = vrot.lane.b32.xlu0 %v233, 127
        %v235 = vpop.permute.xlu0 %234
        %236 = vrot.lane.b32.xlu0 %v231, 126
        %v237 = vpop.permute.xlu0 %236
        %238 = vrot.lane.b32.xlu0 %v233, 125
        %v239 = vpop.permute.xlu0 %238
        %240 = vrot.lane.b32.xlu0 %v231, 124
        %v241 = vpop.permute.xlu0 %240
        %242 = vrot.lane.b32.xlu0 %v233, 123
        %v243 = vpop.permute.xlu0 %242
        %244 = vrot.lane.b32.xlu0 %v231, 122
        %v245 = vpop.permute.xlu0 %244
        %vm246 = vcmask 1043456
        %v249 = vsel %vm246, %v231, %v235
        %v253 = vsel %vm246, %v237, %v239
        %v257 = vsel %vm246, %v241, %v243
        %v259 = vld [vmem:[#allocation5] sm:$0xf]
        %v260 = vld [vmem:[#allocation5 + $0x4] sm:$0xf]
        %v261 = vld [vmem:[#allocation7] sm:$0xff]
        %v262 = vld [vmem:[#allocation7 + $0x8] sm:$0xff]
        %264 = vset.pattern.permute.xlu0 0
        %265 = vperm.xlu0 %264, %v261
        %v266 = vpop.permute.xlu0 %265
        %269 = vset.pattern.permute.xlu0 0
        %270 = vperm.xlu0 %269, %v262
        %v271 = vpop.permute.xlu0 %270
        %v275 = vunpack.c.l.b16 %v259
        %v276 = vunpack.c.l.b16 %v260
        %v277 = vpack.c.b16 %v276, %v275
        %vm278 = vcmask 457728
        %v280 = vsel %vm278, %v277, 0
        %v283 = vsel %vm246, %v245, 0
        %285 = vmatprep.subr.bf16.mxu0 0
        %286 = vmatpush1.bf16.msra.mxu0 %v249
        %287 = vmatprep.subr.bf16.mxu0 0
        %288 = vmatpush1.bf16.msra.mxu0 %v253
        %289 = vmatprep.subr.bf16.mxu0 0
        %290 = vmatpush1.bf16.msra.mxu0 %v257
        %291 = vmatprep.subr.bf16.mxu0 0
        %292 = vmatpush1.bf16.msra.mxu0 %v283
        %293 = vmatprep.subr.bf16.mxu0 0
        %294 = vmatpush1.bf16.msra.mxu0 0
        %295 = vmatprep.subr.bf16.mxu0 0
        %296 = vmatpush1.bf16.msra.mxu0 0
        %297 = vmatprep.subr.bf16.mxu0 0
        %298 = vmatpush1.bf16.msra.mxu0 0
        %299 = vmatprep.subr.bf16.mxu0 0
        %300 = vmatpush1.bf16.msra.mxu0 0
        %301 = vmatprep.subr.bf16.mxu0 0
        %302 = vmatpush1.bf16.msra.mxu0 0
        %303 = vmatprep.subr.bf16.mxu0 0
        %304 = vmatpush1.bf16.msra.mxu0 0
        %305 = vmatprep.subr.bf16.mxu0 0
        %306 = vmatpush1.bf16.msra.mxu0 0
        %307 = vmatprep.subr.bf16.mxu0 0
        %308 = vmatpush1.bf16.msra.mxu0 0
        %309 = vmatprep.subr.bf16.mxu0 0
        %310 = vmatpush1.bf16.msra.mxu0 0
        %311 = vmatprep.subr.bf16.mxu0 0
        %312 = vmatpush1.bf16.msra.mxu0 0
        %313 = vmatprep.subr.bf16.mxu0 0
        %314 = vmatpush1.bf16.msra.mxu0 0
        %315 = vmatprep.subr.bf16.mxu0 0
        %316 = vmatpush1.bf16.msra.mxu0 0
        %317 = vmatprep.mubr.bf16.mxu0 0
        %318 = vmatmul.mubr.bf16.gmra.mrb[0].mxu0 %v280
        %v319 = vpop.f32.mrb[0].mxu0
        %v320 = vadd.f32 %v266, %v319
        %v321 = vpop.f32.mrb[0].mxu0
        %v322 = vpop.f32.mrb[0].mxu0
        %v323 = vadd.f32 %v271, %v322
        %v324 = vpop.f32.mrb[0].mxu0
        %325 = vdwg.mxu0
        %v326 = vpack.c.bf16 %v323, %v320
        %v328 = vunpack.c.l.b16 %v326
        %v329 = vunpack.c.h.b16 %v326
        %v330 = vpack.c.b16 %v328, %v328
        %v331 = vpack.c.b16 %v329, %v329
        %vm334 = vcmask 60416
        %335 = vst.msk [vmem:[%s228] sm:$0xf] %vm334, %v330
        %336 = vst.msk [vmem:[%s228 + $0x4] sm:$0xf] %vm334, %v331
        %s337 = sand.u32 %s111, 1
        %s338 = scalar_lea.sflag [#allocation4], %s337
        %s339 = sand.u32 %s111, 1
        %s340 = smul.addr %s339, 8
        %s341 = scalar_lea.vmem [#allocation8], %s340
        // Predicated region
        $region45: #{_lambda_.6} parent=31 // pred_check
          %p342 = pneg %p121
        $region46: #{_lambda_.6} parent=31 // pred_check_branch
          %344 = sbr.rel (%p342) target = $region48
        $region47: #{_lambda_.6} parent=31 // pred_region
          %s346 = ssub.s32 128, 128
          %347 = vsyncadd %s338, %s346
          %s348 = smul.addr %s25, 2
          %s349 = sadd.s32 %s26, %s348
          %s350 = smul.addr %s349, 64
          %s351 = scalar_lea.hbm %s3, %s350
          %s352 = sshll.u32 %s341, 4
          %s353 = int_to_ptr.vmem [resolvable:$true] %s352
          %358 = dma.vmem_to_hbm [thread:$0]  %s353, 128, %s351, %s338, 64, 64, 4
        $region48: #{_lambda_.6} parent=31 // pred_fallthru
          _
      $region32: #{_lambda_.6} parent=5 // pred_fallthru
        _
      %p359 = scmp.le.s32.totalorder 2, %s16
      // Predicated region
      $region49: #{_lambda_.6} parent=5 // pred_check
        %p360 = pneg %p359
      $region50: #{_lambda_.6} parent=5 // pred_check_branch
        %362 = sbr.rel (%p360) target = $region52
      $region51: #{_lambda_.6} parent=5 // pred_region
        %s363 = ssub.s32 %s16, 2
        // Predicated region
        $region53: #{_lambda_.6} parent=51 // pred_check
          %p364 = pneg %p127
        $region54: #{_lambda_.6} parent=51 // pred_check_branch
          %366 = sbr.rel (%p364) target = $region56
        $region55: #{_lambda_.6} parent=51 // pred_region
          %s367 = sand.u32 %s112, 1
          %s368 = scalar_lea.sflag [#allocation4], %s367
          %s369 = sand.u32 %s112, 1
          %s370 = smul.addr %s369, 8
          %s371 = scalar_lea.vmem [#allocation8], %s370
          %372 = dma.done %s368, 128
        $region56: #{_lambda_.6} parent=51 // pred_fallthru
          _
      $region52: #{_lambda_.6} parent=5 // pred_fallthru
        _
    $region6: #{_lambda_.6} parent=1 // loop_footer
      %s20 = sadd.s32 1, %s16
    $region7: #{_lambda_.6} parent=1 // loop_footer_branch
      %15 = sbr.rel target = $region3
    $region8: #{_lambda_.6} parent=1 // loop_exit
      _
    %373 = vsyncpa [#allocation3], 1
    %s374 = scalar_lea.sflag [#allocation3], 1
    %375 = vsyncpa %s374, 1
    %376 = vsyncpa [#allocation6], 1
    %377 = vsyncpa [#allocation4], 1
    %s378 = scalar_lea.sflag [#allocation4], 1
    %379 = vsyncpa %s378, 1

// kernel: _lambda_.7
$region0: #{_lambda_.7}
  #allocation0 [shape = 'u32[]', space=smem, size = 0x4, offset = 0x4, fixed_abs, tag = 'smem constant byte address 0x4 - core index']
  #allocation1 [shape = 'u32[144,128]{1,0:T(1,128)}', space=vmem, size = 0x12000, scoped, tag = 'internal scratch']
  %s0 = inlined_call_operand.hbm [shape: bf16[2,16,10], index: 0, kind: input, shape index: {}]
  %s1 = inlined_call_operand.hbm [shape: bf16[16,48], index: 1, kind: input, shape index: {}]
  %s2 = inlined_call_operand.hbm [shape: f32[16,1], index: 2, kind: input, shape index: {}]
  %s3 = inlined_call_operand.hbm [shape: bf16[2,16,8], index: 3, kind: output, shape index: {}]
  %s4 = sld [smem:[#allocation0]]
  $region57: #{_lambda_.7} parent=0
    _
  %s6 = ssub.s32 1, %s4
  %s7 = scalar_select 0, %s6, %s4
  $region1: #{_lambda_.7} parent=0
    #allocation2 [shape = 'u8[8192]{0}', space=vmem, size = 0x2000, scoped, tag = 'input window, operand 0']
    #allocation3 [shape = 's32[2]{0}', space=sflag, size = 0x8, scoped, tag = 'scoped memory for _lambda_.7']
    #allocation4 [shape = 's32[2]{0}', space=sflag, size = 0x8, scoped, tag = 'scoped memory for _lambda_.7']
    #allocation5 [shape = 'u8[4096]{0}', space=vmem, size = 0x1000, scoped, tag = 'input window, operand 1, single buffered']
    #allocation6 [shape = 's32[1]{0}', space=sflag, size = 0x4, scoped, tag = 'scoped memory for _lambda_.7']
    #allocation7 [shape = 'u8[8192]{0}', space=vmem, size = 0x2000, scoped, tag = 'input window, operand 2, single buffered']
    #allocation8 [shape = 'u8[8192]{0}', space=vmem, size = 0x2000, scoped, tag = 'output window, operand 0']
    %8 = vsyncpa [#allocation3], 0
    %s9 = scalar_lea.sflag [#allocation3], 1
    %10 = vsyncpa %s9, 0
    %11 = vsyncpa [#allocation6], 0
    %12 = vsyncpa [#allocation4], 0
    %s13 = scalar_lea.sflag [#allocation4], 1
    %14 = vsyncpa %s13, 0
    loop: start=0, step=1, limit=4
    $region2: #{_lambda_.7} parent=1 // loop_pre_header
      _
    $region3: #{_lambda_.7} parent=1 // loop_header
      %s16 = sphi 0, %s20
      %p17 = scmp.ge.s32.totalorder %s16, 4
      %s23 = sphi 0, %s35
      %s24 = sphi 0, %s31
      %s25 = sphi 0, %s23
      %s26 = sphi 0, %s24
      %s27 = sphi 0, %s25
      %s28 = sphi 0, %s26
      %s38 = sphi 0, %s40
      %s41 = sphi 0, %s38
      %s42 = sphi 0, %s41
      %s58 = sphi 0, %s42
      %s62 = sphi 0, %s62
      %s64 = sphi 0, %s62
      %s65 = sphi 0, %s64
      %s79 = sphi 0, %s65
      %s83 = sphi 0, %s83
      %s85 = sphi 0, %s83
      %s86 = sphi 0, %s85
      %s100 = sphi 0, %s86
      %s108 = sphi 0, %s110
      %s111 = sphi 0, %s108
      %s112 = sphi 0, %s111
      %s128 = sphi 0, %s112
    $region4: #{_lambda_.7} parent=1 // loop_header_branch
      %19 = sbr.rel (%p17) target = $region8
    $region5: #{_lambda_.7} parent=1 // loop_body
      %s21 = ssub.s32 %s16, 1
      %s22 = ssub.s32 %s16, 2
      %s29 = sadd.s32 1, %s24
      %p30 = scmp.ge.s32.totalorder %s29, 1
      %s31 = scalar_select %p30, 0, %s29
      %s32 = sadd.s32 1, %s23
      %s33 = scalar_select %p30, %s32, %s23
      %p34 = scmp.ge.s32.totalorder %s33, 2
      %s35 = scalar_select %p34, 0, %s33
      %s36 = ssub.s32 %s23, %s35
      %p37 = scmp.eq.s32.totalorder %s36, 0
      %s39 = sadd.s32 %s38, 1
      %s40 = scalar_select %p37, %s38, %s39
      %p43 = pneg %p37
      %p44 = scmp.eq.s32.totalorder %s16, 1
      %p45 = por %p43, %p44
      %p46 = scmp.ne.s32.totalorder %s38, %s41
      %p47 = scmp.eq.s32.totalorder %s16, 0
      %p48 = por %p46, %p47
      %p49 = scmp.ne.s32.totalorder %s38, %s41
      %p50 = scmp.eq.s32.totalorder %s21, 1
      %p51 = por %p49, %p50
      %p52 = scmp.ne.s32.totalorder %s41, %s42
      %p53 = scmp.eq.s32.totalorder %s21, 0
      %p54 = por %p52, %p53
      %p55 = scmp.ne.s32.totalorder %s41, %s42
      %p56 = scmp.eq.s32.totalorder %s22, 1
      %p57 = por %p55, %p56
      %p59 = scmp.ne.s32.totalorder %s42, %s58
      %p60 = scmp.eq.s32.totalorder %s22, 0
      %p61 = por %p59, %p60
      %s63 = sadd.s32 %s62, 1
      %p66 = scmp.eq.s32.totalorder %s16, 1
      %p67 = scmp.ne.s32.totalorder %s62, %s64
      %p68 = scmp.eq.s32.totalorder %s16, 0
      %p69 = por %p67, %p68
      %p70 = scmp.ne.s32.totalorder %s62, %s64
      %p71 = scmp.eq.s32.totalorder %s21, 1
      %p72 = por %p70, %p71
      %p73 = scmp.ne.s32.totalorder %s64, %s65
      %p74 = scmp.eq.s32.totalorder %s21, 0
      %p75 = por %p73, %p74
      %p76 = scmp.ne.s32.totalorder %s64, %s65
      %p77 = scmp.eq.s32.totalorder %s22, 1
      %p78 = por %p76, %p77
      %p80 = scmp.ne.s32.totalorder %s65, %s79
      %p81 = scmp.eq.s32.totalorder %s22, 0
      %p82 = por %p80, %p81
      %s84 = sadd.s32 %s83, 1
      %p87 = scmp.eq.s32.totalorder %s16, 1
      %p88 = scmp.ne.s32.totalorder %s83, %s85
      %p89 = scmp.eq.s32.totalorder %s16, 0
      %p90 = por %p88, %p89
      %p91 = scmp.ne.s32.totalorder %s83, %s85
      %p92 = scmp.eq.s32.totalorder %s21, 1
      %p93 = por %p91, %p92
      %p94 = scmp.ne.s32.totalorder %s85, %s86
      %p95 = scmp.eq.s32.totalorder %s21, 0
      %p96 = por %p94, %p95
      %p97 = scmp.ne.s32.totalorder %s85, %s86
      %p98 = scmp.eq.s32.totalorder %s22, 1
      %p99 = por %p97, %p98
      %p101 = scmp.ne.s32.totalorder %s86, %s100
      %p102 = scmp.eq.s32.totalorder %s22, 0
      %p103 = por %p101, %p102
      %s104 = ssub.s32 %s23, %s35
      %s105 = ssub.s32 %s24, %s31
      %s106 = sor.u32 %s104, %s105
      %p107 = scmp.eq.s32.totalorder %s106, 0
      %s109 = sadd.s32 %s108, 1
      %s110 = scalar_select %p107, %s108, %s109
      %p113 = pneg %p107
      %p114 = scmp.eq.s32.totalorder %s16, 1
      %p115 = por %p113, %p114
      %p116 = scmp.ne.s32.totalorder %s108, %s111
      %p117 = scmp.eq.s32.totalorder %s16, 0
      %p118 = por %p116, %p117
      %p119 = scmp.ne.s32.totalorder %s108, %s111
      %p120 = scmp.eq.s32.totalorder %s21, 1
      %p121 = por %p119, %p120
      %p122 = scmp.ne.s32.totalorder %s111, %s112
      %p123 = scmp.eq.s32.totalorder %s21, 0
      %p124 = por %p122, %p123
      %p125 = scmp.ne.s32.totalorder %s111, %s112
      %p126 = scmp.eq.s32.totalorder %s22, 1
      %p127 = por %p125, %p126
      %p129 = scmp.ne.s32.totalorder %s112, %s128
      %p130 = scmp.eq.s32.totalorder %s22, 0
      %p131 = por %p129, %p130
      %p132 = scmp.le.s32.totalorder 1, %s16
      %p133 = scmp.lt.s32.totalorder %s16, 3
      %p134 = pnand %p132, %p133
      %p135 = pneg %p134
      // Predicated region
      $region9: #{_lambda_.7} parent=5 // pred_check
        _
      $region10: #{_lambda_.7} parent=5 // pred_check_branch
        %137 = sbr.rel (%p134) target = $region12
      $region11: #{_lambda_.7} parent=5 // pred_region
        %s138 = ssub.s32 %s16, 1
        // Predicated region
        $region13: #{_lambda_.7} parent=11 // pred_check
          %p139 = pneg %p75
        $region14: #{_lambda_.7} parent=11 // pred_check_branch
          %141 = sbr.rel (%p139) target = $region16
        $region15: #{_lambda_.7} parent=11 // pred_region
          %s143 = ssub.s32 128, 128
          %144 = vsyncadd [#allocation6], %s143
          %s145 = sshll.u32 [#allocation5], 4
          %s146 = int_to_ptr.vmem [resolvable:$true] %s145
          %151 = dma.hbm_to_vmem [thread:$0]  %s1, 128, %s146, [#allocation6], 64, 64, 4
        $region16: #{_lambda_.7} parent=11 // pred_fallthru
          _
        // Predicated region
        $region17: #{_lambda_.7} parent=11 // pred_check
          %p152 = pneg %p96
        $region18: #{_lambda_.7} parent=11 // pred_check_branch
          %154 = sbr.rel (%p152) target = $region20
        $region19: #{_lambda_.7} parent=11 // pred_region
          %s156 = ssub.s32 256, 256
          %157 = vsyncadd [#allocation6], %s156
          %s158 = sshll.u32 [#allocation7], 4
          %s159 = int_to_ptr.vmem [resolvable:$true] %s158
          %164 = dma.hbm_to_vmem [thread:$0]  %s2, 256, %s159, [#allocation6], 128, 128, 8
        $region20: #{_lambda_.7} parent=11 // pred_fallthru
          _
      $region12: #{_lambda_.7} parent=5 // pred_fallthru
        _
      %p165 = scmp.lt.s32.totalorder %s16, 2
      // Predicated region
      $region21: #{_lambda_.7} parent=5 // pred_check
        %p166 = pneg %p165
      $region22: #{_lambda_.7} parent=5 // pred_check_branch
        %168 = sbr.rel (%p166) target = $region24
      $region23: #{_lambda_.7} parent=5 // pred_region
        // Predicated region
        $region25: #{_lambda_.7} parent=23 // pred_check
          %p169 = pneg %p48
        $region26: #{_lambda_.7} parent=23 // pred_check_branch
          %171 = sbr.rel (%p169) target = $region28
        $region27: #{_lambda_.7} parent=23 // pred_region
          %s172 = sand.u32 %s38, 1
          %s173 = scalar_lea.sflag [#allocation3], %s172
          %s174 = sand.u32 %s38, 1
          %s175 = smul.addr %s174, 8
          %s176 = scalar_lea.vmem [#allocation2], %s175
          %s178 = ssub.s32 128, 128
          %179 = vsyncadd %s173, %s178
          %s180 = smul.addr %s23, 2
          %s181 = smul.addr %s180, 64
          %s182 = scalar_lea.hbm %s0, %s181
          %s183 = sshll.u32 %s176, 4
          %s184 = int_to_ptr.vmem [resolvable:$true] %s183
          %189 = dma.hbm_to_vmem [thread:$0]  %s182, 128, %s184, %s173, 64, 64, 4
        $region28: #{_lambda_.7} parent=23 // pred_fallthru
          _
      $region24: #{_lambda_.7} parent=5 // pred_fallthru
        _
      %p190 = scmp.le.s32.totalorder 1, %s16
      %p191 = scmp.lt.s32.totalorder %s16, 3
      %p192 = pnand %p190, %p191
      %p193 = pneg %p192
      // Predicated region
      $region29: #{_lambda_.7} parent=5 // pred_check
        _
      $region30: #{_lambda_.7} parent=5 // pred_check_branch
        %195 = sbr.rel (%p192) target = $region32
      $region31: #{_lambda_.7} parent=5 // pred_region
        %s196 = ssub.s32 %s16, 1
        %s197 = sand.u32 %s41, 1
        %s198 = scalar_lea.sflag [#allocation3], %s197
        %s199 = sand.u32 %s41, 1
        %s200 = smul.addr %s199, 8
        %s201 = scalar_lea.vmem [#allocation2], %s200
        // Predicated region
        $region33: #{_lambda_.7} parent=31 // pred_check
          %p202 = pneg %p54
        $region34: #{_lambda_.7} parent=31 // pred_check_branch
          %204 = sbr.rel (%p202) target = $region36
        $region35: #{_lambda_.7} parent=31 // pred_region
          %205 = dma.done %s198, 128
        $region36: #{_lambda_.7} parent=31 // pred_fallthru
          _
        // Predicated region
        $region37: #{_lambda_.7} parent=31 // pred_check
          %p206 = pneg %p75
        $region38: #{_lambda_.7} parent=31 // pred_check_branch
          %208 = sbr.rel (%p206) target = $region40
        $region39: #{_lambda_.7} parent=31 // pred_region
          %209 = dma.done [#allocation6], 128
        $region40: #{_lambda_.7} parent=31 // pred_fallthru
          _
        // Predicated region
        $region41: #{_lambda_.7} parent=31 // pred_check
          %p210 = pneg %p96
        $region42: #{_lambda_.7} parent=31 // pred_check_branch
          %212 = sbr.rel (%p210) target = $region44
        $region43: #{_lambda_.7} parent=31 // pred_region
          %213 = dma.done [#allocation6], 256
        $region44: #{_lambda_.7} parent=31 // pred_fallthru
          _
        %s214 = sand.u32 %s41, 1
        %s215 = scalar_lea.sflag [#allocation3], %s214
        %s216 = sand.u32 %s41, 1
        %s217 = smul.addr %s216, 8
        %s218 = scalar_lea.vmem [#allocation2], %s217
        %p219 = pneg %p54
        %p220 = pneg %p51
        %p221 = pneg %p75
        %p222 = pneg %p72
        %p223 = pneg %p96
        %p224 = pneg %p93
        %p225 = pneg %p124
        %p226 = pneg %p121
        %s227 = sand.u32 %s111, 1
        %s228 = scalar_lea.sflag [#allocation4], %s227
        %s229 = sand.u32 %s111, 1
        %s230 = smul.addr %s229, 8
        %s231 = scalar_lea.vmem [#allocation8], %s230
        %v233 = vld [vmem:[%s201] sm:$0xf]
        %v234 = vld [vmem:[%s201 + $0x4] sm:$0xf]
        %v235 = vunpack.c.l.bf16 %v233
        %v236 = vunpack.c.l.bf16 %v234
        %vm237 = vcmp.ge.f32.partialorder %v235, 0.0
        %vm238 = vcmp.ge.f32.partialorder %v236, 0.0
        %v239 = vmul.f32 %v235, 0.1
        %v240 = vmul.f32 %v236, 0.1
        %v241 = vsel %vm237, %v235, %v239
        %v242 = vsel %vm238, %v236, %v240
        %v243 = vpack.c.bf16 %v242, %v241
        %245 = vrot.lane.b32.xlu0 %v243, 127
        %v246 = vpop.permute.xlu0 %245
        %248 = vrot.lane.b32.xlu0 %v243, 126
        %v249 = vpop.permute.xlu0 %248
        %v251 = vld [vmem:[#allocation5] sm:$0xf]
        %v252 = vld [vmem:[#allocation5 + $0x4] sm:$0xf]
        %v253 = vld [vmem:[#allocation7] sm:$0xff]
        %v254 = vld [vmem:[#allocation7 + $0x8] sm:$0xff]
        %256 = vset.pattern.permute.xlu0 0
        %257 = vperm.xlu0 %256, %v253
        %v258 = vpop.permute.xlu0 %257
        %261 = vset.pattern.permute.xlu0 0
        %262 = vperm.xlu0 %261, %v254
        %v263 = vpop.permute.xlu0 %262
        %v267 = vunpack.c.l.b16 %v251
        %v268 = vunpack.c.l.b16 %v252
        %v269 = vpack.c.b16 %v268, %v267
        %vm270 = vcmask 392192
        %v272 = vsel %vm270, %v269, 0
        %274 = vmatprep.subr.bf16.mxu0 0
        %275 = vmatpush1.bf16.msra.mxu0 %v243
        %276 = vmatprep.subr.bf16.mxu0 0
        %277 = vmatpush1.bf16.msra.mxu0 %v246
        %278 = vmatprep.subr.bf16.mxu0 0
        %279 = vmatpush1.bf16.msra.mxu0 %v249
        %280 = vmatprep.subr.bf16.mxu0 0
        %281 = vmatpush1.bf16.msra.mxu0 0
        %282 = vmatprep.subr.bf16.mxu0 0
        %283 = vmatpush1.bf16.msra.mxu0 0
        %284 = vmatprep.subr.bf16.mxu0 0
        %285 = vmatpush1.bf16.msra.mxu0 0
        %286 = vmatprep.subr.bf16.mxu0 0
        %287 = vmatpush1.bf16.msra.mxu0 0
        %288 = vmatprep.subr.bf16.mxu0 0
        %289 = vmatpush1.bf16.msra.mxu0 0
        %290 = vmatprep.subr.bf16.mxu0 0
        %291 = vmatpush1.bf16.msra.mxu0 0
        %292 = vmatprep.subr.bf16.mxu0 0
        %293 = vmatpush1.bf16.msra.mxu0 0
        %294 = vmatprep.subr.bf16.mxu0 0
        %295 = vmatpush1.bf16.msra.mxu0 0
        %296 = vmatprep.subr.bf16.mxu0 0
        %297 = vmatpush1.bf16.msra.mxu0 0
        %298 = vmatprep.subr.bf16.mxu0 0
        %299 = vmatpush1.bf16.msra.mxu0 0
        %300 = vmatprep.subr.bf16.mxu0 0
        %301 = vmatpush1.bf16.msra.mxu0 0
        %302 = vmatprep.subr.bf16.mxu0 0
        %303 = vmatpush1.bf16.msra.mxu0 0
        %304 = vmatprep.subr.bf16.mxu0 0
        %305 = vmatpush1.bf16.msra.mxu0 0
        %306 = vmatprep.mubr.bf16.mxu0 0
        %307 = vmatmul.mubr.bf16.gmra.mrb[0].mxu0 %v272
        %v308 = vpop.f32.mrb[0].mxu0
        %v309 = vadd.f32 %v258, %v308
        %v310 = vpop.f32.mrb[0].mxu0
        %v311 = vpop.f32.mrb[0].mxu0
        %v312 = vadd.f32 %v263, %v311
        %v313 = vpop.f32.mrb[0].mxu0
        %314 = vdwg.mxu0
        %v315 = vpack.c.bf16 %v312, %v309
        %v317 = vunpack.c.l.b16 %v315
        %v318 = vunpack.c.h.b16 %v315
        %v319 = vpack.c.b16 %v317, %v317
        %v320 = vpack.c.b16 %v318, %v318
        %vm323 = vcmask 60416
        %324 = vst.msk [vmem:[%s231] sm:$0xf] %vm323, %v319
        %325 = vst.msk [vmem:[%s231 + $0x4] sm:$0xf] %vm323, %v320
        %s326 = sand.u32 %s111, 1
        %s327 = scalar_lea.sflag [#allocation4], %s326
        %s328 = sand.u32 %s111, 1
        %s329 = smul.addr %s328, 8
        %s330 = scalar_lea.vmem [#allocation8], %s329
        // Predicated region
        $region45: #{_lambda_.7} parent=31 // pred_check
          %p331 = pneg %p121
        $region46: #{_lambda_.7} parent=31 // pred_check_branch
          %333 = sbr.rel (%p331) target = $region48
        $region47: #{_lambda_.7} parent=31 // pred_region
          %s335 = ssub.s32 128, 128
          %336 = vsyncadd %s327, %s335
          %s337 = smul.addr %s25, 2
          %s338 = sadd.s32 %s26, %s337
          %s339 = smul.addr %s338, 64
          %s340 = scalar_lea.hbm %s3, %s339
          %s341 = sshll.u32 %s330, 4
          %s342 = int_to_ptr.vmem [resolvable:$true] %s341
          %347 = dma.vmem_to_hbm [thread:$0]  %s342, 128, %s340, %s327, 64, 64, 4
        $region48: #{_lambda_.7} parent=31 // pred_fallthru
          _
      $region32: #{_lambda_.7} parent=5 // pred_fallthru
        _
      %p348 = scmp.le.s32.totalorder 2, %s16
      // Predicated region
      $region49: #{_lambda_.7} parent=5 // pred_check
        %p349 = pneg %p348
      $region50: #{_lambda_.7} parent=5 // pred_check_branch
        %351 = sbr.rel (%p349) target = $region52
      $region51: #{_lambda_.7} parent=5 // pred_region
        %s352 = ssub.s32 %s16, 2
        // Predicated region
        $region53: #{_lambda_.7} parent=51 // pred_check
          %p353 = pneg %p127
        $region54: #{_lambda_.7} parent=51 // pred_check_branch
          %355 = sbr.rel (%p353) target = $region56
        $region55: #{_lambda_.7} parent=51 // pred_region
          %s356 = sand.u32 %s112, 1
          %s357 = scalar_lea.sflag [#allocation4], %s356
          %s358 = sand.u32 %s112, 1
          %s359 = smul.addr %s358, 8
          %s360 = scalar_lea.vmem [#allocation8], %s359
          %361 = dma.done %s357, 128
        $region56: #{_lambda_.7} parent=51 // pred_fallthru
          _
      $region52: #{_lambda_.7} parent=5 // pred_fallthru
        _
    $region6: #{_lambda_.7} parent=1 // loop_footer
      %s20 = sadd.s32 1, %s16
    $region7: #{_lambda_.7} parent=1 // loop_footer_branch
      %15 = sbr.rel target = $region3
    $region8: #{_lambda_.7} parent=1 // loop_exit
      _
    %362 = vsyncpa [#allocation3], 1
    %s363 = scalar_lea.sflag [#allocation3], 1
    %364 = vsyncpa %s363, 1
    %365 = vsyncpa [#allocation6], 1
    %366 = vsyncpa [#allocation4], 1
    %s367 = scalar_lea.sflag [#allocation4], 1
    %368 = vsyncpa %s367, 1

// kernel: _lambda_.8
$region0: #{_lambda_.8}
  #allocation0 [shape = 'u32[]', space=smem, size = 0x4, offset = 0x4, fixed_abs, tag = 'smem constant byte address 0x4 - core index']
  #allocation1 [shape = 'u32[144,128]{1,0:T(1,128)}', space=vmem, size = 0x12000, scoped, tag = 'internal scratch']
  %s0 = inlined_call_operand.hbm [shape: bf16[2,8,32], index: 0, kind: input, shape index: {}]
  %s1 = inlined_call_operand.hbm [shape: bf16[8,256], index: 1, kind: input, shape index: {}]
  %s2 = inlined_call_operand.hbm [shape: f32[4,8,1], index: 2, kind: input, shape index: {}]
  %s3 = inlined_call_operand.hbm [shape: f32[8,1], index: 3, kind: input, shape index: {}]
  %s4 = inlined_call_operand.hbm [shape: bf16[2,8,16], index: 4, kind: output, shape index: {}]
  %s5 = sld [smem:[#allocation0]]
  $region65: #{_lambda_.8} parent=0
    _
  %s7 = ssub.s32 1, %s5
  %s8 = scalar_select 0, %s7, %s5
  $region1: #{_lambda_.8} parent=0
    #allocation2 [shape = 'u8[4096]{0}', space=vmem, size = 0x1000, scoped, tag = 'input window, operand 0']
    #allocation3 [shape = 's32[2]{0}', space=sflag, size = 0x8, scoped, tag = 'scoped memory for _lambda_.8']
    #allocation4 [shape = 's32[2]{0}', space=sflag, size = 0x8, scoped, tag = 'scoped memory for _lambda_.8']
    #allocation5 [shape = 'u8[4096]{0}', space=vmem, size = 0x1000, scoped, tag = 'input window, operand 1, single buffered']
    #allocation6 [shape = 's32[1]{0}', space=sflag, size = 0x4, scoped, tag = 'scoped memory for _lambda_.8']
    #allocation7 [shape = 'u8[16384]{0}', space=vmem, size = 0x4000, scoped, tag = 'input window, operand 2, single buffered']
    #allocation8 [shape = 'u8[4096]{0}', space=vmem, size = 0x1000, scoped, tag = 'input window, operand 3, single buffered']
    #allocation9 [shape = 's32[1]{0}', space=sflag, size = 0x4, scoped, tag = 'scoped memory for _lambda_.8']
    #allocation10 [shape = 'u8[4096]{0}', space=vmem, size = 0x1000, scoped, tag = 'output window, operand 0']
    %9 = vsyncpa [#allocation3], 0
    %s10 = scalar_lea.sflag [#allocation3], 1
    %11 = vsyncpa %s10, 0
    %12 = vsyncpa [#allocation6], 0
    %13 = vsyncpa [#allocation9], 0
    %14 = vsyncpa [#allocation4], 0
    %s15 = scalar_lea.sflag [#allocation4], 1
    %16 = vsyncpa %s15, 0
    loop: start=0, step=1, limit=4
    $region2: #{_lambda_.8} parent=1 // loop_pre_header
      _
    $region3: #{_lambda_.8} parent=1 // loop_header
      %s18 = sphi 0, %s22
      %p19 = scmp.ge.s32.totalorder %s18, 4
      %s25 = sphi 0, %s37
      %s26 = sphi 0, %s33
      %s27 = sphi 0, %s25
      %s28 = sphi 0, %s26
      %s29 = sphi 0, %s27
      %s30 = sphi 0, %s28
      %s40 = sphi 0, %s42
      %s43 = sphi 0, %s40
      %s44 = sphi 0, %s43
      %s60 = sphi 0, %s44
      %s64 = sphi 0, %s64
      %s66 = sphi 0, %s64
      %s67 = sphi 0, %s66
      %s81 = sphi 0, %s67
      %s85 = sphi 0, %s85
      %s87 = sphi 0, %s85
      %s88 = sphi 0, %s87
      %s102 = sphi 0, %s88
      %s106 = sphi 0, %s106
      %s108 = sphi 0, %s106
      %s109 = sphi 0, %s108
      %s123 = sphi 0, %s109
      %s131 = sphi 0, %s133
      %s134 = sphi 0, %s131
      %s135 = sphi 0, %s134
      %s151 = sphi 0, %s135
    $region4: #{_lambda_.8} parent=1 // loop_header_branch
      %21 = sbr.rel (%p19) target = $region8
    $region5: #{_lambda_.8} parent=1 // loop_body
      %s23 = ssub.s32 %s18, 1
      %s24 = ssub.s32 %s18, 2
      %s31 = sadd.s32 1, %s26
      %p32 = scmp.ge.s32.totalorder %s31, 1
      %s33 = scalar_select %p32, 0, %s31
      %s34 = sadd.s32 1, %s25
      %s35 = scalar_select %p32, %s34, %s25
      %p36 = scmp.ge.s32.totalorder %s35, 2
      %s37 = scalar_select %p36, 0, %s35
      %s38 = ssub.s32 %s25, %s37
      %p39 = scmp.eq.s32.totalorder %s38, 0
      %s41 = sadd.s32 %s40, 1
      %s42 = scalar_select %p39, %s40, %s41
      %p45 = pneg %p39
      %p46 = scmp.eq.s32.totalorder %s18, 1
      %p47 = por %p45, %p46
      %p48 = scmp.ne.s32.totalorder %s40, %s43
      %p49 = scmp.eq.s32.totalorder %s18, 0
      %p50 = por %p48, %p49
      %p51 = scmp.ne.s32.totalorder %s40, %s43
      %p52 = scmp.eq.s32.totalorder %s23, 1
      %p53 = por %p51, %p52
      %p54 = scmp.ne.s32.totalorder %s43, %s44
      %p55 = scmp.eq.s32.totalorder %s23, 0
      %p56 = por %p54, %p55
      %p57 = scmp.ne.s32.totalorder %s43, %s44
      %p58 = scmp.eq.s32.totalorder %s24, 1
      %p59 = por %p57, %p58
      %p61 = scmp.ne.s32.totalorder %s44, %s60
      %p62 = scmp.eq.s32.totalorder %s24, 0
      %p63 = por %p61, %p62
      %s65 = sadd.s32 %s64, 1
      %p68 = scmp.eq.s32.totalorder %s18, 1
      %p69 = scmp.ne.s32.totalorder %s64, %s66
      %p70 = scmp.eq.s32.totalorder %s18, 0
      %p71 = por %p69, %p70
      %p72 = scmp.ne.s32.totalorder %s64, %s66
      %p73 = scmp.eq.s32.totalorder %s23, 1
      %p74 = por %p72, %p73
      %p75 = scmp.ne.s32.totalorder %s66, %s67
      %p76 = scmp.eq.s32.totalorder %s23, 0
      %p77 = por %p75, %p76
      %p78 = scmp.ne.s32.totalorder %s66, %s67
      %p79 = scmp.eq.s32.totalorder %s24, 1
      %p80 = por %p78, %p79
      %p82 = scmp.ne.s32.totalorder %s67, %s81
      %p83 = scmp.eq.s32.totalorder %s24, 0
      %p84 = por %p82, %p83
      %s86 = sadd.s32 %s85, 1
      %p89 = scmp.eq.s32.totalorder %s18, 1
      %p90 = scmp.ne.s32.totalorder %s85, %s87
      %p91 = scmp.eq.s32.totalorder %s18, 0
      %p92 = por %p90, %p91
      %p93 = scmp.ne.s32.totalorder %s85, %s87
      %p94 = scmp.eq.s32.totalorder %s23, 1
      %p95 = por %p93, %p94
      %p96 = scmp.ne.s32.totalorder %s87, %s88
      %p97 = scmp.eq.s32.totalorder %s23, 0
      %p98 = por %p96, %p97
      %p99 = scmp.ne.s32.totalorder %s87, %s88
      %p100 = scmp.eq.s32.totalorder %s24, 1
      %p101 = por %p99, %p100
      %p103 = scmp.ne.s32.totalorder %s88, %s102
      %p104 = scmp.eq.s32.totalorder %s24, 0
      %p105 = por %p103, %p104
      %s107 = sadd.s32 %s106, 1
      %p110 = scmp.eq.s32.totalorder %s18, 1
      %p111 = scmp.ne.s32.totalorder %s106, %s108
      %p112 = scmp.eq.s32.totalorder %s18, 0
      %p113 = por %p111, %p112
      %p114 = scmp.ne.s32.totalorder %s106, %s108
      %p115 = scmp.eq.s32.totalorder %s23, 1
      %p116 = por %p114, %p115
      %p117 = scmp.ne.s32.totalorder %s108, %s109
      %p118 = scmp.eq.s32.totalorder %s23, 0
      %p119 = por %p117, %p118
      %p120 = scmp.ne.s32.totalorder %s108, %s109
      %p121 = scmp.eq.s32.totalorder %s24, 1
      %p122 = por %p120, %p121
      %p124 = scmp.ne.s32.totalorder %s109, %s123
      %p125 = scmp.eq.s32.totalorder %s24, 0
      %p126 = por %p124, %p125
      %s127 = ssub.s32 %s25, %s37
      %s128 = ssub.s32 %s26, %s33
      %s129 = sor.u32 %s127, %s128
      %p130 = scmp.eq.s32.totalorder %s129, 0
      %s132 = sadd.s32 %s131, 1
      %s133 = scalar_select %p130, %s131, %s132
      %p136 = pneg %p130
      %p137 = scmp.eq.s32.totalorder %s18, 1
      %p138 = por %p136, %p137
      %p139 = scmp.ne.s32.totalorder %s131, %s134
      %p140 = scmp.eq.s32.totalorder %s18, 0
      %p141 = por %p139, %p140
      %p142 = scmp.ne.s32.totalorder %s131, %s134
      %p143 = scmp.eq.s32.totalorder %s23, 1
      %p144 = por %p142, %p143
      %p145 = scmp.ne.s32.totalorder %s134, %s135
      %p146 = scmp.eq.s32.totalorder %s23, 0
      %p147 = por %p145, %p146
      %p148 = scmp.ne.s32.totalorder %s134, %s135
      %p149 = scmp.eq.s32.totalorder %s24, 1
      %p150 = por %p148, %p149
      %p152 = scmp.ne.s32.totalorder %s135, %s151
      %p153 = scmp.eq.s32.totalorder %s24, 0
      %p154 = por %p152, %p153
      %p155 = scmp.le.s32.totalorder 1, %s18
      %p156 = scmp.lt.s32.totalorder %s18, 3
      %p157 = pnand %p155, %p156
      %p158 = pneg %p157
      // Predicated region
      $region9: #{_lambda_.8} parent=5 // pred_check
        _
      $region10: #{_lambda_.8} parent=5 // pred_check_branch
        %160 = sbr.rel (%p157) target = $region12
      $region11: #{_lambda_.8} parent=5 // pred_region
        %s161 = ssub.s32 %s18, 1
        // Predicated region
        $region13: #{_lambda_.8} parent=11 // pred_check
          %p162 = pneg %p77
        $region14: #{_lambda_.8} parent=11 // pred_check_branch
          %164 = sbr.rel (%p162) target = $region16
        $region15: #{_lambda_.8} parent=11 // pred_region
          %s166 = ssub.s32 128, 128
          %167 = vsyncadd [#allocation6], %s166
          %s169 = sshll.u32 [#allocation5], 4
          %s170 = int_to_ptr.vmem [resolvable:$true] %s169
          %172 = dma.hbm_to_vmem [thread:$0]  %s1, 128, %s170, [#allocation6]
        $region16: #{_lambda_.8} parent=11 // pred_fallthru
          _
        // Predicated region
        $region17: #{_lambda_.8} parent=11 // pred_check
          %p173 = pneg %p98
        $region18: #{_lambda_.8} parent=11 // pred_check_branch
          %175 = sbr.rel (%p173) target = $region20
        $region19: #{_lambda_.8} parent=11 // pred_region
          %s177 = ssub.s32 512, 512
          %178 = vsyncadd [#allocation6], %s177
          %s179 = sshll.u32 [#allocation7], 4
          %s180 = int_to_ptr.vmem [resolvable:$true] %s179
          %185 = dma.hbm_to_vmem [thread:$0]  %s2, 512, %s180, [#allocation6], 128, 128, 8
        $region20: #{_lambda_.8} parent=11 // pred_fallthru
          _
        // Predicated region
        $region21: #{_lambda_.8} parent=11 // pred_check
          %p186 = pneg %p119
        $region22: #{_lambda_.8} parent=11 // pred_check_branch
          %188 = sbr.rel (%p186) target = $region24
        $region23: #{_lambda_.8} parent=11 // pred_region
          %s190 = ssub.s32 128, 128
          %191 = vsyncadd [#allocation9], %s190
          %s193 = sshll.u32 [#allocation8], 4
          %s194 = int_to_ptr.vmem [resolvable:$true] %s193
          %196 = dma.hbm_to_vmem [thread:$0]  %s3, 128, %s194, [#allocation9]
        $region24: #{_lambda_.8} parent=11 // pred_fallthru
          _
      $region12: #{_lambda_.8} parent=5 // pred_fallthru
        _
      %p197 = scmp.lt.s32.totalorder %s18, 2
      // Predicated region
      $region25: #{_lambda_.8} parent=5 // pred_check
        %p198 = pneg %p197
      $region26: #{_lambda_.8} parent=5 // pred_check_branch
        %200 = sbr.rel (%p198) target = $region28
      $region27: #{_lambda_.8} parent=5 // pred_region
        // Predicated region
        $region29: #{_lambda_.8} parent=27 // pred_check
          %p201 = pneg %p50
        $region30: #{_lambda_.8} parent=27 // pred_check_branch
          %203 = sbr.rel (%p201) target = $region32
        $region31: #{_lambda_.8} parent=27 // pred_region
          %s204 = sand.u32 %s40, 1
          %s205 = scalar_lea.sflag [#allocation3], %s204
          %s206 = sand.u32 %s40, 1
          %s207 = smul.addr %s206, 4
          %s208 = scalar_lea.vmem [#allocation2], %s207
          %s210 = ssub.s32 64, 64
          %211 = vsyncadd %s205, %s210
          %s212 = smul.addr %s25, 64
          %s213 = scalar_lea.hbm %s0, %s212
          %s215 = sshll.u32 %s208, 4
          %s216 = int_to_ptr.vmem [resolvable:$true] %s215
          %218 = dma.hbm_to_vmem [thread:$0]  %s213, 64, %s216, %s205
        $region32: #{_lambda_.8} parent=27 // pred_fallthru
          _
      $region28: #{_lambda_.8} parent=5 // pred_fallthru
        _
      %p219 = scmp.le.s32.totalorder 1, %s18
      %p220 = scmp.lt.s32.totalorder %s18, 3
      %p221 = pnand %p219, %p220
      %p222 = pneg %p221
      // Predicated region
      $region33: #{_lambda_.8} parent=5 // pred_check
        _
      $region34: #{_lambda_.8} parent=5 // pred_check_branch
        %224 = sbr.rel (%p221) target = $region36
      $region35: #{_lambda_.8} parent=5 // pred_region
        %s225 = ssub.s32 %s18, 1
        %s226 = sand.u32 %s43, 1
        %s227 = scalar_lea.sflag [#allocation3], %s226
        %s228 = sand.u32 %s43, 1
        %s229 = smul.addr %s228, 4
        %s230 = scalar_lea.vmem [#allocation2], %s229
        // Predicated region
        $region37: #{_lambda_.8} parent=35 // pred_check
          %p231 = pneg %p56
        $region38: #{_lambda_.8} parent=35 // pred_check_branch
          %233 = sbr.rel (%p231) target = $region40
        $region39: #{_lambda_.8} parent=35 // pred_region
          %234 = dma.done %s227, 64
        $region40: #{_lambda_.8} parent=35 // pred_fallthru
          _
        // Predicated region
        $region41: #{_lambda_.8} parent=35 // pred_check
          %p235 = pneg %p77
        $region42: #{_lambda_.8} parent=35 // pred_check_branch
          %237 = sbr.rel (%p235) target = $region44
        $region43: #{_lambda_.8} parent=35 // pred_region
          %238 = dma.done [#allocation6], 128
        $region44: #{_lambda_.8} parent=35 // pred_fallthru
          _
        // Predicated region
        $region45: #{_lambda_.8} parent=35 // pred_check
          %p239 = pneg %p98
        $region46: #{_lambda_.8} parent=35 // pred_check_branch
          %241 = sbr.rel (%p239) target = $region48
        $region47: #{_lambda_.8} parent=35 // pred_region
          %242 = dma.done [#allocation6], 512
        $region48: #{_lambda_.8} parent=35 // pred_fallthru
          _
        // Predicated region
        $region49: #{_lambda_.8} parent=35 // pred_check
          %p243 = pneg %p119
        $region50: #{_lambda_.8} parent=35 // pred_check_branch
          %245 = sbr.rel (%p243) target = $region52
        $region51: #{_lambda_.8} parent=35 // pred_region
          %246 = dma.done [#allocation9], 128
        $region52: #{_lambda_.8} parent=35 // pred_fallthru
          _
        %s247 = sand.u32 %s43, 1
        %s248 = scalar_lea.sflag [#allocation3], %s247
        %s249 = sand.u32 %s43, 1
        %s250 = smul.addr %s249, 4
        %s251 = scalar_lea.vmem [#allocation2], %s250
        %p252 = pneg %p56
        %p253 = pneg %p53
        %p254 = pneg %p77
        %p255 = pneg %p74
        %p256 = pneg %p98
        %p257 = pneg %p95
        %p258 = pneg %p119
        %p259 = pneg %p116
        %p260 = pneg %p147
        %p261 = pneg %p144
        %s262 = sand.u32 %s134, 1
        %s263 = scalar_lea.sflag [#allocation4], %s262
        %s264 = sand.u32 %s134, 1
        %s265 = smul.addr %s264, 4
        %s266 = scalar_lea.vmem [#allocation10], %s265
        %v268 = vld [vmem:[%s230] sm:$0xf]
        %v269 = vunpack.c.l.bf16 %v268
        %vm270 = vcmp.ge.f32.partialorder %v269, 0.0
        %v271 = vmul.f32 %v269, 0.1
        %v272 = vsel %vm270, %v269, %v271
        %v273 = vpack.c.bf16 %v272, %v272
        %s274 = smul.u32 %s28, 16
        %v276 = vrot.slane %v273, 4
        %277 = vrot.lane.b32.xlu0 %v276, 127
        %v278 = vpop.permute.xlu0 %277
        %279 = vrot.lane.b32.xlu0 %v273, 126
        %v280 = vpop.permute.xlu0 %279
        %vm281 = vcmask 1043456
        %v284 = vsel %vm281, %v273, %v278
        %v285 = vld [vmem:[#allocation5] sm:$0xf]
        %v286 = vld [vmem:[#allocation7] sm:$0xff]
        %288 = vset.pattern.permute.xlu0 0
        %289 = vperm.xlu0 %288, %v286
        %v290 = vpop.permute.xlu0 %289
        %293 = vrot.lane.b32.xlu0 %v284, 122
        %v294 = vpop.permute.xlu0 %293
        %295 = vrot.lane.b32.xlu0 %v280, 122
        %v296 = vpop.permute.xlu0 %295
        %vm298 = vcmask 195584
        %v300 = vsel %vm298, %v285, 0
        %v303 = vsel %vm281, %v296, 0
        %305 = vmatprep.subr.bf16.mxu0 0
        %306 = vmatpush1.bf16.msra.mxu0 %v294
        %307 = vmatprep.subr.bf16.mxu0 0
        %308 = vmatpush1.bf16.msra.mxu0 %v303
        %309 = vmatprep.subr.bf16.mxu0 0
        %310 = vmatpush1.bf16.msra.mxu0 0
        %311 = vmatprep.subr.bf16.mxu0 0
        %312 = vmatpush1.bf16.msra.mxu0 0
        %313 = vmatprep.subr.bf16.mxu0 0
        %314 = vmatpush1.bf16.msra.mxu0 0
        %315 = vmatprep.subr.bf16.mxu0 0
        %316 = vmatpush1.bf16.msra.mxu0 0
        %317 = vmatprep.subr.bf16.mxu0 0
        %318 = vmatpush1.bf16.msra.mxu0 0
        %319 = vmatprep.subr.bf16.mxu0 0
        %320 = vmatpush1.bf16.msra.mxu0 0
        %321 = vmatprep.subr.bf16.mxu0 0
        %322 = vmatpush1.bf16.msra.mxu0 0
        %323 = vmatprep.subr.bf16.mxu0 0
        %324 = vmatpush1.bf16.msra.mxu0 0
        %325 = vmatprep.subr.bf16.mxu0 0
        %326 = vmatpush1.bf16.msra.mxu0 0
        %327 = vmatprep.subr.bf16.mxu0 0
        %328 = vmatpush1.bf16.msra.mxu0 0
        %329 = vmatprep.subr.bf16.mxu0 0
        %330 = vmatpush1.bf16.msra.mxu0 0
        %331 = vmatprep.subr.bf16.mxu0 0
        %332 = vmatpush1.bf16.msra.mxu0 0
        %333 = vmatprep.subr.bf16.mxu0 0
        %334 = vmatpush1.bf16.msra.mxu0 0
        %335 = vmatprep.subr.bf16.mxu0 0
        %336 = vmatpush1.bf16.msra.mxu0 0
        %337 = vmatprep.mubr.bf16.mxu0 0
        %338 = vmatmul.mubr.bf16.gmra.mrb[0].mxu0 %v300
        %v339 = vpop.f32.mrb[0].mxu0
        %v340 = vadd.f32 %v290, %v339
        %v341 = vpop.f32.mrb[0].mxu0
        %v342 = vpop.f32.mrb[0].mxu0
        %v343 = vpop.f32.mrb[0].mxu0
        %344 = vdwg.mxu0
        %s345 = ssub.s32 %s274, 1
        %v346 = vlaneseq
        %v347 = vand.u32 %v346, 127
        %v348 = vstv %s345
        %v349 = vadd.s32 %v348, %v347
        %vm350 = vcmp.ge.s32.totalorder %v349, 0
        %vm351 = vcmp.lt.s32.totalorder %v349, 16
        %vm352 = vmand %vm350, %vm351
        %v353 = vsel %vm352, 1, 0
        %vm354 = vcmp.eq.s32.totalorder %v353, 1
        %v355 = vsel %vm354, %v340, 0.0
        %vm356 = vcmp.ge.f32.partialorder %v355, 0.0
        %v357 = vmul.f32 %v355, 0.1
        %v358 = vsel %vm356, %v355, %v357
        %v359 = vpack.c.bf16 %v358, %v358
        %v361 = vrot.slane %v359, 4
        %362 = vrot.lane.b32.xlu0 %v361, 127
        %v363 = vpop.permute.xlu0 %362
        %364 = vrot.lane.b32.xlu0 %v359, 126
        %v365 = vpop.permute.xlu0 %364
        %v368 = vsel %vm281, %v359, %v363
        %370 = vrot.lane.b32.xlu0 %v276, 126
        %v371 = vpop.permute.xlu0 %370
        %372 = vrot.lane.b32.xlu0 %v273, 124
        %v373 = vpop.permute.xlu0 %372
        %v375 = vsel %vm281, %v273, %v371
        %s376 = scalar_lea.vmem [#allocation7], 8
        %v377 = vld [vmem:[%s376] sm:$0xff]
        %379 = vset.pattern.permute.xlu0 0
        %380 = vperm.xlu0 %379, %v377
        %v381 = vpop.permute.xlu0 %380
        %v384 = vunpack.c.l.b16 %v285
        %v385 = vpack.c.b16 %v384, %v384
        %386 = vrot.lane.b32.xlu0 %v385, 80
        %v387 = vpop.permute.xlu0 %386
        %389 = vrot.lane.b32.xlu0 %v375, 123
        %v390 = vpop.permute.xlu0 %389
        %391 = vrot.lane.b32.xlu0 %v373, 123
        %v392 = vpop.permute.xlu0 %391
        %v395 = vsel %vm298, %v387, 0
        %v398 = vsel %vm281, %v392, 0
        %400 = vmatprep.subr.bf16.mxu0 0
        %401 = vmatpush1.bf16.msra.mxu0 %v390
        %402 = vmatprep.subr.bf16.mxu0 0
        %403 = vmatpush1.bf16.msra.mxu0 %v398
        %404 = vmatprep.subr.bf16.mxu0 0
        %405 = vmatpush1.bf16.msra.mxu0 0
        %406 = vmatprep.subr.bf16.mxu0 0
        %407 = vmatpush1.bf16.msra.mxu0 0
        %408 = vmatprep.subr.bf16.mxu0 0
        %409 = vmatpush1.bf16.msra.mxu0 0
        %410 = vmatprep.subr.bf16.mxu0 0
        %411 = vmatpush1.bf16.msra.mxu0 0
        %412 = vmatprep.subr.bf16.mxu0 0
        %413 = vmatpush1.bf16.msra.mxu0 0
        %414 = vmatprep.subr.bf16.mxu0 0
        %415 = vmatpush1.bf16.msra.mxu0 0
        %416 = vmatprep.subr.bf16.mxu0 0
        %417 = vmatpush1.bf16.msra.mxu0 0
        %418 = vmatprep.subr.bf16.mxu0 0
        %419 = vmatpush1.bf16.msra.mxu0 0
        %420 = vmatprep.subr.bf16.mxu0 0
        %421 = vmatpush1.bf16.msra.mxu0 0
        %422 = vmatprep.subr.bf16.mxu0 0
        %423 = vmatpush1.bf16.msra.mxu0 0
        %424 = vmatprep.subr.bf16.mxu0 0
        %425 = vmatpush1.bf16.msra.mxu0 0
        %426 = vmatprep.subr.bf16.mxu0 0
        %427 = vmatpush1.bf16.msra.mxu0 0
        %428 = vmatprep.subr.bf16.mxu0 0
        %429 = vmatpush1.bf16.msra.mxu0 0
        %430 = vmatprep.subr.bf16.mxu0 0
        %431 = vmatpush1.bf16.msra.mxu0 0
        %432 = vmatprep.mubr.bf16.mxu0 0
        %433 = vmatmul.mubr.bf16.gmra.mrb[0].mxu0 %v395
        %v434 = vpop.f32.mrb[0].mxu0
        %v435 = vadd.f32 %v381, %v434
        %v436 = vpop.f32.mrb[0].mxu0
        %v437 = vpop.f32.mrb[0].mxu0
        %v438 = vpop.f32.mrb[0].mxu0
        %439 = vdwg.mxu0
        %v440 = vsel %vm354, %v435, 0.0
        %vm441 = vcmp.ge.f32.partialorder %v440, 0.0
        %v442 = vmul.f32 %v440, 0.1
        %v443 = vsel %vm441, %v440, %v442
        %v444 = vpack.c.bf16 %v443, %v443
        %v446 = vrot.slane %v444, 4
        %447 = vrot.lane.b32.xlu0 %v446, 127
        %v448 = vpop.permute.xlu0 %447
        %449 = vrot.lane.b32.xlu0 %v444, 126
        %v450 = vpop.permute.xlu0 %449
        %v453 = vsel %vm281, %v444, %v448
        %455 = vrot.lane.b32.xlu0 %v385, 56
        %v456 = vpop.permute.xlu0 %455
        %v458 = vsel %vm298, %v456, 0
        %v461 = vsel %vm281, %v450, 0
        %463 = vmatprep.subr.bf16.mxu0 0
        %464 = vmatpush1.bf16.msra.mxu0 %v453
        %465 = vmatprep.subr.bf16.mxu0 0
        %466 = vmatpush1.bf16.msra.mxu0 %v461
        %467 = vmatprep.subr.bf16.mxu0 0
        %468 = vmatpush1.bf16.msra.mxu0 0
        %469 = vmatprep.subr.bf16.mxu0 0
        %470 = vmatpush1.bf16.msra.mxu0 0
        %471 = vmatprep.subr.bf16.mxu0 0
        %472 = vmatpush1.bf16.msra.mxu0 0
        %473 = vmatprep.subr.bf16.mxu0 0
        %474 = vmatpush1.bf16.msra.mxu0 0
        %475 = vmatprep.subr.bf16.mxu0 0
        %476 = vmatpush1.bf16.msra.mxu0 0
        %477 = vmatprep.subr.bf16.mxu0 0
        %478 = vmatpush1.bf16.msra.mxu0 0
        %479 = vmatprep.subr.bf16.mxu0 0
        %480 = vmatpush1.bf16.msra.mxu0 0
        %481 = vmatprep.subr.bf16.mxu0 0
        %482 = vmatpush1.bf16.msra.mxu0 0
        %483 = vmatprep.subr.bf16.mxu0 0
        %484 = vmatpush1.bf16.msra.mxu0 0
        %485 = vmatprep.subr.bf16.mxu0 0
        %486 = vmatpush1.bf16.msra.mxu0 0
        %487 = vmatprep.subr.bf16.mxu0 0
        %488 = vmatpush1.bf16.msra.mxu0 0
        %489 = vmatprep.subr.bf16.mxu0 0
        %490 = vmatpush1.bf16.msra.mxu0 0
        %491 = vmatprep.subr.bf16.mxu0 0
        %492 = vmatpush1.bf16.msra.mxu0 0
        %493 = vmatprep.subr.bf16.mxu0 0
        %494 = vmatpush1.bf16.msra.mxu0 0
        %495 = vmatprep.mubr.bf16.mxu0 0
        %496 = vmatmul.mubr.bf16.gmra.mrb[0].mxu0 %v458
        %v497 = vpop.f32.mrb[0].mxu0
        %v498 = vadd.f32 0.0, %v497
        %v499 = vpop.f32.mrb[0].mxu0
        %v500 = vpop.f32.mrb[0].mxu0
        %v501 = vpop.f32.mrb[0].mxu0
        %502 = vdwg.mxu0
        %503 = vrot.lane.b32.xlu0 %v385, 104
        %v504 = vpop.permute.xlu0 %503
        %v506 = vsel %vm298, %v504, 0
        %v509 = vsel %vm281, %v365, 0
        %511 = vmatprep.subr.bf16.mxu0 0
        %512 = vmatpush1.bf16.msra.mxu0 %v368
        %513 = vmatprep.subr.bf16.mxu0 0
        %514 = vmatpush1.bf16.msra.mxu0 %v509
        %515 = vmatprep.subr.bf16.mxu0 0
        %516 = vmatpush1.bf16.msra.mxu0 0
        %517 = vmatprep.subr.bf16.mxu0 0
        %518 = vmatpush1.bf16.msra.mxu0 0
        %519 = vmatprep.subr.bf16.mxu0 0
        %520 = vmatpush1.bf16.msra.mxu0 0
        %521 = vmatprep.subr.bf16.mxu0 0
        %522 = vmatpush1.bf16.msra.mxu0 0
        %523 = vmatprep.subr.bf16.mxu0 0
        %524 = vmatpush1.bf16.msra.mxu0 0
        %525 = vmatprep.subr.bf16.mxu0 0
        %526 = vmatpush1.bf16.msra.mxu0 0
        %527 = vmatprep.subr.bf16.mxu0 0
        %528 = vmatpush1.bf16.msra.mxu0 0
        %529 = vmatprep.subr.bf16.mxu0 0
        %530 = vmatpush1.bf16.msra.mxu0 0
        %531 = vmatprep.subr.bf16.mxu0 0
        %532 = vmatpush1.bf16.msra.mxu0 0
        %533 = vmatprep.subr.bf16.mxu0 0
        %534 = vmatpush1.bf16.msra.mxu0 0
        %535 = vmatprep.subr.bf16.mxu0 0
        %536 = vmatpush1.bf16.msra.mxu0 0
        %537 = vmatprep.subr.bf16.mxu0 0
        %538 = vmatpush1.bf16.msra.mxu0 0
        %539 = vmatprep.subr.bf16.mxu0 0
        %540 = vmatpush1.bf16.msra.mxu0 0
        %541 = vmatprep.subr.bf16.mxu0 0
        %542 = vmatpush1.bf16.msra.mxu0 0
        %543 = vmatprep.mubr.bf16.mxu0 0
        %544 = vmatmul.mubr.bf16.gmra.mrb[0].mxu0 %v506
        %v545 = vpop.f32.mrb[0].mxu0
        %v546 = vadd.f32 %v498, %v545
        %v547 = vpop.f32.mrb[0].mxu0
        %v548 = vpop.f32.mrb[0].mxu0
        %v549 = vpop.f32.mrb[0].mxu0
        %550 = vdwg.mxu0
        %551 = vrot.lane.b32.xlu0 %v276, 125
        %v552 = vpop.permute.xlu0 %551
        %v555 = vsel %vm281, %v280, %v552
        %v556 = vld [vmem:[#allocation5] sm:$0xff]
        %s557 = scalar_lea.vmem [#allocation7], 16
        %v558 = vld [vmem:[%s557] sm:$0xff]
        %560 = vset.pattern.permute.xlu0 0
        %561 = vperm.xlu0 %560, %v558
        %v562 = vpop.permute.xlu0 %561
        %v565 = vunpack.c.l.b16 %v556
        %v566 = vunpack.c.h.b16 %v556
        %v567 = vpack.c.b16 %v565, %v565
        %v568 = vpack.c.b16 %v566, %v566
        %569 = vrot.lane.b32.xlu0 %v567, 32
        %v570 = vpop.permute.xlu0 %569
        %571 = vrot.lane.b32.xlu0 %v568, 32
        %v572 = vpop.permute.xlu0 %571
        %vm573 = vcmask 261120
        %v574 = vsel %vm573, %v570, %v572
        %576 = vrot.lane.b32.xlu0 %v284, 124
        %v577 = vpop.permute.xlu0 %576
        %578 = vrot.lane.b32.xlu0 %v555, 124
        %v579 = vpop.permute.xlu0 %578
        %580 = vrot.lane.b32.xlu0 %v373, 124
        %v581 = vpop.permute.xlu0 %580
        %vm584 = vcmask 326656
        %v586 = vsel %vm584, %v574, 0
        %v589 = vsel %vm281, %v581, 0
        %591 = vmatprep.subr.bf16.mxu0 0
        %592 = vmatpush1.bf16.msra.mxu0 %v577
        %593 = vmatprep.subr.bf16.mxu0 0
        %594 = vmatpush1.bf16.msra.mxu0 %v579
        %595 = vmatprep.subr.bf16.mxu0 0
        %596 = vmatpush1.bf16.msra.mxu0 %v589
        %597 = vmatprep.subr.bf16.mxu0 0
        %598 = vmatpush1.bf16.msra.mxu0 0
        %599 = vmatprep.subr.bf16.mxu0 0
        %600 = vmatpush1.bf16.msra.mxu0 0
        %601 = vmatprep.subr.bf16.mxu0 0
        %602 = vmatpush1.bf16.msra.mxu0 0
        %603 = vmatprep.subr.bf16.mxu0 0
        %604 = vmatpush1.bf16.msra.mxu0 0
        %605 = vmatprep.subr.bf16.mxu0 0
        %606 = vmatpush1.bf16.msra.mxu0 0
        %607 = vmatprep.subr.bf16.mxu0 0
        %608 = vmatpush1.bf16.msra.mxu0 0
        %609 = vmatprep.subr.bf16.mxu0 0
        %610 = vmatpush1.bf16.msra.mxu0 0
        %611 = vmatprep.subr.bf16.mxu0 0
        %612 = vmatpush1.bf16.msra.mxu0 0
        %613 = vmatprep.subr.bf16.mxu0 0
        %614 = vmatpush1.bf16.msra.mxu0 0
        %615 = vmatprep.subr.bf16.mxu0 0
        %616 = vmatpush1.bf16.msra.mxu0 0
        %617 = vmatprep.subr.bf16.mxu0 0
        %618 = vmatpush1.bf16.msra.mxu0 0
        %619 = vmatprep.subr.bf16.mxu0 0
        %620 = vmatpush1.bf16.msra.mxu0 0
        %621 = vmatprep.subr.bf16.mxu0 0
        %622 = vmatpush1.bf16.msra.mxu0 0
        %623 = vmatprep.mubr.bf16.mxu0 0
        %624 = vmatmul.mubr.bf16.gmra.mrb[0].mxu0 %v586
        %v625 = vpop.f32.mrb[0].mxu0
        %v626 = vadd.f32 %v562, %v625
        %v627 = vpop.f32.mrb[0].mxu0
        %v628 = vpop.f32.mrb[0].mxu0
        %v629 = vpop.f32.mrb[0].mxu0
        %630 = vdwg.mxu0
        %s631 = ssub.s32 %s274, 2
        %v632 = vstv %s631
        %v633 = vadd.s32 %v632, %v347
        %vm634 = vcmp.ge.s32.totalorder %v633, 0
        %vm635 = vcmp.lt.s32.totalorder %v633, 16
        %vm636 = vmand %vm634, %vm635
        %v637 = vsel %vm636, 1, 0
        %vm638 = vcmp.eq.s32.totalorder %v637, 1
        %v639 = vsel %vm638, %v626, 0.0
        %vm640 = vcmp.ge.f32.partialorder %v639, 0.0
        %v641 = vmul.f32 %v639, 0.1
        %v642 = vsel %vm640, %v639, %v641
        %v643 = vpack.c.bf16 %v642, %v642
        %v645 = vrot.slane %v643, 4
        %646 = vrot.lane.b32.xlu0 %v645, 127
        %v647 = vpop.permute.xlu0 %646
        %648 = vrot.lane.b32.xlu0 %v643, 126
        %v649 = vpop.permute.xlu0 %648
        %650 = vrot.lane.b32.xlu0 %v645, 125
        %v651 = vpop.permute.xlu0 %650
        %652 = vrot.lane.b32.xlu0 %v643, 124
        %v653 = vpop.permute.xlu0 %652
        %v656 = vsel %vm281, %v643, %v647
        %v660 = vsel %vm281, %v649, %v651
        %v662 = vld [vmem:[#allocation5 + $0x4] sm:$0xf]
        %v664 = vunpack.c.l.b16 %v662
        %v665 = vpack.c.b16 %v664, %v664
        %666 = vrot.lane.b32.xlu0 %v665, 120
        %v667 = vpop.permute.xlu0 %666
        %v669 = vsel %vm584, %v667, 0
        %v672 = vsel %vm281, %v653, 0
        %674 = vmatprep.subr.bf16.mxu0 0
        %675 = vmatpush1.bf16.msra.mxu0 %v656
        %676 = vmatprep.subr.bf16.mxu0 0
        %677 = vmatpush1.bf16.msra.mxu0 %v660
        %678 = vmatprep.subr.bf16.mxu0 0
        %679 = vmatpush1.bf16.msra.mxu0 %v672
        %680 = vmatprep.subr.bf16.mxu0 0
        %681 = vmatpush1.bf16.msra.mxu0 0
        %682 = vmatprep.subr.bf16.mxu0 0
        %683 = vmatpush1.bf16.msra.mxu0 0
        %684 = vmatprep.subr.bf16.mxu0 0
        %685 = vmatpush1.bf16.msra.mxu0 0
        %686 = vmatprep.subr.bf16.mxu0 0
        %687 = vmatpush1.bf16.msra.mxu0 0
        %688 = vmatprep.subr.bf16.mxu0 0
        %689 = vmatpush1.bf16.msra.mxu0 0
        %690 = vmatprep.subr.bf16.mxu0 0
        %691 = vmatpush1.bf16.msra.mxu0 0
        %692 = vmatprep.subr.bf16.mxu0 0
        %693 = vmatpush1.bf16.msra.mxu0 0
        %694 = vmatprep.subr.bf16.mxu0 0
        %695 = vmatpush1.bf16.msra.mxu0 0
        %696 = vmatprep.subr.bf16.mxu0 0
        %697 = vmatpush1.bf16.msra.mxu0 0
        %698 = vmatprep.subr.bf16.mxu0 0
        %699 = vmatpush1.bf16.msra.mxu0 0
        %700 = vmatprep.subr.bf16.mxu0 0
        %701 = vmatpush1.bf16.msra.mxu0 0
        %702 = vmatprep.subr.bf16.mxu0 0
        %703 = vmatpush1.bf16.msra.mxu0 0
        %704 = vmatprep.subr.bf16.mxu0 0
        %705 = vmatpush1.bf16.msra.mxu0 0
        %706 = vmatprep.mubr.bf16.mxu0 0
        %707 = vmatmul.mubr.bf16.gmra.mrb[0].mxu0 %v669
        %v708 = vpop.f32.mrb[0].mxu0
        %v709 = vadd.f32 0.0, %v708
        %v710 = vpop.f32.mrb[0].mxu0
        %v711 = vpop.f32.mrb[0].mxu0
        %v712 = vpop.f32.mrb[0].mxu0
        %713 = vdwg.mxu0
        %v714 = vadd.f32 %v546, %v709
        %715 = vrot.lane.b32.xlu0 %v273, 122
        %v716 = vpop.permute.xlu0 %715
        %717 = vrot.lane.b32.xlu0 %v276, 119
        %v718 = vpop.permute.xlu0 %717
        %719 = vrot.lane.b32.xlu0 %v273, 116
        %v720 = vpop.permute.xlu0 %719
        %v721 = vsel %vm281, %v273, %v552
        %v725 = vsel %vm281, %v716, %v718
        %s727 = scalar_lea.vmem [#allocation7], 24
        %v728 = vld [vmem:[%s727] sm:$0xff]
        %730 = vset.pattern.permute.xlu0 0
        %731 = vperm.xlu0 %730, %v728
        %v732 = vpop.permute.xlu0 %731
        %734 = vrot.lane.b32.xlu0 %v665, 80
        %v735 = vpop.permute.xlu0 %734
        %v737 = vsel %vm584, %v735, 0
        %v740 = vsel %vm281, %v720, 0
        %742 = vmatprep.subr.bf16.mxu0 0
        %743 = vmatpush1.bf16.msra.mxu0 %v721
        %744 = vmatprep.subr.bf16.mxu0 0
        %745 = vmatpush1.bf16.msra.mxu0 %v725
        %746 = vmatprep.subr.bf16.mxu0 0
        %747 = vmatpush1.bf16.msra.mxu0 %v740
        %748 = vmatprep.subr.bf16.mxu0 0
        %749 = vmatpush1.bf16.msra.mxu0 0
        %750 = vmatprep.subr.bf16.mxu0 0
        %751 = vmatpush1.bf16.msra.mxu0 0
        %752 = vmatprep.subr.bf16.mxu0 0
        %753 = vmatpush1.bf16.msra.mxu0 0
        %754 = vmatprep.subr.bf16.mxu0 0
        %755 = vmatpush1.bf16.msra.mxu0 0
        %756 = vmatprep.subr.bf16.mxu0 0
        %757 = vmatpush1.bf16.msra.mxu0 0
        %758 = vmatprep.subr.bf16.mxu0 0
        %759 = vmatpush1.bf16.msra.mxu0 0
        %760 = vmatprep.subr.bf16.mxu0 0
        %761 = vmatpush1.bf16.msra.mxu0 0
        %762 = vmatprep.subr.bf16.mxu0 0
        %763 = vmatpush1.bf16.msra.mxu0 0
        %764 = vmatprep.subr.bf16.mxu0 0
        %765 = vmatpush1.bf16.msra.mxu0 0
        %766 = vmatprep.subr.bf16.mxu0 0
        %767 = vmatpush1.bf16.msra.mxu0 0
        %768 = vmatprep.subr.bf16.mxu0 0
        %769 = vmatpush1.bf16.msra.mxu0 0
        %770 = vmatprep.subr.bf16.mxu0 0
        %771 = vmatpush1.bf16.msra.mxu0 0
        %772 = vmatprep.subr.bf16.mxu0 0
        %773 = vmatpush1.bf16.msra.mxu0 0
        %774 = vmatprep.mubr.bf16.mxu0 0
        %775 = vmatmul.mubr.bf16.gmra.mrb[0].mxu0 %v737
        %v776 = vpop.f32.mrb[0].mxu0
        %v777 = vadd.f32 %v732, %v776
        %v778 = vpop.f32.mrb[0].mxu0
        %v779 = vpop.f32.mrb[0].mxu0
        %v780 = vpop.f32.mrb[0].mxu0
        %781 = vdwg.mxu0
        %v782 = vsel %vm638, %v777, 0.0
        %vm783 = vcmp.ge.f32.partialorder %v782, 0.0
        %v784 = vmul.f32 %v782, 0.1
        %v785 = vsel %vm783, %v782, %v784
        %v786 = vpack.c.bf16 %v785, %v785
        %v788 = vrot.slane %v786, 4
        %789 = vrot.lane.b32.xlu0 %v788, 127
        %v790 = vpop.permute.xlu0 %789
        %791 = vrot.lane.b32.xlu0 %v786, 126
        %v792 = vpop.permute.xlu0 %791
        %793 = vrot.lane.b32.xlu0 %v788, 125
        %v794 = vpop.permute.xlu0 %793
        %795 = vrot.lane.b32.xlu0 %v786, 124
        %v796 = vpop.permute.xlu0 %795
        %v799 = vsel %vm281, %v786, %v790
        %v803 = vsel %vm281, %v792, %v794
        %805 = vrot.lane.b32.xlu0 %v665, 40
        %v806 = vpop.permute.xlu0 %805
        %v808 = vsel %vm584, %v806, 0
        %v811 = vsel %vm281, %v796, 0
        %813 = vmatprep.subr.bf16.mxu0 0
        %814 = vmatpush1.bf16.msra.mxu0 %v799
        %815 = vmatprep.subr.bf16.mxu0 0
        %816 = vmatpush1.bf16.msra.mxu0 %v803
        %817 = vmatprep.subr.bf16.mxu0 0
        %818 = vmatpush1.bf16.msra.mxu0 %v811
        %819 = vmatprep.subr.bf16.mxu0 0
        %820 = vmatpush1.bf16.msra.mxu0 0
        %821 = vmatprep.subr.bf16.mxu0 0
        %822 = vmatpush1.bf16.msra.mxu0 0
        %823 = vmatprep.subr.bf16.mxu0 0
        %824 = vmatpush1.bf16.msra.mxu0 0
        %825 = vmatprep.subr.bf16.mxu0 0
        %826 = vmatpush1.bf16.msra.mxu0 0
        %827 = vmatprep.subr.bf16.mxu0 0
        %828 = vmatpush1.bf16.msra.mxu0 0
        %829 = vmatprep.subr.bf16.mxu0 0
        %830 = vmatpush1.bf16.msra.mxu0 0
        %831 = vmatprep.subr.bf16.mxu0 0
        %832 = vmatpush1.bf16.msra.mxu0 0
        %833 = vmatprep.subr.bf16.mxu0 0
        %834 = vmatpush1.bf16.msra.mxu0 0
        %835 = vmatprep.subr.bf16.mxu0 0
        %836 = vmatpush1.bf16.msra.mxu0 0
        %837 = vmatprep.subr.bf16.mxu0 0
        %838 = vmatpush1.bf16.msra.mxu0 0
        %839 = vmatprep.subr.bf16.mxu0 0
        %840 = vmatpush1.bf16.msra.mxu0 0
        %841 = vmatprep.subr.bf16.mxu0 0
        %842 = vmatpush1.bf16.msra.mxu0 0
        %843 = vmatprep.subr.bf16.mxu0 0
        %844 = vmatpush1.bf16.msra.mxu0 0
        %845 = vmatprep.mubr.bf16.mxu0 0
        %846 = vmatmul.mubr.bf16.gmra.mrb[0].mxu0 %v808
        %v847 = vpop.f32.mrb[0].mxu0
        %v848 = vadd.f32 0.0, %v847
        %v849 = vpop.f32.mrb[0].mxu0
        %v850 = vpop.f32.mrb[0].mxu0
        %v851 = vpop.f32.mrb[0].mxu0
        %852 = vdwg.mxu0
        %v853 = vadd.f32 %v714, %v848
        %v854 = vld [vmem:[#allocation8] sm:$0xff]
        %856 = vset.pattern.permute.xlu0 0
        %857 = vperm.xlu0 %856, %v854
        %v858 = vpop.permute.xlu0 %857
        %v860 = vadd.f32 %v853, %v858
        %v861 = vpack.c.bf16 %v860, %v860
        %vm862 = vcmask 125952
        %863 = vst.msk [vmem:[%s266] sm:$0xf] %vm862, %v861
        %s864 = sand.u32 %s134, 1
        %s865 = scalar_lea.sflag [#allocation4], %s864
        %s866 = sand.u32 %s134, 1
        %s867 = smul.addr %s866, 4
        %s868 = scalar_lea.vmem [#allocation10], %s867
        // Predicated region
        $region53: #{_lambda_.8} parent=35 // pred_check
          %p869 = pneg %p144
        $region54: #{_lambda_.8} parent=35 // pred_check_branch
          %871 = sbr.rel (%p869) target = $region56
        $region55: #{_lambda_.8} parent=35 // pred_region
          %s873 = ssub.s32 64, 64
          %874 = vsyncadd %s865, %s873
          %s875 = sadd.s32 %s28, %s27
          %s876 = smul.addr %s875, 64
          %s877 = scalar_lea.hbm %s4, %s876
          %s879 = sshll.u32 %s868, 4
          %s880 = int_to_ptr.vmem [resolvable:$true] %s879
          %882 = dma.vmem_to_hbm [thread:$0]  %s880, 64, %s877, %s865
        $region56: #{_lambda_.8} parent=35 // pred_fallthru
          _
      $region36: #{_lambda_.8} parent=5 // pred_fallthru
        _
      %p883 = scmp.le.s32.totalorder 2, %s18
      // Predicated region
      $region57: #{_lambda_.8} parent=5 // pred_check
        %p884 = pneg %p883
      $region58: #{_lambda_.8} parent=5 // pred_check_branch
        %886 = sbr.rel (%p884) target = $region60
      $region59: #{_lambda_.8} parent=5 // pred_region
        %s887 = ssub.s32 %s18, 2
        // Predicated region
        $region61: #{_lambda_.8} parent=59 // pred_check
          %p888 = pneg %p150
        $region62: #{_lambda_.8} parent=59 // pred_check_branch
          %890 = sbr.rel (%p888) target = $region64
        $region63: #{_lambda_.8} parent=59 // pred_region
          %s891 = sand.u32 %s135, 1
          %s892 = scalar_lea.sflag [#allocation4], %s891
          %s893 = sand.u32 %s135, 1
          %s894 = smul.addr %s893, 4
          %s895 = scalar_lea.vmem [#allocation10], %s894
          %896 = dma.done %s892, 64
        $region64: #{_lambda_.8} parent=59 // pred_fallthru
          _
      $region60: #{_lambda_.8} parent=5 // pred_fallthru
        _
    $region6: #{_lambda_.8} parent=1 // loop_footer
      %s22 = sadd.s32 1, %s18
    $region7: #{_lambda_.8} parent=1 // loop_footer_branch
      %17 = sbr.rel target = $region3
    $region8: #{_lambda_.8} parent=1 // loop_exit
      _
    %897 = vsyncpa [#allocation3], 1
    %s898 = scalar_lea.sflag [#allocation3], 1
    %899 = vsyncpa %s898, 1
    %900 = vsyncpa [#allocation6], 1
    %901 = vsyncpa [#allocation9], 1
    %902 = vsyncpa [#allocation4], 1
    %s903 = scalar_lea.sflag [#allocation4], 1
    %904 = vsyncpa %s903, 1

// kernel: _lambda_.9
$region0: #{_lambda_.9}
  #allocation0 [shape = 'u32[]', space=smem, size = 0x4, offset = 0x4, fixed_abs, tag = 'smem constant byte address 0x4 - core index']
  #allocation1 [shape = 'u32[144,128]{1,0:T(1,128)}', space=vmem, size = 0x12000, scoped, tag = 'internal scratch']
  %s0 = inlined_call_operand.hbm [shape: bf16[2,8,18], index: 0, kind: input, shape index: {}]
  %s1 = inlined_call_operand.hbm [shape: bf16[8,24], index: 1, kind: input, shape index: {}]
  %s2 = inlined_call_operand.hbm [shape: f32[8,1], index: 2, kind: input, shape index: {}]
  %s3 = inlined_call_operand.hbm [shape: bf16[2,8,16], index: 3, kind: output, shape index: {}]
  %s4 = sld [smem:[#allocation0]]
  $region57: #{_lambda_.9} parent=0
    _
  %s6 = ssub.s32 1, %s4
  %s7 = scalar_select 0, %s6, %s4
  $region1: #{_lambda_.9} parent=0
    #allocation2 [shape = 'u8[4096]{0}', space=vmem, size = 0x1000, scoped, tag = 'input window, operand 0']
    #allocation3 [shape = 's32[2]{0}', space=sflag, size = 0x8, scoped, tag = 'scoped memory for _lambda_.9']
    #allocation4 [shape = 's32[2]{0}', space=sflag, size = 0x8, scoped, tag = 'scoped memory for _lambda_.9']
    #allocation5 [shape = 'u8[2048]{0}', space=vmem, size = 0x800, scoped, tag = 'input window, operand 1, single buffered']
    #allocation6 [shape = 's32[1]{0}', space=sflag, size = 0x4, scoped, tag = 'scoped memory for _lambda_.9']
    #allocation7 [shape = 'u8[4096]{0}', space=vmem, size = 0x1000, scoped, tag = 'input window, operand 2, single buffered']
    #allocation8 [shape = 'u8[4096]{0}', space=vmem, size = 0x1000, scoped, tag = 'output window, operand 0']
    %8 = vsyncpa [#allocation3], 0
    %s9 = scalar_lea.sflag [#allocation3], 1
    %10 = vsyncpa %s9, 0
    %11 = vsyncpa [#allocation6], 0
    %12 = vsyncpa [#allocation4], 0
    %s13 = scalar_lea.sflag [#allocation4], 1
    %14 = vsyncpa %s13, 0
    loop: start=0, step=1, limit=4
    $region2: #{_lambda_.9} parent=1 // loop_pre_header
      _
    $region3: #{_lambda_.9} parent=1 // loop_header
      %s16 = sphi 0, %s20
      %p17 = scmp.ge.s32.totalorder %s16, 4
      %s23 = sphi 0, %s35
      %s24 = sphi 0, %s31
      %s25 = sphi 0, %s23
      %s26 = sphi 0, %s24
      %s27 = sphi 0, %s25
      %s28 = sphi 0, %s26
      %s38 = sphi 0, %s40
      %s41 = sphi 0, %s38
      %s42 = sphi 0, %s41
      %s58 = sphi 0, %s42
      %s62 = sphi 0, %s62
      %s64 = sphi 0, %s62
      %s65 = sphi 0, %s64
      %s79 = sphi 0, %s65
      %s83 = sphi 0, %s83
      %s85 = sphi 0, %s83
      %s86 = sphi 0, %s85
      %s100 = sphi 0, %s86
      %s108 = sphi 0, %s110
      %s111 = sphi 0, %s108
      %s112 = sphi 0, %s111
      %s128 = sphi 0, %s112
    $region4: #{_lambda_.9} parent=1 // loop_header_branch
      %19 = sbr.rel (%p17) target = $region8
    $region5: #{_lambda_.9} parent=1 // loop_body
      %s21 = ssub.s32 %s16, 1
      %s22 = ssub.s32 %s16, 2
      %s29 = sadd.s32 1, %s24
      %p30 = scmp.ge.s32.totalorder %s29, 1
      %s31 = scalar_select %p30, 0, %s29
      %s32 = sadd.s32 1, %s23
      %s33 = scalar_select %p30, %s32, %s23
      %p34 = scmp.ge.s32.totalorder %s33, 2
      %s35 = scalar_select %p34, 0, %s33
      %s36 = ssub.s32 %s23, %s35
      %p37 = scmp.eq.s32.totalorder %s36, 0
      %s39 = sadd.s32 %s38, 1
      %s40 = scalar_select %p37, %s38, %s39
      %p43 = pneg %p37
      %p44 = scmp.eq.s32.totalorder %s16, 1
      %p45 = por %p43, %p44
      %p46 = scmp.ne.s32.totalorder %s38, %s41
      %p47 = scmp.eq.s32.totalorder %s16, 0
      %p48 = por %p46, %p47
      %p49 = scmp.ne.s32.totalorder %s38, %s41
      %p50 = scmp.eq.s32.totalorder %s21, 1
      %p51 = por %p49, %p50
      %p52 = scmp.ne.s32.totalorder %s41, %s42
      %p53 = scmp.eq.s32.totalorder %s21, 0
      %p54 = por %p52, %p53
      %p55 = scmp.ne.s32.totalorder %s41, %s42
      %p56 = scmp.eq.s32.totalorder %s22, 1
      %p57 = por %p55, %p56
      %p59 = scmp.ne.s32.totalorder %s42, %s58
      %p60 = scmp.eq.s32.totalorder %s22, 0
      %p61 = por %p59, %p60
      %s63 = sadd.s32 %s62, 1
      %p66 = scmp.eq.s32.totalorder %s16, 1
      %p67 = scmp.ne.s32.totalorder %s62, %s64
      %p68 = scmp.eq.s32.totalorder %s16, 0
      %p69 = por %p67, %p68
      %p70 = scmp.ne.s32.totalorder %s62, %s64
      %p71 = scmp.eq.s32.totalorder %s21, 1
      %p72 = por %p70, %p71
      %p73 = scmp.ne.s32.totalorder %s64, %s65
      %p74 = scmp.eq.s32.totalorder %s21, 0
      %p75 = por %p73, %p74
      %p76 = scmp.ne.s32.totalorder %s64, %s65
      %p77 = scmp.eq.s32.totalorder %s22, 1
      %p78 = por %p76, %p77
      %p80 = scmp.ne.s32.totalorder %s65, %s79
      %p81 = scmp.eq.s32.totalorder %s22, 0
      %p82 = por %p80, %p81
      %s84 = sadd.s32 %s83, 1
      %p87 = scmp.eq.s32.totalorder %s16, 1
      %p88 = scmp.ne.s32.totalorder %s83, %s85
      %p89 = scmp.eq.s32.totalorder %s16, 0
      %p90 = por %p88, %p89
      %p91 = scmp.ne.s32.totalorder %s83, %s85
      %p92 = scmp.eq.s32.totalorder %s21, 1
      %p93 = por %p91, %p92
      %p94 = scmp.ne.s32.totalorder %s85, %s86
      %p95 = scmp.eq.s32.totalorder %s21, 0
      %p96 = por %p94, %p95
      %p97 = scmp.ne.s32.totalorder %s85, %s86
      %p98 = scmp.eq.s32.totalorder %s22, 1
      %p99 = por %p97, %p98
      %p101 = scmp.ne.s32.totalorder %s86, %s100
      %p102 = scmp.eq.s32.totalorder %s22, 0
      %p103 = por %p101, %p102
      %s104 = ssub.s32 %s23, %s35
      %s105 = ssub.s32 %s24, %s31
      %s106 = sor.u32 %s104, %s105
      %p107 = scmp.eq.s32.totalorder %s106, 0
      %s109 = sadd.s32 %s108, 1
      %s110 = scalar_select %p107, %s108, %s109
      %p113 = pneg %p107
      %p114 = scmp.eq.s32.totalorder %s16, 1
      %p115 = por %p113, %p114
      %p116 = scmp.ne.s32.totalorder %s108, %s111
      %p117 = scmp.eq.s32.totalorder %s16, 0
      %p118 = por %p116, %p117
      %p119 = scmp.ne.s32.totalorder %s108, %s111
      %p120 = scmp.eq.s32.totalorder %s21, 1
      %p121 = por %p119, %p120
      %p122 = scmp.ne.s32.totalorder %s111, %s112
      %p123 = scmp.eq.s32.totalorder %s21, 0
      %p124 = por %p122, %p123
      %p125 = scmp.ne.s32.totalorder %s111, %s112
      %p126 = scmp.eq.s32.totalorder %s22, 1
      %p127 = por %p125, %p126
      %p129 = scmp.ne.s32.totalorder %s112, %s128
      %p130 = scmp.eq.s32.totalorder %s22, 0
      %p131 = por %p129, %p130
      %p132 = scmp.le.s32.totalorder 1, %s16
      %p133 = scmp.lt.s32.totalorder %s16, 3
      %p134 = pnand %p132, %p133
      %p135 = pneg %p134
      // Predicated region
      $region9: #{_lambda_.9} parent=5 // pred_check
        _
      $region10: #{_lambda_.9} parent=5 // pred_check_branch
        %137 = sbr.rel (%p134) target = $region12
      $region11: #{_lambda_.9} parent=5 // pred_region
        %s138 = ssub.s32 %s16, 1
        // Predicated region
        $region13: #{_lambda_.9} parent=11 // pred_check
          %p139 = pneg %p75
        $region14: #{_lambda_.9} parent=11 // pred_check_branch
          %141 = sbr.rel (%p139) target = $region16
        $region15: #{_lambda_.9} parent=11 // pred_region
          %s143 = ssub.s32 64, 64
          %144 = vsyncadd [#allocation6], %s143
          %s146 = sshll.u32 [#allocation5], 4
          %s147 = int_to_ptr.vmem [resolvable:$true] %s146
          %149 = dma.hbm_to_vmem [thread:$0]  %s1, 64, %s147, [#allocation6]
        $region16: #{_lambda_.9} parent=11 // pred_fallthru
          _
        // Predicated region
        $region17: #{_lambda_.9} parent=11 // pred_check
          %p150 = pneg %p96
        $region18: #{_lambda_.9} parent=11 // pred_check_branch
          %152 = sbr.rel (%p150) target = $region20
        $region19: #{_lambda_.9} parent=11 // pred_region
          %s154 = ssub.s32 128, 128
          %155 = vsyncadd [#allocation6], %s154
          %s157 = sshll.u32 [#allocation7], 4
          %s158 = int_to_ptr.vmem [resolvable:$true] %s157
          %160 = dma.hbm_to_vmem [thread:$0]  %s2, 128, %s158, [#allocation6]
        $region20: #{_lambda_.9} parent=11 // pred_fallthru
          _
      $region12: #{_lambda_.9} parent=5 // pred_fallthru
        _
      %p161 = scmp.lt.s32.totalorder %s16, 2
      // Predicated region
      $region21: #{_lambda_.9} parent=5 // pred_check
        %p162 = pneg %p161
      $region22: #{_lambda_.9} parent=5 // pred_check_branch
        %164 = sbr.rel (%p162) target = $region24
      $region23: #{_lambda_.9} parent=5 // pred_region
        // Predicated region
        $region25: #{_lambda_.9} parent=23 // pred_check
          %p165 = pneg %p48
        $region26: #{_lambda_.9} parent=23 // pred_check_branch
          %167 = sbr.rel (%p165) target = $region28
        $region27: #{_lambda_.9} parent=23 // pred_region
          %s168 = sand.u32 %s38, 1
          %s169 = scalar_lea.sflag [#allocation3], %s168
          %s170 = sand.u32 %s38, 1
          %s171 = smul.addr %s170, 4
          %s172 = scalar_lea.vmem [#allocation2], %s171
          %s174 = ssub.s32 64, 64
          %175 = vsyncadd %s169, %s174
          %s176 = smul.addr %s23, 64
          %s177 = scalar_lea.hbm %s0, %s176
          %s179 = sshll.u32 %s172, 4
          %s180 = int_to_ptr.vmem [resolvable:$true] %s179
          %182 = dma.hbm_to_vmem [thread:$0]  %s177, 64, %s180, %s169
        $region28: #{_lambda_.9} parent=23 // pred_fallthru
          _
      $region24: #{_lambda_.9} parent=5 // pred_fallthru
        _
      %p183 = scmp.le.s32.totalorder 1, %s16
      %p184 = scmp.lt.s32.totalorder %s16, 3
      %p185 = pnand %p183, %p184
      %p186 = pneg %p185
      // Predicated region
      $region29: #{_lambda_.9} parent=5 // pred_check
        _
      $region30: #{_lambda_.9} parent=5 // pred_check_branch
        %188 = sbr.rel (%p185) target = $region32
      $region31: #{_lambda_.9} parent=5 // pred_region
        %s189 = ssub.s32 %s16, 1
        %s190 = sand.u32 %s41, 1
        %s191 = scalar_lea.sflag [#allocation3], %s190
        %s192 = sand.u32 %s41, 1
        %s193 = smul.addr %s192, 4
        %s194 = scalar_lea.vmem [#allocation2], %s193
        // Predicated region
        $region33: #{_lambda_.9} parent=31 // pred_check
          %p195 = pneg %p54
        $region34: #{_lambda_.9} parent=31 // pred_check_branch
          %197 = sbr.rel (%p195) target = $region36
        $region35: #{_lambda_.9} parent=31 // pred_region
          %198 = dma.done %s191, 64
        $region36: #{_lambda_.9} parent=31 // pred_fallthru
          _
        // Predicated region
        $region37: #{_lambda_.9} parent=31 // pred_check
          %p199 = pneg %p75
        $region38: #{_lambda_.9} parent=31 // pred_check_branch
          %201 = sbr.rel (%p199) target = $region40
        $region39: #{_lambda_.9} parent=31 // pred_region
          %202 = dma.done [#allocation6], 64
        $region40: #{_lambda_.9} parent=31 // pred_fallthru
          _
        // Predicated region
        $region41: #{_lambda_.9} parent=31 // pred_check
          %p203 = pneg %p96
        $region42: #{_lambda_.9} parent=31 // pred_check_branch
          %205 = sbr.rel (%p203) target = $region44
        $region43: #{_lambda_.9} parent=31 // pred_region
          %206 = dma.done [#allocation6], 128
        $region44: #{_lambda_.9} parent=31 // pred_fallthru
          _
        %s207 = sand.u32 %s41, 1
        %s208 = scalar_lea.sflag [#allocation3], %s207
        %s209 = sand.u32 %s41, 1
        %s210 = smul.addr %s209, 4
        %s211 = scalar_lea.vmem [#allocation2], %s210
        %p212 = pneg %p54
        %p213 = pneg %p51
        %p214 = pneg %p75
        %p215 = pneg %p72
        %p216 = pneg %p96
        %p217 = pneg %p93
        %p218 = pneg %p124
        %p219 = pneg %p121
        %s220 = sand.u32 %s111, 1
        %s221 = scalar_lea.sflag [#allocation4], %s220
        %s222 = sand.u32 %s111, 1
        %s223 = smul.addr %s222, 4
        %s224 = scalar_lea.vmem [#allocation8], %s223
        %v226 = vld [vmem:[%s194] sm:$0xf]
        %v227 = vunpack.c.l.bf16 %v226
        %vm228 = vcmp.ge.f32.partialorder %v227, 0.0
        %v229 = vmul.f32 %v227, 0.1
        %v230 = vsel %vm228, %v227, %v229
        %v231 = vpack.c.bf16 %v230, %v230
        %v233 = vrot.slane %v231, 4
        %234 = vrot.lane.b32.xlu0 %v233, 127
        %v235 = vpop.permute.xlu0 %234
        %236 = vrot.lane.b32.xlu0 %v231, 126
        %v237 = vpop.permute.xlu0 %236
        %vm238 = vcmask 1043456
        %v241 = vsel %vm238, %v231, %v235
        %v243 = vld [vmem:[#allocation5] sm:$0xf]
        %v244 = vld [vmem:[#allocation7] sm:$0xff]
        %246 = vset.pattern.permute.xlu0 0
        %247 = vperm.xlu0 %246, %v244
        %v248 = vpop.permute.xlu0 %247
        %vm250 = vcmask 195584
        %v252 = vsel %vm250, %v243, 0
        %v255 = vsel %vm238, %v237, 0
        %257 = vmatprep.subr.bf16.mxu0 0
        %258 = vmatpush1.bf16.msra.mxu0 %v241
        %259 = vmatprep.subr.bf16.mxu0 0
        %260 = vmatpush1.bf16.msra.mxu0 %v255
        %261 = vmatprep.subr.bf16.mxu0 0
        %262 = vmatpush1.bf16.msra.mxu0 0
        %263 = vmatprep.subr.bf16.mxu0 0
        %264 = vmatpush1.bf16.msra.mxu0 0
        %265 = vmatprep.subr.bf16.mxu0 0
        %266 = vmatpush1.bf16.msra.mxu0 0
        %267 = vmatprep.subr.bf16.mxu0 0
        %268 = vmatpush1.bf16.msra.mxu0 0
        %269 = vmatprep.subr.bf16.mxu0 0
        %270 = vmatpush1.bf16.msra.mxu0 0
        %271 = vmatprep.subr.bf16.mxu0 0
        %272 = vmatpush1.bf16.msra.mxu0 0
        %273 = vmatprep.subr.bf16.mxu0 0
        %274 = vmatpush1.bf16.msra.mxu0 0
        %275 = vmatprep.subr.bf16.mxu0 0
        %276 = vmatpush1.bf16.msra.mxu0 0
        %277 = vmatprep.subr.bf16.mxu0 0
        %278 = vmatpush1.bf16.msra.mxu0 0
        %279 = vmatprep.subr.bf16.mxu0 0
        %280 = vmatpush1.bf16.msra.mxu0 0
        %281 = vmatprep.subr.bf16.mxu0 0
        %282 = vmatpush1.bf16.msra.mxu0 0
        %283 = vmatprep.subr.bf16.mxu0 0
        %284 = vmatpush1.bf16.msra.mxu0 0
        %285 = vmatprep.subr.bf16.mxu0 0
        %286 = vmatpush1.bf16.msra.mxu0 0
        %287 = vmatprep.subr.bf16.mxu0 0
        %288 = vmatpush1.bf16.msra.mxu0 0
        %289 = vmatprep.mubr.bf16.mxu0 0
        %290 = vmatmul.mubr.bf16.gmra.mrb[0].mxu0 %v252
        %v291 = vpop.f32.mrb[0].mxu0
        %v292 = vadd.f32 %v248, %v291
        %v293 = vpop.f32.mrb[0].mxu0
        %v294 = vpop.f32.mrb[0].mxu0
        %v295 = vpop.f32.mrb[0].mxu0
        %296 = vdwg.mxu0
        %v297 = vpack.c.bf16 %v292, %v292
        %vm298 = vcmask 125952
        %299 = vst.msk [vmem:[%s224] sm:$0xf] %vm298, %v297
        %s300 = sand.u32 %s111, 1
        %s301 = scalar_lea.sflag [#allocation4], %s300
        %s302 = sand.u32 %s111, 1
        %s303 = smul.addr %s302, 4
        %s304 = scalar_lea.vmem [#allocation8], %s303
        // Predicated region
        $region45: #{_lambda_.9} parent=31 // pred_check
          %p305 = pneg %p121
        $region46: #{_lambda_.9} parent=31 // pred_check_branch
          %307 = sbr.rel (%p305) target = $region48
        $region47: #{_lambda_.9} parent=31 // pred_region
          %s309 = ssub.s32 64, 64
          %310 = vsyncadd %s301, %s309
          %s311 = sadd.s32 %s26, %s25
          %s312 = smul.addr %s311, 64
          %s313 = scalar_lea.hbm %s3, %s312
          %s315 = sshll.u32 %s304, 4
          %s316 = int_to_ptr.vmem [resolvable:$true] %s315
          %318 = dma.vmem_to_hbm [thread:$0]  %s316, 64, %s313, %s301
        $region48: #{_lambda_.9} parent=31 // pred_fallthru
          _
      $region32: #{_lambda_.9} parent=5 // pred_fallthru
        _
      %p319 = scmp.le.s32.totalorder 2, %s16
      // Predicated region
      $region49: #{_lambda_.9} parent=5 // pred_check
        %p320 = pneg %p319
      $region50: #{_lambda_.9} parent=5 // pred_check_branch
        %322 = sbr.rel (%p320) target = $region52
      $region51: #{_lambda_.9} parent=5 // pred_region
        %s323 = ssub.s32 %s16, 2
        // Predicated region
        $region53: #{_lambda_.9} parent=51 // pred_check
          %p324 = pneg %p127
        $region54: #{_lambda_.9} parent=51 // pred_check_branch
          %326 = sbr.rel (%p324) target = $region56
        $region55: #{_lambda_.9} parent=51 // pred_region
          %s327 = sand.u32 %s112, 1
          %s328 = scalar_lea.sflag [#allocation4], %s327
          %s329 = sand.u32 %s112, 1
          %s330 = smul.addr %s329, 4
          %s331 = scalar_lea.vmem [#allocation8], %s330
          %332 = dma.done %s328, 64
        $region56: #{_lambda_.9} parent=51 // pred_fallthru
          _
      $region52: #{_lambda_.9} parent=5 // pred_fallthru
        _
    $region6: #{_lambda_.9} parent=1 // loop_footer
      %s20 = sadd.s32 1, %s16
    $region7: #{_lambda_.9} parent=1 // loop_footer_branch
      %15 = sbr.rel target = $region3
    $region8: #{_lambda_.9} parent=1 // loop_exit
      _
    %333 = vsyncpa [#allocation3], 1
    %s334 = scalar_lea.sflag [#allocation3], 1
    %335 = vsyncpa %s334, 1
    %336 = vsyncpa [#allocation6], 1
    %337 = vsyncpa [#allocation4], 1
    %s338 = scalar_lea.sflag [#allocation4], 1
    %339 = vsyncpa %s338, 1

// kernel: _lambda_.11
$region0: #{_lambda_.11}
  #allocation0 [shape = 'u32[]', space=smem, size = 0x4, offset = 0x4, fixed_abs, tag = 'smem constant byte address 0x4 - core index']
  #allocation1 [shape = 'u32[144,128]{1,0:T(1,128)}', space=vmem, size = 0x12000, scoped, tag = 'internal scratch']
  #allocation2 [shape = 'f32[1,1]{1,0:T(1,128)S(1)}', space=vmem, size = 0x200, scoped, tag = 'scoped memory for _lambda_.11']
  %s0 = inlined_call_operand.hbm [shape: bf16[2,4,38], index: 0, kind: input, shape index: {}]
  %s1 = inlined_call_operand.hbm [shape: f32[4,7], index: 1, kind: input, shape index: {}]
  %s2 = inlined_call_operand.<no memory space> [shape: f32[1,1], index: 2, kind: input, shape index: {}]
  %s3 = inlined_call_operand.hbm [shape: f32[2,1,32], index: 3, kind: output, shape index: {}]
  %s4 = sld [smem:[#allocation0]]
  $region53: #{_lambda_.11} parent=0
    _
  %s6 = ssub.s32 1, %s4
  %s7 = scalar_select 0, %s6, %s4
  %v8 = vstv %s2
  %9 = vst [vmem:[#allocation2] sm:$0x1] %v8
  $region1: #{_lambda_.11} parent=0
    #allocation3 [shape = 'u8[2048]{0}', space=vmem, size = 0x800, scoped, tag = 'input window, operand 0']
    #allocation4 [shape = 's32[2]{0}', space=sflag, size = 0x8, scoped, tag = 'scoped memory for _lambda_.11']
    #allocation5 [shape = 's32[2]{0}', space=sflag, size = 0x8, scoped, tag = 'scoped memory for _lambda_.11']
    #allocation6 [shape = 'u8[2048]{0}', space=vmem, size = 0x800, scoped, tag = 'input window, operand 1, single buffered']
    #allocation7 [shape = 's32[1]{0}', space=sflag, size = 0x4, scoped, tag = 'scoped memory for _lambda_.11']
    #allocation8 [shape = 'u8[1024]{0}', space=vmem, size = 0x400, scoped, tag = 'output window, operand 0']
    %10 = vsyncpa [#allocation4], 0
    %s11 = scalar_lea.sflag [#allocation4], 1
    %12 = vsyncpa %s11, 0
    %13 = vsyncpa [#allocation7], 0
    %14 = vsyncpa [#allocation5], 0
    %s15 = scalar_lea.sflag [#allocation5], 1
    %16 = vsyncpa %s15, 0
    loop: start=0, step=1, limit=4
    $region2: #{_lambda_.11} parent=1 // loop_pre_header
      _
    $region3: #{_lambda_.11} parent=1 // loop_header
      %s18 = sphi 0, %s22
      %p19 = scmp.ge.s32.totalorder %s18, 4
      %s25 = sphi 0, %s37
      %s26 = sphi 0, %s33
      %s27 = sphi 0, %s25
      %s28 = sphi 0, %s26
      %s29 = sphi 0, %s27
      %s30 = sphi 0, %s28
      %s40 = sphi 0, %s42
      %s43 = sphi 0, %s40
      %s44 = sphi 0, %s43
      %s60 = sphi 0, %s44
      %s64 = sphi 0, %s64
      %s66 = sphi 0, %s64
      %s67 = sphi 0, %s66
      %s81 = sphi 0, %s67
      %s85 = sphi 0, %s85
      %s87 = sphi 0, %s85
      %s88 = sphi 0, %s87
      %s102 = sphi 0, %s88
      %s110 = sphi 0, %s112
      %s113 = sphi 0, %s110
      %s114 = sphi 0, %s113
      %s130 = sphi 0, %s114
    $region4: #{_lambda_.11} parent=1 // loop_header_branch
      %21 = sbr.rel (%p19) target = $region8
    $region5: #{_lambda_.11} parent=1 // loop_body
      %s23 = ssub.s32 %s18, 1
      %s24 = ssub.s32 %s18, 2
      %s31 = sadd.s32 1, %s26
      %p32 = scmp.ge.s32.totalorder %s31, 1
      %s33 = scalar_select %p32, 0, %s31
      %s34 = sadd.s32 1, %s25
      %s35 = scalar_select %p32, %s34, %s25
      %p36 = scmp.ge.s32.totalorder %s35, 2
      %s37 = scalar_select %p36, 0, %s35
      %s38 = ssub.s32 %s25, %s37
      %p39 = scmp.eq.s32.totalorder %s38, 0
      %s41 = sadd.s32 %s40, 1
      %s42 = scalar_select %p39, %s40, %s41
      %p45 = pneg %p39
      %p46 = scmp.eq.s32.totalorder %s18, 1
      %p47 = por %p45, %p46
      %p48 = scmp.ne.s32.totalorder %s40, %s43
      %p49 = scmp.eq.s32.totalorder %s18, 0
      %p50 = por %p48, %p49
      %p51 = scmp.ne.s32.totalorder %s40, %s43
      %p52 = scmp.eq.s32.totalorder %s23, 1
      %p53 = por %p51, %p52
      %p54 = scmp.ne.s32.totalorder %s43, %s44
      %p55 = scmp.eq.s32.totalorder %s23, 0
      %p56 = por %p54, %p55
      %p57 = scmp.ne.s32.totalorder %s43, %s44
      %p58 = scmp.eq.s32.totalorder %s24, 1
      %p59 = por %p57, %p58
      %p61 = scmp.ne.s32.totalorder %s44, %s60
      %p62 = scmp.eq.s32.totalorder %s24, 0
      %p63 = por %p61, %p62
      %s65 = sadd.s32 %s64, 1
      %p68 = scmp.eq.s32.totalorder %s18, 1
      %p69 = scmp.ne.s32.totalorder %s64, %s66
      %p70 = scmp.eq.s32.totalorder %s18, 0
      %p71 = por %p69, %p70
      %p72 = scmp.ne.s32.totalorder %s64, %s66
      %p73 = scmp.eq.s32.totalorder %s23, 1
      %p74 = por %p72, %p73
      %p75 = scmp.ne.s32.totalorder %s66, %s67
      %p76 = scmp.eq.s32.totalorder %s23, 0
      %p77 = por %p75, %p76
      %p78 = scmp.ne.s32.totalorder %s66, %s67
      %p79 = scmp.eq.s32.totalorder %s24, 1
      %p80 = por %p78, %p79
      %p82 = scmp.ne.s32.totalorder %s67, %s81
      %p83 = scmp.eq.s32.totalorder %s24, 0
      %p84 = por %p82, %p83
      %s86 = sadd.s32 %s85, 1
      %p89 = scmp.eq.s32.totalorder %s18, 1
      %p90 = scmp.ne.s32.totalorder %s85, %s87
      %p91 = scmp.eq.s32.totalorder %s18, 0
      %p92 = por %p90, %p91
      %p93 = scmp.ne.s32.totalorder %s85, %s87
      %p94 = scmp.eq.s32.totalorder %s23, 1
      %p95 = por %p93, %p94
      %p96 = scmp.ne.s32.totalorder %s87, %s88
      %p97 = scmp.eq.s32.totalorder %s23, 0
      %p98 = por %p96, %p97
      %p99 = scmp.ne.s32.totalorder %s87, %s88
      %p100 = scmp.eq.s32.totalorder %s24, 1
      %p101 = por %p99, %p100
      %p103 = scmp.ne.s32.totalorder %s88, %s102
      %p104 = scmp.eq.s32.totalorder %s24, 0
      %p105 = por %p103, %p104
      %s106 = ssub.s32 %s25, %s37
      %s107 = ssub.s32 %s26, %s33
      %s108 = sor.u32 %s106, %s107
      %p109 = scmp.eq.s32.totalorder %s108, 0
      %s111 = sadd.s32 %s110, 1
      %s112 = scalar_select %p109, %s110, %s111
      %p115 = pneg %p109
      %p116 = scmp.eq.s32.totalorder %s18, 1
      %p117 = por %p115, %p116
      %p118 = scmp.ne.s32.totalorder %s110, %s113
      %p119 = scmp.eq.s32.totalorder %s18, 0
      %p120 = por %p118, %p119
      %p121 = scmp.ne.s32.totalorder %s110, %s113
      %p122 = scmp.eq.s32.totalorder %s23, 1
      %p123 = por %p121, %p122
      %p124 = scmp.ne.s32.totalorder %s113, %s114
      %p125 = scmp.eq.s32.totalorder %s23, 0
      %p126 = por %p124, %p125
      %p127 = scmp.ne.s32.totalorder %s113, %s114
      %p128 = scmp.eq.s32.totalorder %s24, 1
      %p129 = por %p127, %p128
      %p131 = scmp.ne.s32.totalorder %s114, %s130
      %p132 = scmp.eq.s32.totalorder %s24, 0
      %p133 = por %p131, %p132
      %p134 = scmp.le.s32.totalorder 1, %s18
      %p135 = scmp.lt.s32.totalorder %s18, 3
      %p136 = pnand %p134, %p135
      %p137 = pneg %p136
      // Predicated region
      $region9: #{_lambda_.11} parent=5 // pred_check
        _
      $region10: #{_lambda_.11} parent=5 // pred_check_branch
        %139 = sbr.rel (%p136) target = $region12
      $region11: #{_lambda_.11} parent=5 // pred_region
        %s140 = ssub.s32 %s18, 1
        // Predicated region
        $region13: #{_lambda_.11} parent=11 // pred_check
          %p141 = pneg %p77
        $region14: #{_lambda_.11} parent=11 // pred_check_branch
          %143 = sbr.rel (%p141) target = $region16
        $region15: #{_lambda_.11} parent=11 // pred_region
          %s145 = ssub.s32 64, 64
          %146 = vsyncadd [#allocation7], %s145
          %s148 = sshll.u32 [#allocation6], 4
          %s149 = int_to_ptr.vmem [resolvable:$true] %s148
          %151 = dma.hbm_to_vmem [thread:$0]  %s1, 64, %s149, [#allocation7]
        $region16: #{_lambda_.11} parent=11 // pred_fallthru
          _
        // Predicated region
        $region17: #{_lambda_.11} parent=11 // pred_check
          %p152 = pneg %p98
        $region18: #{_lambda_.11} parent=11 // pred_check_branch
          %154 = sbr.rel (%p152) target = $region20
        $region19: #{_lambda_.11} parent=11 // pred_region
          _
        $region20: #{_lambda_.11} parent=11 // pred_fallthru
          _
      $region12: #{_lambda_.11} parent=5 // pred_fallthru
        _
      %p155 = scmp.lt.s32.totalorder %s18, 2
      // Predicated region
      $region21: #{_lambda_.11} parent=5 // pred_check
        %p156 = pneg %p155
      $region22: #{_lambda_.11} parent=5 // pred_check_branch
        %158 = sbr.rel (%p156) target = $region24
      $region23: #{_lambda_.11} parent=5 // pred_region
        // Predicated region
        $region25: #{_lambda_.11} parent=23 // pred_check
          %p159 = pneg %p50
        $region26: #{_lambda_.11} parent=23 // pred_check_branch
          %161 = sbr.rel (%p159) target = $region28
        $region27: #{_lambda_.11} parent=23 // pred_region
          %s162 = sand.u32 %s40, 1
          %s163 = scalar_lea.sflag [#allocation4], %s162
          %s164 = sand.u32 %s40, 1
          %s165 = smul.addr %s164, 2
          %s166 = scalar_lea.vmem [#allocation3], %s165
          %s168 = ssub.s32 32, 32
          %169 = vsyncadd %s163, %s168
          %s170 = smul.addr %s25, 32
          %s171 = scalar_lea.hbm %s0, %s170
          %s173 = sshll.u32 %s166, 4
          %s174 = int_to_ptr.vmem [resolvable:$true] %s173
          %176 = dma.hbm_to_vmem [thread:$0]  %s171, 32, %s174, %s163
        $region28: #{_lambda_.11} parent=23 // pred_fallthru
          _
      $region24: #{_lambda_.11} parent=5 // pred_fallthru
        _
      %p177 = scmp.le.s32.totalorder 1, %s18
      %p178 = scmp.lt.s32.totalorder %s18, 3
      %p179 = pnand %p177, %p178
      %p180 = pneg %p179
      // Predicated region
      $region29: #{_lambda_.11} parent=5 // pred_check
        _
      $region30: #{_lambda_.11} parent=5 // pred_check_branch
        %182 = sbr.rel (%p179) target = $region32
      $region31: #{_lambda_.11} parent=5 // pred_region
        %s183 = ssub.s32 %s18, 1
        %s184 = sand.u32 %s43, 1
        %s185 = scalar_lea.sflag [#allocation4], %s184
        %s186 = sand.u32 %s43, 1
        %s187 = smul.addr %s186, 2
        %s188 = scalar_lea.vmem [#allocation3], %s187
        // Predicated region
        $region33: #{_lambda_.11} parent=31 // pred_check
          %p189 = pneg %p56
        $region34: #{_lambda_.11} parent=31 // pred_check_branch
          %191 = sbr.rel (%p189) target = $region36
        $region35: #{_lambda_.11} parent=31 // pred_region
          %192 = dma.done %s185, 32
        $region36: #{_lambda_.11} parent=31 // pred_fallthru
          _
        // Predicated region
        $region37: #{_lambda_.11} parent=31 // pred_check
          %p193 = pneg %p77
        $region38: #{_lambda_.11} parent=31 // pred_check_branch
          %195 = sbr.rel (%p193) target = $region40
        $region39: #{_lambda_.11} parent=31 // pred_region
          %196 = dma.done [#allocation7], 64
        $region40: #{_lambda_.11} parent=31 // pred_fallthru
          _
        %s197 = sand.u32 %s43, 1
        %s198 = scalar_lea.sflag [#allocation4], %s197
        %s199 = sand.u32 %s43, 1
        %s200 = smul.addr %s199, 2
        %s201 = scalar_lea.vmem [#allocation3], %s200
        %p202 = pneg %p56
        %p203 = pneg %p53
        %p204 = pneg %p77
        %p205 = pneg %p74
        %p206 = pneg %p98
        %p207 = pneg %p95
        %p208 = pneg %p126
        %p209 = pneg %p123
        %s210 = sand.u32 %s113, 1
        %s211 = scalar_lea.sflag [#allocation5], %s210
        %s212 = sand.u32 %s113, 1
        %s213 = scalar_lea.vmem [#allocation8], %s212
        %v214 = vld [vmem:[%s188] sm:$0x3]
        %v215 = vunpack.c.l.bf16 %v214
        %vm216 = vcmp.ge.f32.partialorder %v215, 0.0
        %v217 = vmul.f32 %v215, 0.1
        %v218 = vsel %vm216, %v215, %v217
        %v219 = vpack.c.bf16 %v218, %v218
        %v220 = vunpack.c.l.bf16 %v219
        %v221 = vld [vmem:[#allocation6] sm:$0xf]
        %223 = vset.pattern.permute.xlu0 0
        %224 = vperm.xlu0 %223, %v221
        %v225 = vpop.permute.xlu0 %224
        %v227 = vmul.f32 %v225, %v220
        %228 = vset.pattern.permute.xlu0 1
        %229 = vperm.xlu0 %228, %v221
        %v230 = vpop.permute.xlu0 %229
        %v232 = vmul.f32 %v230, %v220
        %234 = vrot.lane.b32.xlu0 %v232, 127
        %v235 = vpop.permute.xlu0 %234
        %v237 = vadd.f32 %v227, %v235
        %238 = vset.pattern.permute.xlu0 2
        %239 = vperm.xlu0 %238, %v221
        %v240 = vpop.permute.xlu0 %239
        %v242 = vmul.f32 %v240, %v220
        %244 = vrot.lane.b32.xlu0 %v242, 126
        %v245 = vpop.permute.xlu0 %244
        %v247 = vadd.f32 %v237, %v245
        %248 = vset.pattern.permute.xlu0 3
        %249 = vperm.xlu0 %248, %v221
        %v250 = vpop.permute.xlu0 %249
        %v252 = vmul.f32 %v250, %v220
        %254 = vrot.lane.b32.xlu0 %v252, 125
        %v255 = vpop.permute.xlu0 %254
        %v257 = vadd.f32 %v247, %v255
        %258 = vset.pattern.permute.xlu0 4
        %259 = vperm.xlu0 %258, %v221
        %v260 = vpop.permute.xlu0 %259
        %v262 = vmul.f32 %v260, %v220
        %264 = vrot.lane.b32.xlu0 %v262, 124
        %v265 = vpop.permute.xlu0 %264
        %v267 = vadd.f32 %v257, %v265
        %268 = vset.pattern.permute.xlu0 5
        %269 = vperm.xlu0 %268, %v221
        %v270 = vpop.permute.xlu0 %269
        %v272 = vmul.f32 %v270, %v220
        %274 = vrot.lane.b32.xlu0 %v272, 123
        %v275 = vpop.permute.xlu0 %274
        %v277 = vadd.f32 %v267, %v275
        %278 = vset.pattern.permute.xlu0 6
        %279 = vperm.xlu0 %278, %v221
        %v280 = vpop.permute.xlu0 %279
        %v282 = vmul.f32 %v280, %v220
        %284 = vrot.lane.b32.xlu0 %v282, 122
        %v285 = vpop.permute.xlu0 %284
        %v287 = vadd.f32 %v277, %v285
        %vm288 = vcmask 257024
        %v289 = vsel %vm288, %v287, 0.0
        %v290 = vrot.slane %v289, 4
        %v291 = vadd.f32 %v289, %v290
        %v292 = vrot.slane %v291, 2
        %v293 = vadd.f32 %v291, %v292
        %v294 = vrot.slane %v293, 1
        %v295 = vadd.f32 %v293, %v294
        %v296 = vld [vmem:[#allocation2] sm:$0x1]
        %298 = vset.pattern.permute.xlu0 0
        %299 = vperm.xlu0 %298, %v296
        %v300 = vpop.permute.xlu0 %299
        %v302 = vlaneseq
        %v303 = vshrl.u32 %v302, 7
        %v304 = vsub.s32 0, %v303
        %v305 = vrot.slane %v300, %v304
        %v306 = vadd.f32 %v295, %v305
        %v307 = vtanh.pop %v306
        %vm308 = vcmask 253952
        %309 = vst.msk [vmem:[%s213] sm:$0x1] %vm308, %v307
        %s310 = sand.u32 %s113, 1
        %s311 = scalar_lea.sflag [#allocation5], %s310
        %s312 = sand.u32 %s113, 1
        %s313 = scalar_lea.vmem [#allocation8], %s312
        // Predicated region
        $region41: #{_lambda_.11} parent=31 // pred_check
          %p314 = pneg %p123
        $region42: #{_lambda_.11} parent=31 // pred_check_branch
          %316 = sbr.rel (%p314) target = $region44
        $region43: #{_lambda_.11} parent=31 // pred_region
          %s318 = ssub.s32 16, 16
          %319 = vsyncadd %s311, %s318
          %s320 = sadd.s32 %s28, %s27
          %s321 = smul.addr %s320, 16
          %s322 = scalar_lea.hbm %s3, %s321
          %s324 = sshll.u32 %s313, 4
          %s325 = int_to_ptr.vmem [resolvable:$true] %s324
          %327 = dma.vmem_to_hbm [thread:$0]  %s325, 16, %s322, %s311
        $region44: #{_lambda_.11} parent=31 // pred_fallthru
          _
      $region32: #{_lambda_.11} parent=5 // pred_fallthru
        _
      %p328 = scmp.le.s32.totalorder 2, %s18
      // Predicated region
      $region45: #{_lambda_.11} parent=5 // pred_check
        %p329 = pneg %p328
      $region46: #{_lambda_.11} parent=5 // pred_check_branch
        %331 = sbr.rel (%p329) target = $region48
      $region47: #{_lambda_.11} parent=5 // pred_region
        %s332 = ssub.s32 %s18, 2
        // Predicated region
        $region49: #{_lambda_.11} parent=47 // pred_check
          %p333 = pneg %p129
        $region50: #{_lambda_.11} parent=47 // pred_check_branch
          %335 = sbr.rel (%p333) target = $region52
        $region51: #{_lambda_.11} parent=47 // pred_region
          %s336 = sand.u32 %s114, 1
          %s337 = scalar_lea.sflag [#allocation5], %s336
          %s338 = sand.u32 %s114, 1
          %s339 = scalar_lea.vmem [#allocation8], %s338
          %340 = dma.done %s337, 16
        $region52: #{_lambda_.11} parent=47 // pred_fallthru
          _
      $region48: #{_lambda_.11} parent=5 // pred_fallthru
        _
    $region6: #{_lambda_.11} parent=1 // loop_footer
      %s22 = sadd.s32 1, %s18
    $region7: #{_lambda_.11} parent=1 // loop_footer_branch
      %17 = sbr.rel target = $region3
    $region8: #{_lambda_.11} parent=1 // loop_exit
      _
    %341 = vsyncpa [#allocation4], 1
    %s342 = scalar_lea.sflag [#allocation4], 1
    %343 = vsyncpa %s342, 1
    %344 = vsyncpa [#allocation7], 1
    %345 = vsyncpa [#allocation5], 1
    %s346 = scalar_lea.sflag [#allocation5], 1
    %347 = vsyncpa %s346, 1

// kernel: _lambda_.10
$region0: #{_lambda_.10}
  #allocation0 [shape = 'u32[]', space=smem, size = 0x4, offset = 0x4, fixed_abs, tag = 'smem constant byte address 0x4 - core index']
  #allocation1 [shape = 'u32[144,128]{1,0:T(1,128)}', space=vmem, size = 0x12000, scoped, tag = 'internal scratch']
  %s0 = inlined_call_operand.hbm [shape: bf16[2,4,48], index: 0, kind: input, shape index: {}]
  %s1 = inlined_call_operand.hbm [shape: bf16[4,128], index: 1, kind: input, shape index: {}]
  %s2 = inlined_call_operand.hbm [shape: f32[4,4,1], index: 2, kind: input, shape index: {}]
  %s3 = inlined_call_operand.hbm [shape: f32[4,1], index: 3, kind: input, shape index: {}]
  %s4 = inlined_call_operand.hbm [shape: bf16[2,4,32], index: 4, kind: output, shape index: {}]
  %s5 = sld [smem:[#allocation0]]
  $region65: #{_lambda_.10} parent=0
    _
  %s7 = ssub.s32 1, %s5
  %s8 = scalar_select 0, %s7, %s5
  $region1: #{_lambda_.10} parent=0
    #allocation2 [shape = 'u8[2048]{0}', space=vmem, size = 0x800, scoped, tag = 'input window, operand 0']
    #allocation3 [shape = 's32[2]{0}', space=sflag, size = 0x8, scoped, tag = 'scoped memory for _lambda_.10']
    #allocation4 [shape = 's32[2]{0}', space=sflag, size = 0x8, scoped, tag = 'scoped memory for _lambda_.10']
    #allocation5 [shape = 'u8[1024]{0}', space=vmem, size = 0x400, scoped, tag = 'input window, operand 1, single buffered']
    #allocation6 [shape = 's32[1]{0}', space=sflag, size = 0x4, scoped, tag = 'scoped memory for _lambda_.10']
    #allocation7 [shape = 'u8[8192]{0}', space=vmem, size = 0x2000, scoped, tag = 'input window, operand 2, single buffered']
    #allocation8 [shape = 'u8[2048]{0}', space=vmem, size = 0x800, scoped, tag = 'input window, operand 3, single buffered']
    #allocation9 [shape = 's32[1]{0}', space=sflag, size = 0x4, scoped, tag = 'scoped memory for _lambda_.10']
    #allocation10 [shape = 'u8[2048]{0}', space=vmem, size = 0x800, scoped, tag = 'output window, operand 0']
    %9 = vsyncpa [#allocation3], 0
    %s10 = scalar_lea.sflag [#allocation3], 1
    %11 = vsyncpa %s10, 0
    %12 = vsyncpa [#allocation6], 0
    %13 = vsyncpa [#allocation9], 0
    %14 = vsyncpa [#allocation4], 0
    %s15 = scalar_lea.sflag [#allocation4], 1
    %16 = vsyncpa %s15, 0
    loop: start=0, step=1, limit=4
    $region2: #{_lambda_.10} parent=1 // loop_pre_header
      _
    $region3: #{_lambda_.10} parent=1 // loop_header
      %s18 = sphi 0, %s22
      %p19 = scmp.ge.s32.totalorder %s18, 4
      %s25 = sphi 0, %s37
      %s26 = sphi 0, %s33
      %s27 = sphi 0, %s25
      %s28 = sphi 0, %s26
      %s29 = sphi 0, %s27
      %s30 = sphi 0, %s28
      %s40 = sphi 0, %s42
      %s43 = sphi 0, %s40
      %s44 = sphi 0, %s43
      %s60 = sphi 0, %s44
      %s64 = sphi 0, %s64
      %s66 = sphi 0, %s64
      %s67 = sphi 0, %s66
      %s81 = sphi 0, %s67
      %s85 = sphi 0, %s85
      %s87 = sphi 0, %s85
      %s88 = sphi 0, %s87
      %s102 = sphi 0, %s88
      %s106 = sphi 0, %s106
      %s108 = sphi 0, %s106
      %s109 = sphi 0, %s108
      %s123 = sphi 0, %s109
      %s131 = sphi 0, %s133
      %s134 = sphi 0, %s131
      %s135 = sphi 0, %s134
      %s151 = sphi 0, %s135
    $region4: #{_lambda_.10} parent=1 // loop_header_branch
      %21 = sbr.rel (%p19) target = $region8
    $region5: #{_lambda_.10} parent=1 // loop_body
      %s23 = ssub.s32 %s18, 1
      %s24 = ssub.s32 %s18, 2
      %s31 = sadd.s32 1, %s26
      %p32 = scmp.ge.s32.totalorder %s31, 1
      %s33 = scalar_select %p32, 0, %s31
      %s34 = sadd.s32 1, %s25
      %s35 = scalar_select %p32, %s34, %s25
      %p36 = scmp.ge.s32.totalorder %s35, 2
      %s37 = scalar_select %p36, 0, %s35
      %s38 = ssub.s32 %s25, %s37
      %p39 = scmp.eq.s32.totalorder %s38, 0
      %s41 = sadd.s32 %s40, 1
      %s42 = scalar_select %p39, %s40, %s41
      %p45 = pneg %p39
      %p46 = scmp.eq.s32.totalorder %s18, 1
      %p47 = por %p45, %p46
      %p48 = scmp.ne.s32.totalorder %s40, %s43
      %p49 = scmp.eq.s32.totalorder %s18, 0
      %p50 = por %p48, %p49
      %p51 = scmp.ne.s32.totalorder %s40, %s43
      %p52 = scmp.eq.s32.totalorder %s23, 1
      %p53 = por %p51, %p52
      %p54 = scmp.ne.s32.totalorder %s43, %s44
      %p55 = scmp.eq.s32.totalorder %s23, 0
      %p56 = por %p54, %p55
      %p57 = scmp.ne.s32.totalorder %s43, %s44
      %p58 = scmp.eq.s32.totalorder %s24, 1
      %p59 = por %p57, %p58
      %p61 = scmp.ne.s32.totalorder %s44, %s60
      %p62 = scmp.eq.s32.totalorder %s24, 0
      %p63 = por %p61, %p62
      %s65 = sadd.s32 %s64, 1
      %p68 = scmp.eq.s32.totalorder %s18, 1
      %p69 = scmp.ne.s32.totalorder %s64, %s66
      %p70 = scmp.eq.s32.totalorder %s18, 0
      %p71 = por %p69, %p70
      %p72 = scmp.ne.s32.totalorder %s64, %s66
      %p73 = scmp.eq.s32.totalorder %s23, 1
      %p74 = por %p72, %p73
      %p75 = scmp.ne.s32.totalorder %s66, %s67
      %p76 = scmp.eq.s32.totalorder %s23, 0
      %p77 = por %p75, %p76
      %p78 = scmp.ne.s32.totalorder %s66, %s67
      %p79 = scmp.eq.s32.totalorder %s24, 1
      %p80 = por %p78, %p79
      %p82 = scmp.ne.s32.totalorder %s67, %s81
      %p83 = scmp.eq.s32.totalorder %s24, 0
      %p84 = por %p82, %p83
      %s86 = sadd.s32 %s85, 1
      %p89 = scmp.eq.s32.totalorder %s18, 1
      %p90 = scmp.ne.s32.totalorder %s85, %s87
      %p91 = scmp.eq.s32.totalorder %s18, 0
      %p92 = por %p90, %p91
      %p93 = scmp.ne.s32.totalorder %s85, %s87
      %p94 = scmp.eq.s32.totalorder %s23, 1
      %p95 = por %p93, %p94
      %p96 = scmp.ne.s32.totalorder %s87, %s88
      %p97 = scmp.eq.s32.totalorder %s23, 0
      %p98 = por %p96, %p97
      %p99 = scmp.ne.s32.totalorder %s87, %s88
      %p100 = scmp.eq.s32.totalorder %s24, 1
      %p101 = por %p99, %p100
      %p103 = scmp.ne.s32.totalorder %s88, %s102
      %p104 = scmp.eq.s32.totalorder %s24, 0
      %p105 = por %p103, %p104
      %s107 = sadd.s32 %s106, 1
      %p110 = scmp.eq.s32.totalorder %s18, 1
      %p111 = scmp.ne.s32.totalorder %s106, %s108
      %p112 = scmp.eq.s32.totalorder %s18, 0
      %p113 = por %p111, %p112
      %p114 = scmp.ne.s32.totalorder %s106, %s108
      %p115 = scmp.eq.s32.totalorder %s23, 1
      %p116 = por %p114, %p115
      %p117 = scmp.ne.s32.totalorder %s108, %s109
      %p118 = scmp.eq.s32.totalorder %s23, 0
      %p119 = por %p117, %p118
      %p120 = scmp.ne.s32.totalorder %s108, %s109
      %p121 = scmp.eq.s32.totalorder %s24, 1
      %p122 = por %p120, %p121
      %p124 = scmp.ne.s32.totalorder %s109, %s123
      %p125 = scmp.eq.s32.totalorder %s24, 0
      %p126 = por %p124, %p125
      %s127 = ssub.s32 %s25, %s37
      %s128 = ssub.s32 %s26, %s33
      %s129 = sor.u32 %s127, %s128
      %p130 = scmp.eq.s32.totalorder %s129, 0
      %s132 = sadd.s32 %s131, 1
      %s133 = scalar_select %p130, %s131, %s132
      %p136 = pneg %p130
      %p137 = scmp.eq.s32.totalorder %s18, 1
      %p138 = por %p136, %p137
      %p139 = scmp.ne.s32.totalorder %s131, %s134
      %p140 = scmp.eq.s32.totalorder %s18, 0
      %p141 = por %p139, %p140
      %p142 = scmp.ne.s32.totalorder %s131, %s134
      %p143 = scmp.eq.s32.totalorder %s23, 1
      %p144 = por %p142, %p143
      %p145 = scmp.ne.s32.totalorder %s134, %s135
      %p146 = scmp.eq.s32.totalorder %s23, 0
      %p147 = por %p145, %p146
      %p148 = scmp.ne.s32.totalorder %s134, %s135
      %p149 = scmp.eq.s32.totalorder %s24, 1
      %p150 = por %p148, %p149
      %p152 = scmp.ne.s32.totalorder %s135, %s151
      %p153 = scmp.eq.s32.totalorder %s24, 0
      %p154 = por %p152, %p153
      %p155 = scmp.le.s32.totalorder 1, %s18
      %p156 = scmp.lt.s32.totalorder %s18, 3
      %p157 = pnand %p155, %p156
      %p158 = pneg %p157
      // Predicated region
      $region9: #{_lambda_.10} parent=5 // pred_check
        _
      $region10: #{_lambda_.10} parent=5 // pred_check_branch
        %160 = sbr.rel (%p157) target = $region12
      $region11: #{_lambda_.10} parent=5 // pred_region
        %s161 = ssub.s32 %s18, 1
        // Predicated region
        $region13: #{_lambda_.10} parent=11 // pred_check
          %p162 = pneg %p77
        $region14: #{_lambda_.10} parent=11 // pred_check_branch
          %164 = sbr.rel (%p162) target = $region16
        $region15: #{_lambda_.10} parent=11 // pred_region
          %s166 = ssub.s32 32, 32
          %167 = vsyncadd [#allocation6], %s166
          %s169 = sshll.u32 [#allocation5], 4
          %s170 = int_to_ptr.vmem [resolvable:$true] %s169
          %172 = dma.hbm_to_vmem [thread:$0]  %s1, 32, %s170, [#allocation6]
        $region16: #{_lambda_.10} parent=11 // pred_fallthru
          _
        // Predicated region
        $region17: #{_lambda_.10} parent=11 // pred_check
          %p173 = pneg %p98
        $region18: #{_lambda_.10} parent=11 // pred_check_branch
          %175 = sbr.rel (%p173) target = $region20
        $region19: #{_lambda_.10} parent=11 // pred_region
          %s177 = ssub.s32 256, 256
          %178 = vsyncadd [#allocation6], %s177
          %s179 = sshll.u32 [#allocation7], 4
          %s180 = int_to_ptr.vmem [resolvable:$true] %s179
          %185 = dma.hbm_to_vmem [thread:$0]  %s2, 256, %s180, [#allocation6], 64, 64, 4
        $region20: #{_lambda_.10} parent=11 // pred_fallthru
          _
        // Predicated region
        $region21: #{_lambda_.10} parent=11 // pred_check
          %p186 = pneg %p119
        $region22: #{_lambda_.10} parent=11 // pred_check_branch
          %188 = sbr.rel (%p186) target = $region24
        $region23: #{_lambda_.10} parent=11 // pred_region
          %s190 = ssub.s32 64, 64
          %191 = vsyncadd [#allocation9], %s190
          %s193 = sshll.u32 [#allocation8], 4
          %s194 = int_to_ptr.vmem [resolvable:$true] %s193
          %196 = dma.hbm_to_vmem [thread:$0]  %s3, 64, %s194, [#allocation9]
        $region24: #{_lambda_.10} parent=11 // pred_fallthru
          _
      $region12: #{_lambda_.10} parent=5 // pred_fallthru
        _
      %p197 = scmp.lt.s32.totalorder %s18, 2
      // Predicated region
      $region25: #{_lambda_.10} parent=5 // pred_check
        %p198 = pneg %p197
      $region26: #{_lambda_.10} parent=5 // pred_check_branch
        %200 = sbr.rel (%p198) target = $region28
      $region27: #{_lambda_.10} parent=5 // pred_region
        // Predicated region
        $region29: #{_lambda_.10} parent=27 // pred_check
          %p201 = pneg %p50
        $region30: #{_lambda_.10} parent=27 // pred_check_branch
          %203 = sbr.rel (%p201) target = $region32
        $region31: #{_lambda_.10} parent=27 // pred_region
          %s204 = sand.u32 %s40, 1
          %s205 = scalar_lea.sflag [#allocation3], %s204
          %s206 = sand.u32 %s40, 1
          %s207 = smul.addr %s206, 2
          %s208 = scalar_lea.vmem [#allocation2], %s207
          %s210 = ssub.s32 32, 32
          %211 = vsyncadd %s205, %s210
          %s212 = smul.addr %s25, 32
          %s213 = scalar_lea.hbm %s0, %s212
          %s215 = sshll.u32 %s208, 4
          %s216 = int_to_ptr.vmem [resolvable:$true] %s215
          %218 = dma.hbm_to_vmem [thread:$0]  %s213, 32, %s216, %s205
        $region32: #{_lambda_.10} parent=27 // pred_fallthru
          _
      $region28: #{_lambda_.10} parent=5 // pred_fallthru
        _
      %p219 = scmp.le.s32.totalorder 1, %s18
      %p220 = scmp.lt.s32.totalorder %s18, 3
      %p221 = pnand %p219, %p220
      %p222 = pneg %p221
      // Predicated region
      $region33: #{_lambda_.10} parent=5 // pred_check
        _
      $region34: #{_lambda_.10} parent=5 // pred_check_branch
        %224 = sbr.rel (%p221) target = $region36
      $region35: #{_lambda_.10} parent=5 // pred_region
        %s225 = ssub.s32 %s18, 1
        %s226 = sand.u32 %s43, 1
        %s227 = scalar_lea.sflag [#allocation3], %s226
        %s228 = sand.u32 %s43, 1
        %s229 = smul.addr %s228, 2
        %s230 = scalar_lea.vmem [#allocation2], %s229
        // Predicated region
        $region37: #{_lambda_.10} parent=35 // pred_check
          %p231 = pneg %p56
        $region38: #{_lambda_.10} parent=35 // pred_check_branch
          %233 = sbr.rel (%p231) target = $region40
        $region39: #{_lambda_.10} parent=35 // pred_region
          %234 = dma.done %s227, 32
        $region40: #{_lambda_.10} parent=35 // pred_fallthru
          _
        // Predicated region
        $region41: #{_lambda_.10} parent=35 // pred_check
          %p235 = pneg %p77
        $region42: #{_lambda_.10} parent=35 // pred_check_branch
          %237 = sbr.rel (%p235) target = $region44
        $region43: #{_lambda_.10} parent=35 // pred_region
          %238 = dma.done [#allocation6], 32
        $region44: #{_lambda_.10} parent=35 // pred_fallthru
          _
        // Predicated region
        $region45: #{_lambda_.10} parent=35 // pred_check
          %p239 = pneg %p98
        $region46: #{_lambda_.10} parent=35 // pred_check_branch
          %241 = sbr.rel (%p239) target = $region48
        $region47: #{_lambda_.10} parent=35 // pred_region
          %242 = dma.done [#allocation6], 256
        $region48: #{_lambda_.10} parent=35 // pred_fallthru
          _
        // Predicated region
        $region49: #{_lambda_.10} parent=35 // pred_check
          %p243 = pneg %p119
        $region50: #{_lambda_.10} parent=35 // pred_check_branch
          %245 = sbr.rel (%p243) target = $region52
        $region51: #{_lambda_.10} parent=35 // pred_region
          %246 = dma.done [#allocation9], 64
        $region52: #{_lambda_.10} parent=35 // pred_fallthru
          _
        %s247 = sand.u32 %s43, 1
        %s248 = scalar_lea.sflag [#allocation3], %s247
        %s249 = sand.u32 %s43, 1
        %s250 = smul.addr %s249, 2
        %s251 = scalar_lea.vmem [#allocation2], %s250
        %p252 = pneg %p56
        %p253 = pneg %p53
        %p254 = pneg %p77
        %p255 = pneg %p74
        %p256 = pneg %p98
        %p257 = pneg %p95
        %p258 = pneg %p119
        %p259 = pneg %p116
        %p260 = pneg %p147
        %p261 = pneg %p144
        %s262 = sand.u32 %s134, 1
        %s263 = scalar_lea.sflag [#allocation4], %s262
        %s264 = sand.u32 %s134, 1
        %s265 = smul.addr %s264, 2
        %s266 = scalar_lea.vmem [#allocation10], %s265
        %v268 = vld [vmem:[%s230] sm:$0x3]
        %v269 = vunpack.c.l.bf16 %v268
        %vm270 = vcmp.ge.f32.partialorder %v269, 0.0
        %v271 = vmul.f32 %v269, 0.1
        %v272 = vsel %vm270, %v269, %v271
        %v273 = vpack.c.bf16 %v272, %v272
        %s274 = smul.u32 %s28, 32
        %v276 = vrot.slane %v273, 6
        %277 = vrot.lane.b32.xlu0 %v276, 127
        %v278 = vpop.permute.xlu0 %277
        %v279 = vrot.slane %v273, 4
        %280 = vrot.lane.b32.xlu0 %v279, 126
        %v281 = vpop.permute.xlu0 %280
        %vm282 = vcmask 1041408
        %v285 = vsel %vm282, %v273, %v278
        %vm286 = vcmask 1043456
        %v288 = vsel %vm286, %v285, %v281
        %v289 = vld [vmem:[#allocation5] sm:$0x3]
        %v290 = vld [vmem:[#allocation7] sm:$0xf]
        %292 = vset.pattern.permute.xlu0 0
        %293 = vperm.xlu0 %292, %v290
        %v294 = vpop.permute.xlu0 %293
        %297 = vrot.lane.b32.xlu0 %v288, 122
        %v298 = vpop.permute.xlu0 %297
        %vm299 = vcmask 97280
        %v301 = vsel %vm299, %v289, 0
        %vm303 = vcmask 1045504
        %v305 = vsel %vm303, %v298, 0
        %307 = vmatprep.subr.bf16.mxu0 0
        %308 = vmatpush1.bf16.msra.mxu0 %v305
        %309 = vmatprep.subr.bf16.mxu0 0
        %310 = vmatpush1.bf16.msra.mxu0 0
        %311 = vmatprep.subr.bf16.mxu0 0
        %312 = vmatpush1.bf16.msra.mxu0 0
        %313 = vmatprep.subr.bf16.mxu0 0
        %314 = vmatpush1.bf16.msra.mxu0 0
        %315 = vmatprep.subr.bf16.mxu0 0
        %316 = vmatpush1.bf16.msra.mxu0 0
        %317 = vmatprep.subr.bf16.mxu0 0
        %318 = vmatpush1.bf16.msra.mxu0 0
        %319 = vmatprep.subr.bf16.mxu0 0
        %320 = vmatpush1.bf16.msra.mxu0 0
        %321 = vmatprep.subr.bf16.mxu0 0
        %322 = vmatpush1.bf16.msra.mxu0 0
        %323 = vmatprep.subr.bf16.mxu0 0
        %324 = vmatpush1.bf16.msra.mxu0 0
        %325 = vmatprep.subr.bf16.mxu0 0
        %326 = vmatpush1.bf16.msra.mxu0 0
        %327 = vmatprep.subr.bf16.mxu0 0
        %328 = vmatpush1.bf16.msra.mxu0 0
        %329 = vmatprep.subr.bf16.mxu0 0
        %330 = vmatpush1.bf16.msra.mxu0 0
        %331 = vmatprep.subr.bf16.mxu0 0
        %332 = vmatpush1.bf16.msra.mxu0 0
        %333 = vmatprep.subr.bf16.mxu0 0
        %334 = vmatpush1.bf16.msra.mxu0 0
        %335 = vmatprep.subr.bf16.mxu0 0
        %336 = vmatpush1.bf16.msra.mxu0 0
        %337 = vmatprep.subr.bf16.mxu0 0
        %338 = vmatpush1.bf16.msra.mxu0 0
        %339 = vmatprep.mubr.bf16.mxu0 0
        %340 = vmatmul.mubr.bf16.gmra.mrb[0].mxu0 %v301
        %v341 = vpop.f32.mrb[0].mxu0
        %v342 = vadd.f32 %v294, %v341
        %v343 = vpop.f32.mrb[0].mxu0
        %v344 = vpop.f32.mrb[0].mxu0
        %v345 = vpop.f32.mrb[0].mxu0
        %346 = vdwg.mxu0
        %s347 = ssub.s32 %s274, 1
        %v348 = vlaneseq
        %v349 = vand.u32 %v348, 127
        %v350 = vstv %s347
        %v351 = vadd.s32 %v350, %v349
        %vm352 = vcmp.ge.s32.totalorder %v351, 0
        %vm353 = vcmp.lt.s32.totalorder %v351, 32
        %vm354 = vmand %vm352, %vm353
        %v355 = vsel %vm354, 1, 0
        %vm356 = vcmp.eq.s32.totalorder %v355, 1
        %v357 = vsel %vm356, %v342, 0.0
        %vm358 = vcmp.ge.f32.partialorder %v357, 0.0
        %v359 = vmul.f32 %v357, 0.1
        %v360 = vsel %vm358, %v357, %v359
        %v361 = vpack.c.bf16 %v360, %v360
        %v363 = vrot.slane %v361, 6
        %364 = vrot.lane.b32.xlu0 %v363, 127
        %v365 = vpop.permute.xlu0 %364
        %v366 = vrot.slane %v361, 4
        %367 = vrot.lane.b32.xlu0 %v366, 126
        %v368 = vpop.permute.xlu0 %367
        %v371 = vsel %vm282, %v361, %v365
        %v373 = vsel %vm286, %v371, %v368
        %374 = vrot.lane.b32.xlu0 %v276, 126
        %v375 = vpop.permute.xlu0 %374
        %376 = vrot.lane.b32.xlu0 %v279, 124
        %v377 = vpop.permute.xlu0 %376
        %v379 = vsel %vm282, %v273, %v375
        %v381 = vsel %vm286, %v379, %v377
        %s382 = scalar_lea.vmem [#allocation7], 4
        %v383 = vld [vmem:[%s382] sm:$0xf]
        %385 = vset.pattern.permute.xlu0 0
        %386 = vperm.xlu0 %385, %v383
        %v387 = vpop.permute.xlu0 %386
        %v391 = vunpack.c.l.s4 1983009808
        %v392 = vunpack.c.0.s8 %v391
        %v393 = vlaneseq
        %v394 = vshrl.u32 %v393, 7
        %v395 = vsub.s32 %v392, %v394
        %v396 = vrot.slane %v289, %v395
        %397 = vrot.lane.b32.xlu0 %v396, 104
        %v398 = vpop.permute.xlu0 %397
        %400 = vrot.lane.b32.xlu0 %v381, 123
        %v401 = vpop.permute.xlu0 %400
        %v403 = vsel %vm299, %v398, 0
        %v406 = vsel %vm303, %v401, 0
        %408 = vmatprep.subr.bf16.mxu0 0
        %409 = vmatpush1.bf16.msra.mxu0 %v406
        %410 = vmatprep.subr.bf16.mxu0 0
        %411 = vmatpush1.bf16.msra.mxu0 0
        %412 = vmatprep.subr.bf16.mxu0 0
        %413 = vmatpush1.bf16.msra.mxu0 0
        %414 = vmatprep.subr.bf16.mxu0 0
        %415 = vmatpush1.bf16.msra.mxu0 0
        %416 = vmatprep.subr.bf16.mxu0 0
        %417 = vmatpush1.bf16.msra.mxu0 0
        %418 = vmatprep.subr.bf16.mxu0 0
        %419 = vmatpush1.bf16.msra.mxu0 0
        %420 = vmatprep.subr.bf16.mxu0 0
        %421 = vmatpush1.bf16.msra.mxu0 0
        %422 = vmatprep.subr.bf16.mxu0 0
        %423 = vmatpush1.bf16.msra.mxu0 0
        %424 = vmatprep.subr.bf16.mxu0 0
        %425 = vmatpush1.bf16.msra.mxu0 0
        %426 = vmatprep.subr.bf16.mxu0 0
        %427 = vmatpush1.bf16.msra.mxu0 0
        %428 = vmatprep.subr.bf16.mxu0 0
        %429 = vmatpush1.bf16.msra.mxu0 0
        %430 = vmatprep.subr.bf16.mxu0 0
        %431 = vmatpush1.bf16.msra.mxu0 0
        %432 = vmatprep.subr.bf16.mxu0 0
        %433 = vmatpush1.bf16.msra.mxu0 0
        %434 = vmatprep.subr.bf16.mxu0 0
        %435 = vmatpush1.bf16.msra.mxu0 0
        %436 = vmatprep.subr.bf16.mxu0 0
        %437 = vmatpush1.bf16.msra.mxu0 0
        %438 = vmatprep.subr.bf16.mxu0 0
        %439 = vmatpush1.bf16.msra.mxu0 0
        %440 = vmatprep.mubr.bf16.mxu0 0
        %441 = vmatmul.mubr.bf16.gmra.mrb[0].mxu0 %v403
        %v442 = vpop.f32.mrb[0].mxu0
        %v443 = vadd.f32 %v387, %v442
        %v444 = vpop.f32.mrb[0].mxu0
        %v445 = vpop.f32.mrb[0].mxu0
        %v446 = vpop.f32.mrb[0].mxu0
        %447 = vdwg.mxu0
        %v448 = vsel %vm356, %v443, 0.0
        %vm449 = vcmp.ge.f32.partialorder %v448, 0.0
        %v450 = vmul.f32 %v448, 0.1
        %v451 = vsel %vm449, %v448, %v450
        %v452 = vpack.c.bf16 %v451, %v451
        %v454 = vrot.slane %v452, 6
        %455 = vrot.lane.b32.xlu0 %v454, 127
        %v456 = vpop.permute.xlu0 %455
        %v457 = vrot.slane %v452, 4
        %458 = vrot.lane.b32.xlu0 %v457, 126
        %v459 = vpop.permute.xlu0 %458
        %v462 = vsel %vm282, %v452, %v456
        %v464 = vsel %vm286, %v462, %v459
        %v465 = vld [vmem:[#allocation5] sm:$0x3]
        %v468 = vunpack.c.l.s4 1983009808
        %v469 = vunpack.c.0.s8 %v468
        %v470 = vlaneseq
        %v471 = vshrl.u32 %v470, 7
        %v472 = vsub.s32 %v469, %v471
        %v473 = vrot.slane %v465, %v472
        %474 = vrot.lane.b32.xlu0 %v473, 92
        %v475 = vpop.permute.xlu0 %474
        %v477 = vsel %vm299, %v475, 0
        %v479 = vsel %vm303, %v464, 0
        %481 = vmatprep.subr.bf16.mxu0 0
        %482 = vmatpush1.bf16.msra.mxu0 %v479
        %483 = vmatprep.subr.bf16.mxu0 0
        %484 = vmatpush1.bf16.msra.mxu0 0
        %485 = vmatprep.subr.bf16.mxu0 0
        %486 = vmatpush1.bf16.msra.mxu0 0
        %487 = vmatprep.subr.bf16.mxu0 0
        %488 = vmatpush1.bf16.msra.mxu0 0
        %489 = vmatprep.subr.bf16.mxu0 0
        %490 = vmatpush1.bf16.msra.mxu0 0
        %491 = vmatprep.subr.bf16.mxu0 0
        %492 = vmatpush1.bf16.msra.mxu0 0
        %493 = vmatprep.subr.bf16.mxu0 0
        %494 = vmatpush1.bf16.msra.mxu0 0
        %495 = vmatprep.subr.bf16.mxu0 0
        %496 = vmatpush1.bf16.msra.mxu0 0
        %497 = vmatprep.subr.bf16.mxu0 0
        %498 = vmatpush1.bf16.msra.mxu0 0
        %499 = vmatprep.subr.bf16.mxu0 0
        %500 = vmatpush1.bf16.msra.mxu0 0
        %501 = vmatprep.subr.bf16.mxu0 0
        %502 = vmatpush1.bf16.msra.mxu0 0
        %503 = vmatprep.subr.bf16.mxu0 0
        %504 = vmatpush1.bf16.msra.mxu0 0
        %505 = vmatprep.subr.bf16.mxu0 0
        %506 = vmatpush1.bf16.msra.mxu0 0
        %507 = vmatprep.subr.bf16.mxu0 0
        %508 = vmatpush1.bf16.msra.mxu0 0
        %509 = vmatprep.subr.bf16.mxu0 0
        %510 = vmatpush1.bf16.msra.mxu0 0
        %511 = vmatprep.subr.bf16.mxu0 0
        %512 = vmatpush1.bf16.msra.mxu0 0
        %513 = vmatprep.mubr.bf16.mxu0 0
        %514 = vmatmul.mubr.bf16.gmra.mrb[0].mxu0 %v477
        %v515 = vpop.f32.mrb[0].mxu0
        %v516 = vadd.f32 0.0, %v515
        %v517 = vpop.f32.mrb[0].mxu0
        %v518 = vpop.f32.mrb[0].mxu0
        %v519 = vpop.f32.mrb[0].mxu0
        %520 = vdwg.mxu0
        %521 = vrot.lane.b32.xlu0 %v396, 116
        %v522 = vpop.permute.xlu0 %521
        %v524 = vsel %vm299, %v522, 0
        %v526 = vsel %vm303, %v373, 0
        %528 = vmatprep.subr.bf16.mxu0 0
        %529 = vmatpush1.bf16.msra.mxu0 %v526
        %530 = vmatprep.subr.bf16.mxu0 0
        %531 = vmatpush1.bf16.msra.mxu0 0
        %532 = vmatprep.subr.bf16.mxu0 0
        %533 = vmatpush1.bf16.msra.mxu0 0
        %534 = vmatprep.subr.bf16.mxu0 0
        %535 = vmatpush1.bf16.msra.mxu0 0
        %536 = vmatprep.subr.bf16.mxu0 0
        %537 = vmatpush1.bf16.msra.mxu0 0
        %538 = vmatprep.subr.bf16.mxu0 0
        %539 = vmatpush1.bf16.msra.mxu0 0
        %540 = vmatprep.subr.bf16.mxu0 0
        %541 = vmatpush1.bf16.msra.mxu0 0
        %542 = vmatprep.subr.bf16.mxu0 0
        %543 = vmatpush1.bf16.msra.mxu0 0
        %544 = vmatprep.subr.bf16.mxu0 0
        %545 = vmatpush1.bf16.msra.mxu0 0
        %546 = vmatprep.subr.bf16.mxu0 0
        %547 = vmatpush1.bf16.msra.mxu0 0
        %548 = vmatprep.subr.bf16.mxu0 0
        %549 = vmatpush1.bf16.msra.mxu0 0
        %550 = vmatprep.subr.bf16.mxu0 0
        %551 = vmatpush1.bf16.msra.mxu0 0
        %552 = vmatprep.subr.bf16.mxu0 0
        %553 = vmatpush1.bf16.msra.mxu0 0
        %554 = vmatprep.subr.bf16.mxu0 0
        %555 = vmatpush1.bf16.msra.mxu0 0
        %556 = vmatprep.subr.bf16.mxu0 0
        %557 = vmatpush1.bf16.msra.mxu0 0
        %558 = vmatprep.subr.bf16.mxu0 0
        %559 = vmatpush1.bf16.msra.mxu0 0
        %560 = vmatprep.mubr.bf16.mxu0 0
        %561 = vmatmul.mubr.bf16.gmra.mrb[0].mxu0 %v524
        %v562 = vpop.f32.mrb[0].mxu0
        %v563 = vadd.f32 %v516, %v562
        %v564 = vpop.f32.mrb[0].mxu0
        %v565 = vpop.f32.mrb[0].mxu0
        %v566 = vpop.f32.mrb[0].mxu0
        %567 = vdwg.mxu0
        %v568 = vrot.slane %v273, 2
        %569 = vrot.lane.b32.xlu0 %v568, 125
        %v570 = vpop.permute.xlu0 %569
        %571 = vrot.lane.b32.xlu0 %v273, 124
        %v572 = vpop.permute.xlu0 %571
        %v574 = vsel %vm303, %v288, %v570
        %v575 = vld [vmem:[#allocation5] sm:$0x3]
        %s576 = scalar_lea.vmem [#allocation7], 8
        %v577 = vld [vmem:[%s576] sm:$0xf]
        %579 = vset.pattern.permute.xlu0 0
        %580 = vperm.xlu0 %579, %v577
        %v581 = vpop.permute.xlu0 %580
        %v585 = vunpack.c.l.s4 1983009808
        %v586 = vunpack.c.0.s8 %v585
        %v587 = vlaneseq
        %v588 = vshrl.u32 %v587, 7
        %v589 = vsub.s32 %v586, %v588
        %v590 = vrot.slane %v575, %v589
        %591 = vrot.lane.b32.xlu0 %v590, 80
        %v592 = vpop.permute.xlu0 %591
        %594 = vrot.lane.b32.xlu0 %v574, 124
        %v595 = vpop.permute.xlu0 %594
        %596 = vrot.lane.b32.xlu0 %v572, 124
        %v597 = vpop.permute.xlu0 %596
        %vm599 = vcmask 162816
        %v601 = vsel %vm599, %v592, 0
        %v604 = vsel %vm282, %v597, 0
        %606 = vmatprep.subr.bf16.mxu0 0
        %607 = vmatpush1.bf16.msra.mxu0 %v595
        %608 = vmatprep.subr.bf16.mxu0 0
        %609 = vmatpush1.bf16.msra.mxu0 %v604
        %610 = vmatprep.subr.bf16.mxu0 0
        %611 = vmatpush1.bf16.msra.mxu0 0
        %612 = vmatprep.subr.bf16.mxu0 0
        %613 = vmatpush1.bf16.msra.mxu0 0
        %614 = vmatprep.subr.bf16.mxu0 0
        %615 = vmatpush1.bf16.msra.mxu0 0
        %616 = vmatprep.subr.bf16.mxu0 0
        %617 = vmatpush1.bf16.msra.mxu0 0
        %618 = vmatprep.subr.bf16.mxu0 0
        %619 = vmatpush1.bf16.msra.mxu0 0
        %620 = vmatprep.subr.bf16.mxu0 0
        %621 = vmatpush1.bf16.msra.mxu0 0
        %622 = vmatprep.subr.bf16.mxu0 0
        %623 = vmatpush1.bf16.msra.mxu0 0
        %624 = vmatprep.subr.bf16.mxu0 0
        %625 = vmatpush1.bf16.msra.mxu0 0
        %626 = vmatprep.subr.bf16.mxu0 0
        %627 = vmatpush1.bf16.msra.mxu0 0
        %628 = vmatprep.subr.bf16.mxu0 0
        %629 = vmatpush1.bf16.msra.mxu0 0
        %630 = vmatprep.subr.bf16.mxu0 0
        %631 = vmatpush1.bf16.msra.mxu0 0
        %632 = vmatprep.subr.bf16.mxu0 0
        %633 = vmatpush1.bf16.msra.mxu0 0
        %634 = vmatprep.subr.bf16.mxu0 0
        %635 = vmatpush1.bf16.msra.mxu0 0
        %636 = vmatprep.subr.bf16.mxu0 0
        %637 = vmatpush1.bf16.msra.mxu0 0
        %638 = vmatprep.mubr.bf16.mxu0 0
        %639 = vmatmul.mubr.bf16.gmra.mrb[0].mxu0 %v601
        %v640 = vpop.f32.mrb[0].mxu0
        %v641 = vadd.f32 %v581, %v640
        %v642 = vpop.f32.mrb[0].mxu0
        %v643 = vpop.f32.mrb[0].mxu0
        %v644 = vpop.f32.mrb[0].mxu0
        %645 = vdwg.mxu0
        %s646 = ssub.s32 %s274, 2
        %v647 = vstv %s646
        %v648 = vadd.s32 %v647, %v349
        %vm649 = vcmp.ge.s32.totalorder %v648, 0
        %vm650 = vcmp.lt.s32.totalorder %v648, 32
        %vm651 = vmand %vm649, %vm650
        %v652 = vsel %vm651, 1, 0
        %vm653 = vcmp.eq.s32.totalorder %v652, 1
        %v654 = vsel %vm653, %v641, 0.0
        %vm655 = vcmp.ge.f32.partialorder %v654, 0.0
        %v656 = vmul.f32 %v654, 0.1
        %v657 = vsel %vm655, %v654, %v656
        %v658 = vpack.c.bf16 %v657, %v657
        %v660 = vrot.slane %v658, 6
        %661 = vrot.lane.b32.xlu0 %v660, 127
        %v662 = vpop.permute.xlu0 %661
        %v663 = vrot.slane %v658, 4
        %664 = vrot.lane.b32.xlu0 %v663, 126
        %v665 = vpop.permute.xlu0 %664
        %v666 = vrot.slane %v658, 2
        %667 = vrot.lane.b32.xlu0 %v666, 125
        %v668 = vpop.permute.xlu0 %667
        %669 = vrot.lane.b32.xlu0 %v658, 124
        %v670 = vpop.permute.xlu0 %669
        %v673 = vsel %vm282, %v658, %v662
        %v675 = vsel %vm286, %v673, %v665
        %v677 = vsel %vm303, %v675, %v668
        %v679 = vld [vmem:[#allocation5] sm:$0x3]
        %v682 = vunpack.c.l.s4 1983009808
        %v683 = vunpack.c.0.s8 %v682
        %v684 = vlaneseq
        %v685 = vshrl.u32 %v684, 7
        %v686 = vsub.s32 %v683, %v685
        %v687 = vrot.slane %v679, %v686
        %688 = vrot.lane.b32.xlu0 %v687, 60
        %v689 = vpop.permute.xlu0 %688
        %v691 = vsel %vm599, %v689, 0
        %v694 = vsel %vm282, %v670, 0
        %696 = vmatprep.subr.bf16.mxu0 0
        %697 = vmatpush1.bf16.msra.mxu0 %v677
        %698 = vmatprep.subr.bf16.mxu0 0
        %699 = vmatpush1.bf16.msra.mxu0 %v694
        %700 = vmatprep.subr.bf16.mxu0 0
        %701 = vmatpush1.bf16.msra.mxu0 0
        %702 = vmatprep.subr.bf16.mxu0 0
        %703 = vmatpush1.bf16.msra.mxu0 0
        %704 = vmatprep.subr.bf16.mxu0 0
        %705 = vmatpush1.bf16.msra.mxu0 0
        %706 = vmatprep.subr.bf16.mxu0 0
        %707 = vmatpush1.bf16.msra.mxu0 0
        %708 = vmatprep.subr.bf16.mxu0 0
        %709 = vmatpush1.bf16.msra.mxu0 0
        %710 = vmatprep.subr.bf16.mxu0 0
        %711 = vmatpush1.bf16.msra.mxu0 0
        %712 = vmatprep.subr.bf16.mxu0 0
        %713 = vmatpush1.bf16.msra.mxu0 0
        %714 = vmatprep.subr.bf16.mxu0 0
        %715 = vmatpush1.bf16.msra.mxu0 0
        %716 = vmatprep.subr.bf16.mxu0 0
        %717 = vmatpush1.bf16.msra.mxu0 0
        %718 = vmatprep.subr.bf16.mxu0 0
        %719 = vmatpush1.bf16.msra.mxu0 0
        %720 = vmatprep.subr.bf16.mxu0 0
        %721 = vmatpush1.bf16.msra.mxu0 0
        %722 = vmatprep.subr.bf16.mxu0 0
        %723 = vmatpush1.bf16.msra.mxu0 0
        %724 = vmatprep.subr.bf16.mxu0 0
        %725 = vmatpush1.bf16.msra.mxu0 0
        %726 = vmatprep.subr.bf16.mxu0 0
        %727 = vmatpush1.bf16.msra.mxu0 0
        %728 = vmatprep.mubr.bf16.mxu0 0
        %729 = vmatmul.mubr.bf16.gmra.mrb[0].mxu0 %v691
        %v730 = vpop.f32.mrb[0].mxu0
        %v731 = vadd.f32 0.0, %v730
        %v732 = vpop.f32.mrb[0].mxu0
        %v733 = vpop.f32.mrb[0].mxu0
        %v734 = vpop.f32.mrb[0].mxu0
        %735 = vdwg.mxu0
        %v736 = vadd.f32 %v563, %v731
        %737 = vrot.lane.b32.xlu0 %v276, 125
        %v738 = vpop.permute.xlu0 %737
        %739 = vrot.lane.b32.xlu0 %v279, 122
        %v740 = vpop.permute.xlu0 %739
        %741 = vrot.lane.b32.xlu0 %v568, 119
        %v742 = vpop.permute.xlu0 %741
        %743 = vrot.lane.b32.xlu0 %v273, 116
        %v744 = vpop.permute.xlu0 %743
        %v746 = vsel %vm282, %v273, %v738
        %v748 = vsel %vm286, %v746, %v740
        %v750 = vsel %vm303, %v748, %v742
        %v752 = vld [vmem:[#allocation5] sm:$0x3]
        %s753 = scalar_lea.vmem [#allocation7], 12
        %v754 = vld [vmem:[%s753] sm:$0xf]
        %756 = vset.pattern.permute.xlu0 0
        %757 = vperm.xlu0 %756, %v754
        %v758 = vpop.permute.xlu0 %757
        %v762 = vunpack.c.l.s4 1983009808
        %v763 = vunpack.c.0.s8 %v762
        %v764 = vlaneseq
        %v765 = vshrl.u32 %v764, 7
        %v766 = vsub.s32 %v763, %v765
        %v767 = vrot.slane %v752, %v766
        %768 = vrot.lane.b32.xlu0 %v767, 40
        %v769 = vpop.permute.xlu0 %768
        %v771 = vsel %vm599, %v769, 0
        %v774 = vsel %vm282, %v744, 0
        %776 = vmatprep.subr.bf16.mxu0 0
        %777 = vmatpush1.bf16.msra.mxu0 %v750
        %778 = vmatprep.subr.bf16.mxu0 0
        %779 = vmatpush1.bf16.msra.mxu0 %v774
        %780 = vmatprep.subr.bf16.mxu0 0
        %781 = vmatpush1.bf16.msra.mxu0 0
        %782 = vmatprep.subr.bf16.mxu0 0
        %783 = vmatpush1.bf16.msra.mxu0 0
        %784 = vmatprep.subr.bf16.mxu0 0
        %785 = vmatpush1.bf16.msra.mxu0 0
        %786 = vmatprep.subr.bf16.mxu0 0
        %787 = vmatpush1.bf16.msra.mxu0 0
        %788 = vmatprep.subr.bf16.mxu0 0
        %789 = vmatpush1.bf16.msra.mxu0 0
        %790 = vmatprep.subr.bf16.mxu0 0
        %791 = vmatpush1.bf16.msra.mxu0 0
        %792 = vmatprep.subr.bf16.mxu0 0
        %793 = vmatpush1.bf16.msra.mxu0 0
        %794 = vmatprep.subr.bf16.mxu0 0
        %795 = vmatpush1.bf16.msra.mxu0 0
        %796 = vmatprep.subr.bf16.mxu0 0
        %797 = vmatpush1.bf16.msra.mxu0 0
        %798 = vmatprep.subr.bf16.mxu0 0
        %799 = vmatpush1.bf16.msra.mxu0 0
        %800 = vmatprep.subr.bf16.mxu0 0
        %801 = vmatpush1.bf16.msra.mxu0 0
        %802 = vmatprep.subr.bf16.mxu0 0
        %803 = vmatpush1.bf16.msra.mxu0 0
        %804 = vmatprep.subr.bf16.mxu0 0
        %805 = vmatpush1.bf16.msra.mxu0 0
        %806 = vmatprep.subr.bf16.mxu0 0
        %807 = vmatpush1.bf16.msra.mxu0 0
        %808 = vmatprep.mubr.bf16.mxu0 0
        %809 = vmatmul.mubr.bf16.gmra.mrb[0].mxu0 %v771
        %v810 = vpop.f32.mrb[0].mxu0
        %v811 = vadd.f32 %v758, %v810
        %v812 = vpop.f32.mrb[0].mxu0
        %v813 = vpop.f32.mrb[0].mxu0
        %v814 = vpop.f32.mrb[0].mxu0
        %815 = vdwg.mxu0
        %v816 = vsel %vm653, %v811, 0.0
        %vm817 = vcmp.ge.f32.partialorder %v816, 0.0
        %v818 = vmul.f32 %v816, 0.1
        %v819 = vsel %vm817, %v816, %v818
        %v820 = vpack.c.bf16 %v819, %v819
        %v822 = vrot.slane %v820, 6
        %823 = vrot.lane.b32.xlu0 %v822, 127
        %v824 = vpop.permute.xlu0 %823
        %v825 = vrot.slane %v820, 4
        %826 = vrot.lane.b32.xlu0 %v825, 126
        %v827 = vpop.permute.xlu0 %826
        %v828 = vrot.slane %v820, 2
        %829 = vrot.lane.b32.xlu0 %v828, 125
        %v830 = vpop.permute.xlu0 %829
        %831 = vrot.lane.b32.xlu0 %v820, 124
        %v832 = vpop.permute.xlu0 %831
        %v835 = vsel %vm282, %v820, %v824
        %v837 = vsel %vm286, %v835, %v827
        %v839 = vsel %vm303, %v837, %v830
        %v841 = vld [vmem:[#allocation5] sm:$0x3]
        %v844 = vunpack.c.l.s4 1983009808
        %v845 = vunpack.c.0.s8 %v844
        %v846 = vlaneseq
        %v847 = vshrl.u32 %v846, 7
        %v848 = vsub.s32 %v845, %v847
        %v849 = vrot.slane %v841, %v848
        %850 = vrot.lane.b32.xlu0 %v849, 20
        %v851 = vpop.permute.xlu0 %850
        %v853 = vsel %vm599, %v851, 0
        %v856 = vsel %vm282, %v832, 0
        %858 = vmatprep.subr.bf16.mxu0 0
        %859 = vmatpush1.bf16.msra.mxu0 %v839
        %860 = vmatprep.subr.bf16.mxu0 0
        %861 = vmatpush1.bf16.msra.mxu0 %v856
        %862 = vmatprep.subr.bf16.mxu0 0
        %863 = vmatpush1.bf16.msra.mxu0 0
        %864 = vmatprep.subr.bf16.mxu0 0
        %865 = vmatpush1.bf16.msra.mxu0 0
        %866 = vmatprep.subr.bf16.mxu0 0
        %867 = vmatpush1.bf16.msra.mxu0 0
        %868 = vmatprep.subr.bf16.mxu0 0
        %869 = vmatpush1.bf16.msra.mxu0 0
        %870 = vmatprep.subr.bf16.mxu0 0
        %871 = vmatpush1.bf16.msra.mxu0 0
        %872 = vmatprep.subr.bf16.mxu0 0
        %873 = vmatpush1.bf16.msra.mxu0 0
        %874 = vmatprep.subr.bf16.mxu0 0
        %875 = vmatpush1.bf16.msra.mxu0 0
        %876 = vmatprep.subr.bf16.mxu0 0
        %877 = vmatpush1.bf16.msra.mxu0 0
        %878 = vmatprep.subr.bf16.mxu0 0
        %879 = vmatpush1.bf16.msra.mxu0 0
        %880 = vmatprep.subr.bf16.mxu0 0
        %881 = vmatpush1.bf16.msra.mxu0 0
        %882 = vmatprep.subr.bf16.mxu0 0
        %883 = vmatpush1.bf16.msra.mxu0 0
        %884 = vmatprep.subr.bf16.mxu0 0
        %885 = vmatpush1.bf16.msra.mxu0 0
        %886 = vmatprep.subr.bf16.mxu0 0
        %887 = vmatpush1.bf16.msra.mxu0 0
        %888 = vmatprep.subr.bf16.mxu0 0
        %889 = vmatpush1.bf16.msra.mxu0 0
        %890 = vmatprep.mubr.bf16.mxu0 0
        %891 = vmatmul.mubr.bf16.gmra.mrb[0].mxu0 %v853
        %v892 = vpop.f32.mrb[0].mxu0
        %v893 = vadd.f32 0.0, %v892
        %v894 = vpop.f32.mrb[0].mxu0
        %v895 = vpop.f32.mrb[0].mxu0
        %v896 = vpop.f32.mrb[0].mxu0
        %897 = vdwg.mxu0
        %v898 = vadd.f32 %v736, %v893
        %v899 = vld [vmem:[#allocation8] sm:$0xf]
        %901 = vset.pattern.permute.xlu0 0
        %902 = vperm.xlu0 %901, %v899
        %v903 = vpop.permute.xlu0 %902
        %v905 = vadd.f32 %v898, %v903
        %v906 = vpack.c.bf16 %v905, %v905
        %vm907 = vcmask 254976
        %908 = vst.msk [vmem:[%s266] sm:$0x3] %vm907, %v906
        %s909 = sand.u32 %s134, 1
        %s910 = scalar_lea.sflag [#allocation4], %s909
        %s911 = sand.u32 %s134, 1
        %s912 = smul.addr %s911, 2
        %s913 = scalar_lea.vmem [#allocation10], %s912
        // Predicated region
        $region53: #{_lambda_.10} parent=35 // pred_check
          %p914 = pneg %p144
        $region54: #{_lambda_.10} parent=35 // pred_check_branch
          %916 = sbr.rel (%p914) target = $region56
        $region55: #{_lambda_.10} parent=35 // pred_region
          %s918 = ssub.s32 32, 32
          %919 = vsyncadd %s910, %s918
          %s920 = sadd.s32 %s28, %s27
          %s921 = smul.addr %s920, 32
          %s922 = scalar_lea.hbm %s4, %s921
          %s924 = sshll.u32 %s913, 4
          %s925 = int_to_ptr.vmem [resolvable:$true] %s924
          %927 = dma.vmem_to_hbm [thread:$0]  %s925, 32, %s922, %s910
        $region56: #{_lambda_.10} parent=35 // pred_fallthru
          _
      $region36: #{_lambda_.10} parent=5 // pred_fallthru
        _
      %p928 = scmp.le.s32.totalorder 2, %s18
      // Predicated region
      $region57: #{_lambda_.10} parent=5 // pred_check
        %p929 = pneg %p928
      $region58: #{_lambda_.10} parent=5 // pred_check_branch
        %931 = sbr.rel (%p929) target = $region60
      $region59: #{_lambda_.10} parent=5 // pred_region
        %s932 = ssub.s32 %s18, 2
        // Predicated region
        $region61: #{_lambda_.10} parent=59 // pred_check
          %p933 = pneg %p150
        $region62: #{_lambda_.10} parent=59 // pred_check_branch
          %935 = sbr.rel (%p933) target = $region64
        $region63: #{_lambda_.10} parent=59 // pred_region
          %s936 = sand.u32 %s135, 1
          %s937 = scalar_lea.sflag [#allocation4], %s936
          %s938 = sand.u32 %s135, 1
          %s939 = smul.addr %s938, 2
          %s940 = scalar_lea.vmem [#allocation10], %s939
          %941 = dma.done %s937, 32
        $region64: #{_lambda_.10} parent=59 // pred_fallthru
          _
      $region60: #{_lambda_.10} parent=5 // pred_fallthru
        _
    $region6: #{_lambda_.10} parent=1 // loop_footer
      %s22 = sadd.s32 1, %s18
    $region7: #{_lambda_.10} parent=1 // loop_footer_branch
      %17 = sbr.rel target = $region3
    $region8: #{_lambda_.10} parent=1 // loop_exit
      _
    %942 = vsyncpa [#allocation3], 1
    %s943 = scalar_lea.sflag [#allocation3], 1
    %944 = vsyncpa %s943, 1
    %945 = vsyncpa [#allocation6], 1
    %946 = vsyncpa [#allocation9], 1
    %947 = vsyncpa [#allocation4], 1
    %s948 = scalar_lea.sflag [#allocation4], 1
    %949 = vsyncpa %s948, 1

</llo_original>
